<compile_context>
chip_gen: v7x
topology: tpu7x:2x2x1
jax: 0.10.0
libtpu: 0.0.40
codegen_flags: <defaults>
</compile_context>

<pallas_src>
import math

import jax
import jax.numpy as jnp
from jax import lax
from jax.experimental import pallas as pl
from jax.experimental.pallas import tpu as pltpu

SEQ = 8        # L
BATCH = 2      # N
WIDTH = 32     # D (d_model)
HEADS = 4
LAYERS = 2
HEAD_DIM = WIDTH // HEADS
R = BATCH * SEQ
EPS = 1e-5     # nn.LayerNorm default

# bf16 MXU inputs with f32 accumulation (native on v5e/v6e/v7x).
# Set to jnp.float32 to reproduce the fp32 reference to 1e-4 (exact reciprocals).
MXU_DTYPE = jnp.bfloat16
_APPROX = MXU_DTYPE != jnp.float32


def _layer_norm(v, w, b):
    # LayerNorm subclass casts to fp32; we compute in fp32 throughout.
    mu = jnp.mean(v, axis=-1, keepdims=True)
    var = jnp.mean((v - mu) ** 2, axis=-1, keepdims=True)
    return (v - mu) * lax.rsqrt(var + EPS) * w + b


def transformer_kernel(x_ref, wqkv_ref, bqkv_ref, wo_ref, wfc_ref, bfc_ref,
                       wpj_ref, vecs_ref, out_ref):
    """Whole Transformer stack, single invocation (no grid).

    Working layout: 2D batch-major activation, rows = n*SEQ + l, lanes = d_model.
    Weights are stored in MXU_DTYPE, pre-transposed to (D_in, D_out); the q-scale
    is pre-folded (in f32, before the bf16 cast).
    """
    x = x_ref[...]                                   # (R, D) f32 residual stream

    for l in range(LAYERS):                          # static unroll (LAYERS is tiny)
        vec = vecs_ref[l]                            # (6, D) f32
        ln1_w, ln1_b = vec[0:1, :], vec[1:2, :]
        b_o = vec[2:3, :]
        ln2_w, ln2_b = vec[3:4, :], vec[4:5, :]
        b_pj = vec[5:6, :]

        # ---------------- attention sublayer ----------------
        h = _layer_norm(x, ln1_w, ln1_b)             # (R, D) f32
        qkv = jnp.dot(h.astype(MXU_DTYPE), wqkv_ref[l],
                      preferred_element_type=jnp.float32) + bqkv_ref[l]  # (R, 3D) f32

        def split_heads(off):
            # Move head from lanes to a fused leading (HEADS*BATCH) batch axis
            # using only lane slices, leading-dim reshapes and a leading concat.
            return jnp.concatenate(
                [qkv[:, off + hh * HEAD_DIM: off + (hh + 1) * HEAD_DIM]
                 .reshape(BATCH, SEQ, HEAD_DIM) for hh in range(HEADS)],
                axis=0)                              # (H*N, SEQ, Hd), batch = (h, n)

        q3 = split_heads(0).astype(MXU_DTYPE)        # single cast per operand
        k3 = split_heads(WIDTH).astype(MXU_DTYPE)
        v3 = split_heads(2 * WIDTH).astype(MXU_DTYPE)

        # One batched score matmul + ONE softmax for all heads.
        s = jnp.einsum('bqd,bkd->bqk', q3, k3, preferred_element_type=jnp.float32)
        s = s - jnp.max(s, axis=-1, keepdims=True)
        p = jnp.exp(s)                                                 # EUP
        p = p * pl.reciprocal(jnp.sum(p, axis=-1, keepdims=True), approx=_APPROX)
        o3 = jnp.einsum('bqk,bkd->bqd', p.astype(MXU_DTYPE), v3,
                        preferred_element_type=jnp.float32)            # (H*N, SEQ, Hd)

        # out_proj: head-batched matmul against (H, Hd, D) split of Wo^T, then
        # reduce over heads (== o_concat @ Wo^T without a lane-dim concat).
        o_hb = o3.reshape(HEADS, R, HEAD_DIM).astype(MXU_DTYPE)        # (H, R, Hd)
        parts = jnp.einsum('hrd,hde->hre', o_hb, wo_ref[l],
                           preferred_element_type=jnp.float32)         # (H, R, D)
        attn_out = jnp.sum(parts, axis=0)                              # (R, D)

        x = x + attn_out + b_o

        # ---------------- MLP sublayer ----------------
        h = _layer_norm(x, ln2_w, ln2_b)
        f = jnp.dot(h.astype(MXU_DTYPE), wfc_ref[l],
                    preferred_element_type=jnp.float32) + bfc_ref[l]
        # QuickGELU: x * sigmoid(1.702 x) == x * (0.5 + 0.5*tanh(0.851 x)); one tanh.
        f = f * (0.5 + 0.5 * jnp.tanh(0.851 * f))
        f = jnp.dot(f.astype(MXU_DTYPE), wpj_ref[l],
                    preferred_element_type=jnp.float32)
        x = x + f + b_pj

    out_ref[...] = x                                 # single store


def pack_params(p):
    """Host-side layout plumbing: pre-transpose weights, fold q scale (in f32),
    cast MXU weights to MXU_DTYPE, split Wo^T by head, pack D-wide vectors."""
    scale = 1.0 / math.sqrt(HEAD_DIM)
    ipw = jnp.concatenate([p["in_proj_w"][:, :WIDTH] * scale,
                           p["in_proj_w"][:, WIDTH:]], axis=1)     # (L, 3D, D)
    ipb = jnp.concatenate([p["in_proj_b"][:, :WIDTH] * scale,
                           p["in_proj_b"][:, WIDTH:]], axis=1)     # (L, 3D)
    w_qkv = jnp.transpose(ipw, (0, 2, 1)).astype(MXU_DTYPE)        # (L, D, 3D)
    b_qkv = ipb[:, None, :]                                        # (L, 1, 3D) f32
    w_o = (jnp.transpose(p["out_proj_w"], (0, 2, 1))               # Wo^T: (L, D_in, D_out)
           .reshape(LAYERS, HEADS, HEAD_DIM, WIDTH).astype(MXU_DTYPE))
    w_fc = jnp.transpose(p["fc_w"], (0, 2, 1)).astype(MXU_DTYPE)   # (L, D, 4D)
    b_fc = p["fc_b"][:, None, :]                                   # (L, 1, 4D) f32
    w_pj = jnp.transpose(p["proj_w"], (0, 2, 1)).astype(MXU_DTYPE) # (L, 4D, D)
    vecs = jnp.stack([p["ln1_w"], p["ln1_b"], p["out_proj_b"],
                      p["ln2_w"], p["ln2_b"], p["proj_b"]], axis=1)  # (L, 6, D) f32
    return (w_qkv, b_qkv, w_o, w_fc, b_fc, w_pj, vecs)


def transformer_forward(x, params):
    """x: (L, N, D) fp32 (PyTorch nn.MultiheadAttention layout). Returns (L, N, D)."""
    L, N, D = x.shape
    packed = pack_params(params)
    # Batch-major 2D working layout (wrapper-side layout plumbing).
    x2 = jnp.transpose(x, (1, 0, 2)).reshape(N * L, D)

    vmem_spec = pl.BlockSpec(memory_space=pltpu.MemorySpace.VMEM)
    out2 = pl.pallas_call(
        transformer_kernel,
        out_shape=jax.ShapeDtypeStruct((N * L, D), jnp.float32),
        in_specs=[vmem_spec] * (1 + len(packed)),
        out_specs=vmem_spec,
    )(x2, *packed)

    return jnp.transpose(out2.reshape(N, L, D), (1, 0, 2))


def init_params(key):
    """Deterministic synthetic init matching the PyTorch module's parameter shapes."""
    ks = jax.random.split(key, 12)
    s = 0.02

    def nrm(k, shape):
        return jax.random.normal(k, shape, jnp.float32) * s

    return dict(
        ln1_w=1.0 + nrm(ks[0], (LAYERS, WIDTH)),
        ln1_b=nrm(ks[1], (LAYERS, WIDTH)),
        in_proj_w=nrm(ks[2], (LAYERS, 3 * WIDTH, WIDTH)),   # MHA in_proj_weight
        in_proj_b=nrm(ks[3], (LAYERS, 3 * WIDTH)),          # MHA in_proj_bias
        out_proj_w=nrm(ks[4], (LAYERS, WIDTH, WIDTH)),      # MHA out_proj.weight
        out_proj_b=nrm(ks[5], (LAYERS, WIDTH)),
        ln2_w=1.0 + nrm(ks[6], (LAYERS, WIDTH)),
        ln2_b=nrm(ks[7], (LAYERS, WIDTH)),
        fc_w=nrm(ks[8], (LAYERS, 4 * WIDTH, WIDTH)),        # mlp.c_fc.weight
        fc_b=nrm(ks[9], (LAYERS, 4 * WIDTH)),
        proj_w=nrm(ks[10], (LAYERS, WIDTH, 4 * WIDTH)),     # mlp.c_proj.weight
        proj_b=nrm(ks[11], (LAYERS, WIDTH)),
    )


def reference_forward(x, p):
    """Pure-JAX fp32 reference mirroring the PyTorch forward (attn_mask=None)."""
    L, N, D = x.shape
    H, Hd = HEADS, HEAD_DIM
    for l in range(LAYERS):
        h = _layer_norm(x, p["ln1_w"][l], p["ln1_b"][l]).reshape(L * N, D)
        qkv = h @ p["in_proj_w"][l].T + p["in_proj_b"][l]
        q, k, v = qkv[:, :D], qkv[:, D:2 * D], qkv[:, 2 * D:]
        q3 = q.reshape(L, N * H, Hd).transpose(1, 0, 2) / math.sqrt(Hd)
        k3 = k.reshape(L, N * H, Hd).transpose(1, 0, 2)
        v3 = v.reshape(L, N * H, Hd).transpose(1, 0, 2)
        attn = jax.nn.softmax(jnp.einsum('bqd,bkd->bqk', q3, k3), axis=-1)
        o = jnp.einsum('bqk,bkd->bqd', attn, v3).transpose(1, 0, 2).reshape(L * N, D)
        o = o @ p["out_proj_w"][l].T + p["out_proj_b"][l]
        x = x + o.reshape(L, N, D)
        h = _layer_norm(x, p["ln2_w"][l], p["ln2_b"][l]).reshape(L * N, D)
        f = h @ p["fc_w"][l].T + p["fc_b"][l]
        f = f * jax.nn.sigmoid(1.702 * f)
        f = f @ p["proj_w"][l].T + p["proj_b"][l]
        x = x + f.reshape(L, N, D)
    return x


if __name__ == "__main__":
    key = jax.random.PRNGKey(0)
    kx, kp = jax.random.split(key)
    x = jax.random.normal(kx, (SEQ, BATCH, WIDTH), jnp.float32)
    params = init_params(kp)

    fwd = jax.jit(transformer_forward)
    out = jax.block_until_ready(fwd(x, params))

    ref = reference_forward(x, params)
    assert out.shape == (SEQ, BATCH, WIDTH)
    # fp32-MXU mode (exact reciprocals) reproduces the reference to 1e-4; bf16
    # weights/MXU inputs + approx softmax reciprocal need a looser tolerance.
    tol = 1e-4 if MXU_DTYPE == jnp.float32 else 1e-2
    assert jnp.allclose(out, ref, atol=tol, rtol=tol), "mismatch vs pure-JAX reference"

    print("KERNEL_OK")
</pallas_src>

<mosaic_0001>
module attributes {stable_mosaic.version = 11 : i64} {
  func.func @transformer_kernel(%arg0: memref<16x32xf32, #tpu.memory_space<vmem>>, %arg1: memref<2x32x96xbf16, #tpu.memory_space<vmem>>, %arg2: memref<2x1x96xf32, #tpu.memory_space<vmem>>, %arg3: memref<2x4x8x32xbf16, #tpu.memory_space<vmem>>, %arg4: memref<2x32x128xbf16, #tpu.memory_space<vmem>>, %arg5: memref<2x1x128xf32, #tpu.memory_space<vmem>>, %arg6: memref<2x128x32xbf16, #tpu.memory_space<vmem>>, %arg7: memref<2x6x32xf32, #tpu.memory_space<vmem>>, %arg8: memref<16x32xf32, #tpu.memory_space<vmem>>) attributes {dimension_semantics = [], scalar_prefetch = 0 : i64, scratch_operands = 0 : i64, tpu.core_type = #tpu.core_type<tc>} {
    %c0 = arith.constant 0 : index
    %c0_0 = arith.constant 0 : index
    %0 = vector.load %arg0[%c0, %c0_0] : memref<16x32xf32, #tpu.memory_space<vmem>>, vector<16x32xf32>
    %c0_1 = arith.constant 0 : index
    %c0_2 = arith.constant 0 : index
    %c0_3 = arith.constant 0 : index
    %1 = vector.load %arg7[%c0_1, %c0_2, %c0_3] : memref<2x6x32xf32, #tpu.memory_space<vmem>>, vector<1x6x32xf32>
    %2 = vector.shape_cast %1 : vector<1x6x32xf32> to vector<6x32xf32>
    %3 = vector.extract_strided_slice %2 {offsets = [0, 0], sizes = [1, 32], strides = [1, 1]} : vector<6x32xf32> to vector<1x32xf32>
    %4 = vector.extract_strided_slice %2 {offsets = [1, 0], sizes = [1, 32], strides = [1, 1]} : vector<6x32xf32> to vector<1x32xf32>
    %5 = vector.extract_strided_slice %2 {offsets = [2, 0], sizes = [1, 32], strides = [1, 1]} : vector<6x32xf32> to vector<1x32xf32>
    %6 = vector.extract_strided_slice %2 {offsets = [3, 0], sizes = [1, 32], strides = [1, 1]} : vector<6x32xf32> to vector<1x32xf32>
    %7 = vector.extract_strided_slice %2 {offsets = [4, 0], sizes = [1, 32], strides = [1, 1]} : vector<6x32xf32> to vector<1x32xf32>
    %8 = vector.extract_strided_slice %2 {offsets = [5, 0], sizes = [1, 32], strides = [1, 1]} : vector<6x32xf32> to vector<1x32xf32>
    %cst = arith.constant dense<0.000000e+00> : vector<16xf32>
    %9 = vector.multi_reduction <add>, %0, %cst [1] : vector<16x32xf32> to vector<16xf32>
    %10 = vector.shape_cast %9 : vector<16xf32> to vector<16x1xf32>
    %cst_4 = arith.constant 3.200000e+01 : f32
    %11 = vector.broadcast %cst_4 : f32 to vector<16x1xf32>
    %12 = arith.divf %10, %11 : vector<16x1xf32>
    %13 = vector.broadcast %12 : vector<16x1xf32> to vector<16x32xf32>
    %14 = arith.subf %0, %13 : vector<16x32xf32>
    %15 = arith.mulf %14, %14 : vector<16x32xf32>
    %cst_5 = arith.constant dense<0.000000e+00> : vector<16xf32>
    %16 = vector.multi_reduction <add>, %15, %cst_5 [1] : vector<16x32xf32> to vector<16xf32>
    %17 = vector.shape_cast %16 : vector<16xf32> to vector<16x1xf32>
    %cst_6 = arith.constant 3.200000e+01 : f32
    %18 = vector.broadcast %cst_6 : f32 to vector<16x1xf32>
    %19 = arith.divf %17, %18 : vector<16x1xf32>
    %20 = vector.broadcast %12 : vector<16x1xf32> to vector<16x32xf32>
    %21 = arith.subf %0, %20 : vector<16x32xf32>
    %cst_7 = arith.constant 9.99999974E-6 : f32
    %22 = vector.broadcast %cst_7 : f32 to vector<16x1xf32>
    %23 = arith.addf %19, %22 : vector<16x1xf32>
    %24 = math.rsqrt %23 : vector<16x1xf32>
    %25 = vector.broadcast %24 : vector<16x1xf32> to vector<16x32xf32>
    %26 = arith.mulf %21, %25 : vector<16x32xf32>
    %27 = vector.broadcast %3 : vector<1x32xf32> to vector<16x32xf32>
    %28 = arith.mulf %26, %27 : vector<16x32xf32>
    %29 = vector.broadcast %4 : vector<1x32xf32> to vector<16x32xf32>
    %30 = arith.addf %28, %29 : vector<16x32xf32>
    %31 = arith.truncf %30 : vector<16x32xf32> to vector<16x32xbf16>
    %c0_8 = arith.constant 0 : index
    %c0_9 = arith.constant 0 : index
    %c0_10 = arith.constant 0 : index
    %32 = vector.load %arg1[%c0_8, %c0_9, %c0_10] : memref<2x32x96xbf16, #tpu.memory_space<vmem>>, vector<1x32x96xbf16>
    %33 = vector.shape_cast %32 : vector<1x32x96xbf16> to vector<32x96xbf16>
    %cst_11 = arith.constant dense<0.000000e+00> : vector<16x96xf32>
    %34 = tpu.matmul %31, %33, %cst_11 {dimension_numbers = #tpu.dot_dimension_numbers<[1], [0], [0], [1], [0, 0, 1, 1], [], []>} : vector<16x32xbf16>, vector<32x96xbf16>, vector<16x96xf32> -> vector<16x96xf32>
    %c0_12 = arith.constant 0 : index
    %c0_13 = arith.constant 0 : index
    %c0_14 = arith.constant 0 : index
    %35 = vector.load %arg2[%c0_12, %c0_13, %c0_14] : memref<2x1x96xf32, #tpu.memory_space<vmem>>, vector<1x1x96xf32>
    %36 = vector.shape_cast %35 : vector<1x1x96xf32> to vector<1x96xf32>
    %37 = vector.broadcast %36 : vector<1x96xf32> to vector<16x96xf32>
    %38 = arith.addf %34, %37 : vector<16x96xf32>
    %39 = vector.extract_strided_slice %38 {offsets = [0, 0], sizes = [16, 8], strides = [1, 1]} : vector<16x96xf32> to vector<16x8xf32>
    %40 = vector.shape_cast %39 : vector<16x8xf32> to vector<2x8x8xf32>
    %41 = vector.extract_strided_slice %38 {offsets = [0, 8], sizes = [16, 8], strides = [1, 1]} : vector<16x96xf32> to vector<16x8xf32>
    %42 = vector.shape_cast %41 : vector<16x8xf32> to vector<2x8x8xf32>
    %43 = vector.extract_strided_slice %38 {offsets = [0, 16], sizes = [16, 8], strides = [1, 1]} : vector<16x96xf32> to vector<16x8xf32>
    %44 = vector.shape_cast %43 : vector<16x8xf32> to vector<2x8x8xf32>
    %45 = vector.extract_strided_slice %38 {offsets = [0, 24], sizes = [16, 8], strides = [1, 1]} : vector<16x96xf32> to vector<16x8xf32>
    %46 = vector.shape_cast %45 : vector<16x8xf32> to vector<2x8x8xf32>
    %47 = tpu.concatenate %40, %42, %44, %46 in 0 : vector<2x8x8xf32>, vector<2x8x8xf32>, vector<2x8x8xf32>, vector<2x8x8xf32> -> vector<8x8x8xf32>
    %48 = arith.truncf %47 : vector<8x8x8xf32> to vector<8x8x8xbf16>
    %49 = vector.extract_strided_slice %38 {offsets = [0, 32], sizes = [16, 8], strides = [1, 1]} : vector<16x96xf32> to vector<16x8xf32>
    %50 = vector.shape_cast %49 : vector<16x8xf32> to vector<2x8x8xf32>
    %51 = vector.extract_strided_slice %38 {offsets = [0, 40], sizes = [16, 8], strides = [1, 1]} : vector<16x96xf32> to vector<16x8xf32>
    %52 = vector.shape_cast %51 : vector<16x8xf32> to vector<2x8x8xf32>
    %53 = vector.extract_strided_slice %38 {offsets = [0, 48], sizes = [16, 8], strides = [1, 1]} : vector<16x96xf32> to vector<16x8xf32>
    %54 = vector.shape_cast %53 : vector<16x8xf32> to vector<2x8x8xf32>
    %55 = vector.extract_strided_slice %38 {offsets = [0, 56], sizes = [16, 8], strides = [1, 1]} : vector<16x96xf32> to vector<16x8xf32>
    %56 = vector.shape_cast %55 : vector<16x8xf32> to vector<2x8x8xf32>
    %57 = tpu.concatenate %50, %52, %54, %56 in 0 : vector<2x8x8xf32>, vector<2x8x8xf32>, vector<2x8x8xf32>, vector<2x8x8xf32> -> vector<8x8x8xf32>
    %58 = arith.truncf %57 : vector<8x8x8xf32> to vector<8x8x8xbf16>
    %59 = vector.extract_strided_slice %38 {offsets = [0, 64], sizes = [16, 8], strides = [1, 1]} : vector<16x96xf32> to vector<16x8xf32>
    %60 = vector.shape_cast %59 : vector<16x8xf32> to vector<2x8x8xf32>
    %61 = vector.extract_strided_slice %38 {offsets = [0, 72], sizes = [16, 8], strides = [1, 1]} : vector<16x96xf32> to vector<16x8xf32>
    %62 = vector.shape_cast %61 : vector<16x8xf32> to vector<2x8x8xf32>
    %63 = vector.extract_strided_slice %38 {offsets = [0, 80], sizes = [16, 8], strides = [1, 1]} : vector<16x96xf32> to vector<16x8xf32>
    %64 = vector.shape_cast %63 : vector<16x8xf32> to vector<2x8x8xf32>
    %65 = vector.extract_strided_slice %38 {offsets = [0, 88], sizes = [16, 8], strides = [1, 1]} : vector<16x96xf32> to vector<16x8xf32>
    %66 = vector.shape_cast %65 : vector<16x8xf32> to vector<2x8x8xf32>
    %67 = tpu.concatenate %60, %62, %64, %66 in 0 : vector<2x8x8xf32>, vector<2x8x8xf32>, vector<2x8x8xf32>, vector<2x8x8xf32> -> vector<8x8x8xf32>
    %68 = arith.truncf %67 : vector<8x8x8xf32> to vector<8x8x8xbf16>
    "tpu.trace_start"() <{level = 10 : i32, message = "bqd,bkd->bqk"}> : () -> ()
    %cst_15 = arith.constant dense<0.000000e+00> : vector<8x8x8xf32>
    %69 = tpu.matmul %48, %58, %cst_15 {dimension_numbers = #tpu.dot_dimension_numbers<[2], [2], [1], [1], [0, 0, 0, 1, 1, 1], [0], [0]>} : vector<8x8x8xbf16>, vector<8x8x8xbf16>, vector<8x8x8xf32> -> vector<8x8x8xf32>
    "tpu.trace_stop"() : () -> ()
    %cst_16 = arith.constant dense<0xFF800000> : vector<8x8xf32>
    %70 = vector.multi_reduction <maximumf>, %69, %cst_16 [2] : vector<8x8x8xf32> to vector<8x8xf32>
    %71 = vector.shape_cast %70 : vector<8x8xf32> to vector<8x8x1xf32>
    %72 = vector.broadcast %71 : vector<8x8x1xf32> to vector<8x8x8xf32>
    %73 = arith.subf %69, %72 : vector<8x8x8xf32>
    %74 = math.exp %73 : vector<8x8x8xf32>
    %cst_17 = arith.constant dense<0.000000e+00> : vector<8x8xf32>
    %75 = vector.multi_reduction <add>, %74, %cst_17 [2] : vector<8x8x8xf32> to vector<8x8xf32>
    %76 = vector.shape_cast %75 : vector<8x8xf32> to vector<8x8x1xf32>
    %77 = tpu.reciprocal %76 {approx = true} : vector<8x8x1xf32> -> vector<8x8x1xf32>
    %78 = vector.broadcast %77 : vector<8x8x1xf32> to vector<8x8x8xf32>
    %79 = arith.mulf %74, %78 : vector<8x8x8xf32>
    %80 = arith.truncf %79 : vector<8x8x8xf32> to vector<8x8x8xbf16>
    "tpu.trace_start"() <{level = 10 : i32, message = "bqk,bkd->bqd"}> : () -> ()
    %cst_18 = arith.constant dense<0.000000e+00> : vector<8x8x8xf32>
    %81 = tpu.matmul %80, %68, %cst_18 {dimension_numbers = #tpu.dot_dimension_numbers<[2], [1], [1], [2], [0, 0, 0, 1, 1, 2], [0], [0]>} : vector<8x8x8xbf16>, vector<8x8x8xbf16>, vector<8x8x8xf32> -> vector<8x8x8xf32>
    "tpu.trace_stop"() : () -> ()
    %82 = vector.shape_cast %81 : vector<8x8x8xf32> to vector<4x16x8xf32>
    %83 = arith.truncf %82 : vector<4x16x8xf32> to vector<4x16x8xbf16>
    %c0_19 = arith.constant 0 : index
    %c0_20 = arith.constant 0 : index
    %c0_21 = arith.constant 0 : index
    %c0_22 = arith.constant 0 : index
    %84 = vector.load %arg3[%c0_19, %c0_20, %c0_21, %c0_22] : memref<2x4x8x32xbf16, #tpu.memory_space<vmem>>, vector<1x4x8x32xbf16>
    %85 = vector.shape_cast %84 : vector<1x4x8x32xbf16> to vector<4x8x32xbf16>
    "tpu.trace_start"() <{level = 10 : i32, message = "hrd,hde->hre"}> : () -> ()
    %cst_23 = arith.constant dense<0.000000e+00> : vector<4x16x32xf32>
    %86 = tpu.matmul %83, %85, %cst_23 {dimension_numbers = #tpu.dot_dimension_numbers<[2], [1], [1], [2], [0, 0, 0, 1, 1, 2], [0], [0]>} : vector<4x16x8xbf16>, vector<4x8x32xbf16>, vector<4x16x32xf32> -> vector<4x16x32xf32>
    "tpu.trace_stop"() : () -> ()
    %cst_24 = arith.constant dense<0.000000e+00> : vector<16x32xf32>
    %87 = vector.multi_reduction <add>, %86, %cst_24 [0] : vector<4x16x32xf32> to vector<16x32xf32>
    %88 = arith.addf %0, %87 : vector<16x32xf32>
    %89 = vector.broadcast %5 : vector<1x32xf32> to vector<16x32xf32>
    %90 = arith.addf %88, %89 : vector<16x32xf32>
    %cst_25 = arith.constant dense<0.000000e+00> : vector<16xf32>
    %91 = vector.multi_reduction <add>, %90, %cst_25 [1] : vector<16x32xf32> to vector<16xf32>
    %92 = vector.shape_cast %91 : vector<16xf32> to vector<16x1xf32>
    %cst_26 = arith.constant 3.200000e+01 : f32
    %93 = vector.broadcast %cst_26 : f32 to vector<16x1xf32>
    %94 = arith.divf %92, %93 : vector<16x1xf32>
    %95 = vector.broadcast %94 : vector<16x1xf32> to vector<16x32xf32>
    %96 = arith.subf %90, %95 : vector<16x32xf32>
    %97 = arith.mulf %96, %96 : vector<16x32xf32>
    %cst_27 = arith.constant dense<0.000000e+00> : vector<16xf32>
    %98 = vector.multi_reduction <add>, %97, %cst_27 [1] : vector<16x32xf32> to vector<16xf32>
    %99 = vector.shape_cast %98 : vector<16xf32> to vector<16x1xf32>
    %cst_28 = arith.constant 3.200000e+01 : f32
    %100 = vector.broadcast %cst_28 : f32 to vector<16x1xf32>
    %101 = arith.divf %99, %100 : vector<16x1xf32>
    %102 = vector.broadcast %94 : vector<16x1xf32> to vector<16x32xf32>
    %103 = arith.subf %90, %102 : vector<16x32xf32>
    %cst_29 = arith.constant 9.99999974E-6 : f32
    %104 = vector.broadcast %cst_29 : f32 to vector<16x1xf32>
    %105 = arith.addf %101, %104 : vector<16x1xf32>
    %106 = math.rsqrt %105 : vector<16x1xf32>
    %107 = vector.broadcast %106 : vector<16x1xf32> to vector<16x32xf32>
    %108 = arith.mulf %103, %107 : vector<16x32xf32>
    %109 = vector.broadcast %6 : vector<1x32xf32> to vector<16x32xf32>
    %110 = arith.mulf %108, %109 : vector<16x32xf32>
    %111 = vector.broadcast %7 : vector<1x32xf32> to vector<16x32xf32>
    %112 = arith.addf %110, %111 : vector<16x32xf32>
    %113 = arith.truncf %112 : vector<16x32xf32> to vector<16x32xbf16>
    %c0_30 = arith.constant 0 : index
    %c0_31 = arith.constant 0 : index
    %c0_32 = arith.constant 0 : index
    %114 = vector.load %arg4[%c0_30, %c0_31, %c0_32] : memref<2x32x128xbf16, #tpu.memory_space<vmem>>, vector<1x32x128xbf16>
    %115 = vector.shape_cast %114 : vector<1x32x128xbf16> to vector<32x128xbf16>
    %cst_33 = arith.constant dense<0.000000e+00> : vector<16x128xf32>
    %116 = tpu.matmul %113, %115, %cst_33 {dimension_numbers = #tpu.dot_dimension_numbers<[1], [0], [0], [1], [0, 0, 1, 1], [], []>} : vector<16x32xbf16>, vector<32x128xbf16>, vector<16x128xf32> -> vector<16x128xf32>
    %c0_34 = arith.constant 0 : index
    %c0_35 = arith.constant 0 : index
    %c0_36 = arith.constant 0 : index
    %117 = vector.load %arg5[%c0_34, %c0_35, %c0_36] : memref<2x1x128xf32, #tpu.memory_space<vmem>>, vector<1x1x128xf32>
    %118 = vector.shape_cast %117 : vector<1x1x128xf32> to vector<1x128xf32>
    %119 = vector.broadcast %118 : vector<1x128xf32> to vector<16x128xf32>
    %120 = arith.addf %116, %119 : vector<16x128xf32>
    %cst_37 = arith.constant 8.510000e-01 : f32
    %121 = vector.broadcast %cst_37 : f32 to vector<16x128xf32>
    %122 = arith.mulf %121, %120 : vector<16x128xf32>
    %123 = math.tanh %122 : vector<16x128xf32>
    %cst_38 = arith.constant 5.000000e-01 : f32
    %124 = vector.broadcast %cst_38 : f32 to vector<16x128xf32>
    %125 = arith.mulf %124, %123 : vector<16x128xf32>
    %cst_39 = arith.constant 5.000000e-01 : f32
    %126 = vector.broadcast %cst_39 : f32 to vector<16x128xf32>
    %127 = arith.addf %126, %125 : vector<16x128xf32>
    %128 = arith.mulf %120, %127 : vector<16x128xf32>
    %129 = arith.truncf %128 : vector<16x128xf32> to vector<16x128xbf16>
    %c0_40 = arith.constant 0 : index
    %c0_41 = arith.constant 0 : index
    %c0_42 = arith.constant 0 : index
    %130 = vector.load %arg6[%c0_40, %c0_41, %c0_42] : memref<2x128x32xbf16, #tpu.memory_space<vmem>>, vector<1x128x32xbf16>
    %131 = vector.shape_cast %130 : vector<1x128x32xbf16> to vector<128x32xbf16>
    %cst_43 = arith.constant dense<0.000000e+00> : vector<16x32xf32>
    %132 = tpu.matmul %129, %131, %cst_43 {dimension_numbers = #tpu.dot_dimension_numbers<[1], [0], [0], [1], [0, 0, 1, 1], [], []>} : vector<16x128xbf16>, vector<128x32xbf16>, vector<16x32xf32> -> vector<16x32xf32>
    %133 = arith.addf %90, %132 : vector<16x32xf32>
    %134 = vector.broadcast %8 : vector<1x32xf32> to vector<16x32xf32>
    %135 = arith.addf %133, %134 : vector<16x32xf32>
    %c1 = arith.constant 1 : index
    %c0_44 = arith.constant 0 : index
    %c0_45 = arith.constant 0 : index
    %136 = vector.load %arg7[%c1, %c0_44, %c0_45] : memref<2x6x32xf32, #tpu.memory_space<vmem>>, vector<1x6x32xf32>
    %137 = vector.shape_cast %136 : vector<1x6x32xf32> to vector<6x32xf32>
    %138 = vector.extract_strided_slice %137 {offsets = [0, 0], sizes = [1, 32], strides = [1, 1]} : vector<6x32xf32> to vector<1x32xf32>
    %139 = vector.extract_strided_slice %137 {offsets = [1, 0], sizes = [1, 32], strides = [1, 1]} : vector<6x32xf32> to vector<1x32xf32>
    %140 = vector.extract_strided_slice %137 {offsets = [2, 0], sizes = [1, 32], strides = [1, 1]} : vector<6x32xf32> to vector<1x32xf32>
    %141 = vector.extract_strided_slice %137 {offsets = [3, 0], sizes = [1, 32], strides = [1, 1]} : vector<6x32xf32> to vector<1x32xf32>
    %142 = vector.extract_strided_slice %137 {offsets = [4, 0], sizes = [1, 32], strides = [1, 1]} : vector<6x32xf32> to vector<1x32xf32>
    %143 = vector.extract_strided_slice %137 {offsets = [5, 0], sizes = [1, 32], strides = [1, 1]} : vector<6x32xf32> to vector<1x32xf32>
    %cst_46 = arith.constant dense<0.000000e+00> : vector<16xf32>
    %144 = vector.multi_reduction <add>, %135, %cst_46 [1] : vector<16x32xf32> to vector<16xf32>
    %145 = vector.shape_cast %144 : vector<16xf32> to vector<16x1xf32>
    %cst_47 = arith.constant 3.200000e+01 : f32
    %146 = vector.broadcast %cst_47 : f32 to vector<16x1xf32>
    %147 = arith.divf %145, %146 : vector<16x1xf32>
    %148 = vector.broadcast %147 : vector<16x1xf32> to vector<16x32xf32>
    %149 = arith.subf %135, %148 : vector<16x32xf32>
    %150 = arith.mulf %149, %149 : vector<16x32xf32>
    %cst_48 = arith.constant dense<0.000000e+00> : vector<16xf32>
    %151 = vector.multi_reduction <add>, %150, %cst_48 [1] : vector<16x32xf32> to vector<16xf32>
    %152 = vector.shape_cast %151 : vector<16xf32> to vector<16x1xf32>
    %cst_49 = arith.constant 3.200000e+01 : f32
    %153 = vector.broadcast %cst_49 : f32 to vector<16x1xf32>
    %154 = arith.divf %152, %153 : vector<16x1xf32>
    %155 = vector.broadcast %147 : vector<16x1xf32> to vector<16x32xf32>
    %156 = arith.subf %135, %155 : vector<16x32xf32>
    %cst_50 = arith.constant 9.99999974E-6 : f32
    %157 = vector.broadcast %cst_50 : f32 to vector<16x1xf32>
    %158 = arith.addf %154, %157 : vector<16x1xf32>
    %159 = math.rsqrt %158 : vector<16x1xf32>
    %160 = vector.broadcast %159 : vector<16x1xf32> to vector<16x32xf32>
    %161 = arith.mulf %156, %160 : vector<16x32xf32>
    %162 = vector.broadcast %138 : vector<1x32xf32> to vector<16x32xf32>
    %163 = arith.mulf %161, %162 : vector<16x32xf32>
    %164 = vector.broadcast %139 : vector<1x32xf32> to vector<16x32xf32>
    %165 = arith.addf %163, %164 : vector<16x32xf32>
    %166 = arith.truncf %165 : vector<16x32xf32> to vector<16x32xbf16>
    %c1_51 = arith.constant 1 : index
    %c0_52 = arith.constant 0 : index
    %c0_53 = arith.constant 0 : index
    %167 = vector.load %arg1[%c1_51, %c0_52, %c0_53] : memref<2x32x96xbf16, #tpu.memory_space<vmem>>, vector<1x32x96xbf16>
    %168 = vector.shape_cast %167 : vector<1x32x96xbf16> to vector<32x96xbf16>
    %cst_54 = arith.constant dense<0.000000e+00> : vector<16x96xf32>
    %169 = tpu.matmul %166, %168, %cst_54 {dimension_numbers = #tpu.dot_dimension_numbers<[1], [0], [0], [1], [0, 0, 1, 1], [], []>} : vector<16x32xbf16>, vector<32x96xbf16>, vector<16x96xf32> -> vector<16x96xf32>
    %c1_55 = arith.constant 1 : index
    %c0_56 = arith.constant 0 : index
    %c0_57 = arith.constant 0 : index
    %170 = vector.load %arg2[%c1_55, %c0_56, %c0_57] : memref<2x1x96xf32, #tpu.memory_space<vmem>>, vector<1x1x96xf32>
    %171 = vector.shape_cast %170 : vector<1x1x96xf32> to vector<1x96xf32>
    %172 = vector.broadcast %171 : vector<1x96xf32> to vector<16x96xf32>
    %173 = arith.addf %169, %172 : vector<16x96xf32>
    %174 = vector.extract_strided_slice %173 {offsets = [0, 0], sizes = [16, 8], strides = [1, 1]} : vector<16x96xf32> to vector<16x8xf32>
    %175 = vector.shape_cast %174 : vector<16x8xf32> to vector<2x8x8xf32>
    %176 = vector.extract_strided_slice %173 {offsets = [0, 8], sizes = [16, 8], strides = [1, 1]} : vector<16x96xf32> to vector<16x8xf32>
    %177 = vector.shape_cast %176 : vector<16x8xf32> to vector<2x8x8xf32>
    %178 = vector.extract_strided_slice %173 {offsets = [0, 16], sizes = [16, 8], strides = [1, 1]} : vector<16x96xf32> to vector<16x8xf32>
    %179 = vector.shape_cast %178 : vector<16x8xf32> to vector<2x8x8xf32>
    %180 = vector.extract_strided_slice %173 {offsets = [0, 24], sizes = [16, 8], strides = [1, 1]} : vector<16x96xf32> to vector<16x8xf32>
    %181 = vector.shape_cast %180 : vector<16x8xf32> to vector<2x8x8xf32>
    %182 = tpu.concatenate %175, %177, %179, %181 in 0 : vector<2x8x8xf32>, vector<2x8x8xf32>, vector<2x8x8xf32>, vector<2x8x8xf32> -> vector<8x8x8xf32>
    %183 = arith.truncf %182 : vector<8x8x8xf32> to vector<8x8x8xbf16>
    %184 = vector.extract_strided_slice %173 {offsets = [0, 32], sizes = [16, 8], strides = [1, 1]} : vector<16x96xf32> to vector<16x8xf32>
    %185 = vector.shape_cast %184 : vector<16x8xf32> to vector<2x8x8xf32>
    %186 = vector.extract_strided_slice %173 {offsets = [0, 40], sizes = [16, 8], strides = [1, 1]} : vector<16x96xf32> to vector<16x8xf32>
    %187 = vector.shape_cast %186 : vector<16x8xf32> to vector<2x8x8xf32>
    %188 = vector.extract_strided_slice %173 {offsets = [0, 48], sizes = [16, 8], strides = [1, 1]} : vector<16x96xf32> to vector<16x8xf32>
    %189 = vector.shape_cast %188 : vector<16x8xf32> to vector<2x8x8xf32>
    %190 = vector.extract_strided_slice %173 {offsets = [0, 56], sizes = [16, 8], strides = [1, 1]} : vector<16x96xf32> to vector<16x8xf32>
    %191 = vector.shape_cast %190 : vector<16x8xf32> to vector<2x8x8xf32>
    %192 = tpu.concatenate %185, %187, %189, %191 in 0 : vector<2x8x8xf32>, vector<2x8x8xf32>, vector<2x8x8xf32>, vector<2x8x8xf32> -> vector<8x8x8xf32>
    %193 = arith.truncf %192 : vector<8x8x8xf32> to vector<8x8x8xbf16>
    %194 = vector.extract_strided_slice %173 {offsets = [0, 64], sizes = [16, 8], strides = [1, 1]} : vector<16x96xf32> to vector<16x8xf32>
    %195 = vector.shape_cast %194 : vector<16x8xf32> to vector<2x8x8xf32>
    %196 = vector.extract_strided_slice %173 {offsets = [0, 72], sizes = [16, 8], strides = [1, 1]} : vector<16x96xf32> to vector<16x8xf32>
    %197 = vector.shape_cast %196 : vector<16x8xf32> to vector<2x8x8xf32>
    %198 = vector.extract_strided_slice %173 {offsets = [0, 80], sizes = [16, 8], strides = [1, 1]} : vector<16x96xf32> to vector<16x8xf32>
    %199 = vector.shape_cast %198 : vector<16x8xf32> to vector<2x8x8xf32>
    %200 = vector.extract_strided_slice %173 {offsets = [0, 88], sizes = [16, 8], strides = [1, 1]} : vector<16x96xf32> to vector<16x8xf32>
    %201 = vector.shape_cast %200 : vector<16x8xf32> to vector<2x8x8xf32>
    %202 = tpu.concatenate %195, %197, %199, %201 in 0 : vector<2x8x8xf32>, vector<2x8x8xf32>, vector<2x8x8xf32>, vector<2x8x8xf32> -> vector<8x8x8xf32>
    %203 = arith.truncf %202 : vector<8x8x8xf32> to vector<8x8x8xbf16>
    "tpu.trace_start"() <{level = 10 : i32, message = "bqd,bkd->bqk"}> : () -> ()
    %cst_58 = arith.constant dense<0.000000e+00> : vector<8x8x8xf32>
    %204 = tpu.matmul %183, %193, %cst_58 {dimension_numbers = #tpu.dot_dimension_numbers<[2], [2], [1], [1], [0, 0, 0, 1, 1, 1], [0], [0]>} : vector<8x8x8xbf16>, vector<8x8x8xbf16>, vector<8x8x8xf32> -> vector<8x8x8xf32>
    "tpu.trace_stop"() : () -> ()
    %cst_59 = arith.constant dense<0xFF800000> : vector<8x8xf32>
    %205 = vector.multi_reduction <maximumf>, %204, %cst_59 [2] : vector<8x8x8xf32> to vector<8x8xf32>
    %206 = vector.shape_cast %205 : vector<8x8xf32> to vector<8x8x1xf32>
    %207 = vector.broadcast %206 : vector<8x8x1xf32> to vector<8x8x8xf32>
    %208 = arith.subf %204, %207 : vector<8x8x8xf32>
    %209 = math.exp %208 : vector<8x8x8xf32>
    %cst_60 = arith.constant dense<0.000000e+00> : vector<8x8xf32>
    %210 = vector.multi_reduction <add>, %209, %cst_60 [2] : vector<8x8x8xf32> to vector<8x8xf32>
    %211 = vector.shape_cast %210 : vector<8x8xf32> to vector<8x8x1xf32>
    %212 = tpu.reciprocal %211 {approx = true} : vector<8x8x1xf32> -> vector<8x8x1xf32>
    %213 = vector.broadcast %212 : vector<8x8x1xf32> to vector<8x8x8xf32>
    %214 = arith.mulf %209, %213 : vector<8x8x8xf32>
    %215 = arith.truncf %214 : vector<8x8x8xf32> to vector<8x8x8xbf16>
    "tpu.trace_start"() <{level = 10 : i32, message = "bqk,bkd->bqd"}> : () -> ()
    %cst_61 = arith.constant dense<0.000000e+00> : vector<8x8x8xf32>
    %216 = tpu.matmul %215, %203, %cst_61 {dimension_numbers = #tpu.dot_dimension_numbers<[2], [1], [1], [2], [0, 0, 0, 1, 1, 2], [0], [0]>} : vector<8x8x8xbf16>, vector<8x8x8xbf16>, vector<8x8x8xf32> -> vector<8x8x8xf32>
    "tpu.trace_stop"() : () -> ()
    %217 = vector.shape_cast %216 : vector<8x8x8xf32> to vector<4x16x8xf32>
    %218 = arith.truncf %217 : vector<4x16x8xf32> to vector<4x16x8xbf16>
    %c1_62 = arith.constant 1 : index
    %c0_63 = arith.constant 0 : index
    %c0_64 = arith.constant 0 : index
    %c0_65 = arith.constant 0 : index
    %219 = vector.load %arg3[%c1_62, %c0_63, %c0_64, %c0_65] : memref<2x4x8x32xbf16, #tpu.memory_space<vmem>>, vector<1x4x8x32xbf16>
    %220 = vector.shape_cast %219 : vector<1x4x8x32xbf16> to vector<4x8x32xbf16>
    "tpu.trace_start"() <{level = 10 : i32, message = "hrd,hde->hre"}> : () -> ()
    %cst_66 = arith.constant dense<0.000000e+00> : vector<4x16x32xf32>
    %221 = tpu.matmul %218, %220, %cst_66 {dimension_numbers = #tpu.dot_dimension_numbers<[2], [1], [1], [2], [0, 0, 0, 1, 1, 2], [0], [0]>} : vector<4x16x8xbf16>, vector<4x8x32xbf16>, vector<4x16x32xf32> -> vector<4x16x32xf32>
    "tpu.trace_stop"() : () -> ()
    %cst_67 = arith.constant dense<0.000000e+00> : vector<16x32xf32>
    %222 = vector.multi_reduction <add>, %221, %cst_67 [0] : vector<4x16x32xf32> to vector<16x32xf32>
    %223 = arith.addf %135, %222 : vector<16x32xf32>
    %224 = vector.broadcast %140 : vector<1x32xf32> to vector<16x32xf32>
    %225 = arith.addf %223, %224 : vector<16x32xf32>
    %cst_68 = arith.constant dense<0.000000e+00> : vector<16xf32>
    %226 = vector.multi_reduction <add>, %225, %cst_68 [1] : vector<16x32xf32> to vector<16xf32>
    %227 = vector.shape_cast %226 : vector<16xf32> to vector<16x1xf32>
    %cst_69 = arith.constant 3.200000e+01 : f32
    %228 = vector.broadcast %cst_69 : f32 to vector<16x1xf32>
    %229 = arith.divf %227, %228 : vector<16x1xf32>
    %230 = vector.broadcast %229 : vector<16x1xf32> to vector<16x32xf32>
    %231 = arith.subf %225, %230 : vector<16x32xf32>
    %232 = arith.mulf %231, %231 : vector<16x32xf32>
    %cst_70 = arith.constant dense<0.000000e+00> : vector<16xf32>
    %233 = vector.multi_reduction <add>, %232, %cst_70 [1] : vector<16x32xf32> to vector<16xf32>
    %234 = vector.shape_cast %233 : vector<16xf32> to vector<16x1xf32>
    %cst_71 = arith.constant 3.200000e+01 : f32
    %235 = vector.broadcast %cst_71 : f32 to vector<16x1xf32>
    %236 = arith.divf %234, %235 : vector<16x1xf32>
    %237 = vector.broadcast %229 : vector<16x1xf32> to vector<16x32xf32>
    %238 = arith.subf %225, %237 : vector<16x32xf32>
    %cst_72 = arith.constant 9.99999974E-6 : f32
    %239 = vector.broadcast %cst_72 : f32 to vector<16x1xf32>
    %240 = arith.addf %236, %239 : vector<16x1xf32>
    %241 = math.rsqrt %240 : vector<16x1xf32>
    %242 = vector.broadcast %241 : vector<16x1xf32> to vector<16x32xf32>
    %243 = arith.mulf %238, %242 : vector<16x32xf32>
    %244 = vector.broadcast %141 : vector<1x32xf32> to vector<16x32xf32>
    %245 = arith.mulf %243, %244 : vector<16x32xf32>
    %246 = vector.broadcast %142 : vector<1x32xf32> to vector<16x32xf32>
    %247 = arith.addf %245, %246 : vector<16x32xf32>
    %248 = arith.truncf %247 : vector<16x32xf32> to vector<16x32xbf16>
    %c1_73 = arith.constant 1 : index
    %c0_74 = arith.constant 0 : index
    %c0_75 = arith.constant 0 : index
    %249 = vector.load %arg4[%c1_73, %c0_74, %c0_75] : memref<2x32x128xbf16, #tpu.memory_space<vmem>>, vector<1x32x128xbf16>
    %250 = vector.shape_cast %249 : vector<1x32x128xbf16> to vector<32x128xbf16>
    %cst_76 = arith.constant dense<0.000000e+00> : vector<16x128xf32>
    %251 = tpu.matmul %248, %250, %cst_76 {dimension_numbers = #tpu.dot_dimension_numbers<[1], [0], [0], [1], [0, 0, 1, 1], [], []>} : vector<16x32xbf16>, vector<32x128xbf16>, vector<16x128xf32> -> vector<16x128xf32>
    %c1_77 = arith.constant 1 : index
    %c0_78 = arith.constant 0 : index
    %c0_79 = arith.constant 0 : index
    %252 = vector.load %arg5[%c1_77, %c0_78, %c0_79] : memref<2x1x128xf32, #tpu.memory_space<vmem>>, vector<1x1x128xf32>
    %253 = vector.shape_cast %252 : vector<1x1x128xf32> to vector<1x128xf32>
    %254 = vector.broadcast %253 : vector<1x128xf32> to vector<16x128xf32>
    %255 = arith.addf %251, %254 : vector<16x128xf32>
    %cst_80 = arith.constant 8.510000e-01 : f32
    %256 = vector.broadcast %cst_80 : f32 to vector<16x128xf32>
    %257 = arith.mulf %256, %255 : vector<16x128xf32>
    %258 = math.tanh %257 : vector<16x128xf32>
    %cst_81 = arith.constant 5.000000e-01 : f32
    %259 = vector.broadcast %cst_81 : f32 to vector<16x128xf32>
    %260 = arith.mulf %259, %258 : vector<16x128xf32>
    %cst_82 = arith.constant 5.000000e-01 : f32
    %261 = vector.broadcast %cst_82 : f32 to vector<16x128xf32>
    %262 = arith.addf %261, %260 : vector<16x128xf32>
    %263 = arith.mulf %255, %262 : vector<16x128xf32>
    %264 = arith.truncf %263 : vector<16x128xf32> to vector<16x128xbf16>
    %c1_83 = arith.constant 1 : index
    %c0_84 = arith.constant 0 : index
    %c0_85 = arith.constant 0 : index
    %265 = vector.load %arg6[%c1_83, %c0_84, %c0_85] : memref<2x128x32xbf16, #tpu.memory_space<vmem>>, vector<1x128x32xbf16>
    %266 = vector.shape_cast %265 : vector<1x128x32xbf16> to vector<128x32xbf16>
    %cst_86 = arith.constant dense<0.000000e+00> : vector<16x32xf32>
    %267 = tpu.matmul %264, %266, %cst_86 {dimension_numbers = #tpu.dot_dimension_numbers<[1], [0], [0], [1], [0, 0, 1, 1], [], []>} : vector<16x128xbf16>, vector<128x32xbf16>, vector<16x32xf32> -> vector<16x32xf32>
    %268 = arith.addf %225, %267 : vector<16x32xf32>
    %269 = vector.broadcast %143 : vector<1x32xf32> to vector<16x32xf32>
    %270 = arith.addf %268, %269 : vector<16x32xf32>
    %c0_87 = arith.constant 0 : index
    %c0_88 = arith.constant 0 : index
    %271 = vector.load %arg8[%c0_87, %c0_88] : memref<16x32xf32, #tpu.memory_space<vmem>>, vector<16x32xf32>
    tpu.vector_store %arg8[%c0_87, %c0_88], %270 {strides = array<i32>} : memref<16x32xf32, #tpu.memory_space<vmem>>, vector<16x32xf32>,
    return
  }
}

</mosaic_0001>

<llo_original>
// kernel: transformer_forward.1
$region0: #{transformer_forward.1}
  #allocation0 [shape = 'u32[]', space=smem, size = 0x4, offset = 0x4, fixed_abs, tag = 'smem constant byte address 0x4 - core index']
  #allocation1 [shape = 'u32[144,128]{1,0:T(1,128)}', space=vmem, size = 0x12000, scoped, tag = 'internal scratch']
  %s0 = inlined_call_operand.vmem [shape: f32[16,32], index: 0, kind: input, shape index: {}]
  %s1 = inlined_call_operand.vmem [shape: bf16[2,32,96], index: 1, kind: input, shape index: {}]
  %s2 = inlined_call_operand.vmem [shape: f32[2,1,96], index: 2, kind: input, shape index: {}]
  %s3 = inlined_call_operand.vmem [shape: bf16[2,4,8,32], index: 3, kind: input, shape index: {}]
  %s4 = inlined_call_operand.vmem [shape: bf16[2,32,128], index: 4, kind: input, shape index: {}]
  %s5 = inlined_call_operand.vmem [shape: f32[2,1,128], index: 5, kind: input, shape index: {}]
  %s6 = inlined_call_operand.vmem [shape: bf16[2,128,32], index: 6, kind: input, shape index: {}]
  %s7 = inlined_call_operand.vmem [shape: f32[2,6,32], index: 7, kind: input, shape index: {}]
  %s8 = inlined_call_operand.vmem [shape: f32[16,32], index: 8, kind: output, shape index: {}]
  %s9 = sld [smem:[#allocation0]]
  $region42: #{transformer_forward.1} parent=0
    _
  %s11 = ssub.s32 1, %s9
  %s12 = scalar_select 0, %s11, %s9
  // Predicated region
  $region2: #{transformer_forward.1} parent=0 // pred_check
    _
  $region3: #{transformer_forward.1} parent=0 // pred_check_branch
    %14 = sbr.rel (0) target = $region5
  $region4: #{transformer_forward.1} parent=0 // pred_region
    _
  $region5: #{transformer_forward.1} parent=0 // pred_fallthru
    _
  // Predicated region
  $region6: #{transformer_forward.1} parent=0 // pred_check
    _
  $region7: #{transformer_forward.1} parent=0 // pred_check_branch
    %16 = sbr.rel (0) target = $region9
  $region8: #{transformer_forward.1} parent=0 // pred_region
    _
  $region9: #{transformer_forward.1} parent=0 // pred_fallthru
    _
  // Predicated region
  $region10: #{transformer_forward.1} parent=0 // pred_check
    _
  $region11: #{transformer_forward.1} parent=0 // pred_check_branch
    %18 = sbr.rel (0) target = $region13
  $region12: #{transformer_forward.1} parent=0 // pred_region
    _
  $region13: #{transformer_forward.1} parent=0 // pred_fallthru
    _
  // Predicated region
  $region14: #{transformer_forward.1} parent=0 // pred_check
    _
  $region15: #{transformer_forward.1} parent=0 // pred_check_branch
    %20 = sbr.rel (0) target = $region17
  $region16: #{transformer_forward.1} parent=0 // pred_region
    _
  $region17: #{transformer_forward.1} parent=0 // pred_fallthru
    _
  // Predicated region
  $region18: #{transformer_forward.1} parent=0 // pred_check
    _
  $region19: #{transformer_forward.1} parent=0 // pred_check_branch
    %22 = sbr.rel (0) target = $region21
  $region20: #{transformer_forward.1} parent=0 // pred_region
    _
  $region21: #{transformer_forward.1} parent=0 // pred_fallthru
    _
  // Predicated region
  $region22: #{transformer_forward.1} parent=0 // pred_check
    _
  $region23: #{transformer_forward.1} parent=0 // pred_check_branch
    %24 = sbr.rel (0) target = $region25
  $region24: #{transformer_forward.1} parent=0 // pred_region
    _
  $region25: #{transformer_forward.1} parent=0 // pred_fallthru
    _
  // Predicated region
  $region26: #{transformer_forward.1} parent=0 // pred_check
    _
  $region27: #{transformer_forward.1} parent=0 // pred_check_branch
    %26 = sbr.rel (0) target = $region29
  $region28: #{transformer_forward.1} parent=0 // pred_region
    _
  $region29: #{transformer_forward.1} parent=0 // pred_fallthru
    _
  // Predicated region
  $region30: #{transformer_forward.1} parent=0 // pred_check
    _
  $region31: #{transformer_forward.1} parent=0 // pred_check_branch
    %28 = sbr.rel (0) target = $region33
  $region32: #{transformer_forward.1} parent=0 // pred_region
    _
  $region33: #{transformer_forward.1} parent=0 // pred_fallthru
    _
  %v30 = vld [vmem:[%s0] sm:$0xff]
  %v31 = vld [vmem:[%s0 + $0x8] sm:$0xff]
  %v32 = vld [vmem:[%s7] sm:$0x3f]
  %vm33 = vcmask 261120
  %v34 = vsel %vm33, %v30, 0.0
  %35 = vadd.xlane.f32.xlu0 %v34
  %v36 = vpop.xlane.xlu0 %35
  %v37 = vsel %vm33, %v31, 0.0
  %38 = vadd.xlane.f32.xlu0 %v37
  %v39 = vpop.xlane.xlu0 %38
  %v40 = vrcp.pop 32.0
  %v41 = vmul.f32 %v36, %v40
  %v42 = vmul.f32 %v39, %v40
  %v43 = vsub.f32 %v30, %v41
  %v44 = vsub.f32 %v31, %v42
  %v45 = vmul.f32 %v43, %v43
  %v46 = vmul.f32 %v44, %v44
  %v47 = vsel %vm33, %v45, 0.0
  %48 = vadd.xlane.f32.xlu0 %v47
  %v49 = vpop.xlane.xlu0 %48
  %v50 = vsel %vm33, %v46, 0.0
  %51 = vadd.xlane.f32.xlu0 %v50
  %v52 = vpop.xlane.xlu0 %51
  %v53 = vmul.f32 %v49, %v40
  %v54 = vmul.f32 %v52, %v40
  %v55 = vadd.f32 %v53, 1e-05
  %v56 = vadd.f32 %v54, 1e-05
  %v57 = vrsqrt.pop %v55
  %v58 = vrsqrt.pop %v56
  %v59 = vmul.f32 %v43, %v57
  %v60 = vmul.f32 %v44, %v58
  %v61 = vlaneseq
  %v62 = vshrl.u32 %v61, 7
  %v63 = vsub.s32 0, %v62
  %v64 = vrot.slane %v32, %v63
  %v65 = vmul.f32 %v59, %v64
  %v66 = vmul.f32 %v60, %v64
  %v67 = vlaneseq
  %v68 = vshrl.u32 %v67, 7
  %v69 = vsub.s32 1, %v68
  %v70 = vrot.slane %v32, %v69
  %v71 = vadd.f32 %v65, %v70
  %v72 = vadd.f32 %v66, %v70
  %v73 = vpack.c.bf16 %v72, %v71
  %v74 = vld [vmem:[%s1] sm:$0xf]
  %v75 = vld [vmem:[%s1 + $0x4] sm:$0xf]
  %v76 = vld [vmem:[%s1 + $0x8] sm:$0xf]
  %v77 = vld [vmem:[%s1 + $0xc] sm:$0xf]
  %v78 = vld [vmem:[%s2] sm:$0x1]
  %v80 = vlaneseq
  %v81 = vshrl.u32 %v80, 7
  %v82 = vsub.s32 0, %v81
  %v83 = vrot.slane %v78, %v82
  %v89 = vunpack.c.l.b16 %v74
  %v90 = vunpack.c.l.b16 %v75
  %v91 = vunpack.c.l.b16 %v76
  %v92 = vunpack.c.l.b16 %v77
  %v93 = vpack.c.b16 %v90, %v89
  %v94 = vpack.c.b16 %v92, %v91
  %v98 = vsel %vm33, %v73, 0
  %100 = vmatprep.subr.bf16.mxu0 0
  %101 = vmatpush1.bf16.msra.mxu0 %v93
  %102 = vmatprep.subr.bf16.mxu0 0
  %103 = vmatpush1.bf16.msra.mxu0 %v94
  %104 = vmatprep.subr.bf16.mxu0 0
  %105 = vmatpush1.bf16.msra.mxu0 0
  %106 = vmatprep.subr.bf16.mxu0 0
  %107 = vmatpush1.bf16.msra.mxu0 0
  %108 = vmatprep.subr.bf16.mxu0 0
  %109 = vmatpush1.bf16.msra.mxu0 0
  %110 = vmatprep.subr.bf16.mxu0 0
  %111 = vmatpush1.bf16.msra.mxu0 0
  %112 = vmatprep.subr.bf16.mxu0 0
  %113 = vmatpush1.bf16.msra.mxu0 0
  %114 = vmatprep.subr.bf16.mxu0 0
  %115 = vmatpush1.bf16.msra.mxu0 0
  %116 = vmatprep.subr.bf16.mxu0 0
  %117 = vmatpush1.bf16.msra.mxu0 0
  %118 = vmatprep.subr.bf16.mxu0 0
  %119 = vmatpush1.bf16.msra.mxu0 0
  %120 = vmatprep.subr.bf16.mxu0 0
  %121 = vmatpush1.bf16.msra.mxu0 0
  %122 = vmatprep.subr.bf16.mxu0 0
  %123 = vmatpush1.bf16.msra.mxu0 0
  %124 = vmatprep.subr.bf16.mxu0 0
  %125 = vmatpush1.bf16.msra.mxu0 0
  %126 = vmatprep.subr.bf16.mxu0 0
  %127 = vmatpush1.bf16.msra.mxu0 0
  %128 = vmatprep.subr.bf16.mxu0 0
  %129 = vmatpush1.bf16.msra.mxu0 0
  %130 = vmatprep.subr.bf16.mxu0 0
  %131 = vmatpush1.bf16.msra.mxu0 0
  %132 = vmatprep.mubr.bf16.mxu0 0
  %133 = vmatmul.mubr.bf16.gmra.mrb[0].mxu0 %v98
  %v134 = vpop.f32.mrb[0].mxu0
  %v135 = vadd.f32 %v83, %v134
  %v136 = vpop.f32.mrb[0].mxu0
  %v137 = vpop.f32.mrb[0].mxu0
  %v138 = vadd.f32 %v83, %v137
  %v139 = vpop.f32.mrb[0].mxu0
  %140 = vdwg.mxu0
  %143 = vrot.lane.b32.xlu0 %v135, 120
  %v144 = vpop.permute.xlu0 %143
  %145 = vrot.lane.b32.xlu0 %v138, 120
  %v146 = vpop.permute.xlu0 %145
  %149 = vrot.lane.b32.xlu0 %v135, 112
  %v150 = vpop.permute.xlu0 %149
  %151 = vrot.lane.b32.xlu0 %v138, 112
  %v152 = vpop.permute.xlu0 %151
  %155 = vrot.lane.b32.xlu0 %v135, 104
  %v156 = vpop.permute.xlu0 %155
  %157 = vrot.lane.b32.xlu0 %v138, 104
  %v158 = vpop.permute.xlu0 %157
  %v161 = vpack.c.bf16 %v135, %v135
  %v162 = vpack.c.bf16 %v138, %v138
  %v163 = vpack.c.bf16 %v144, %v144
  %v164 = vpack.c.bf16 %v146, %v146
  %v165 = vpack.c.bf16 %v150, %v150
  %v166 = vpack.c.bf16 %v152, %v152
  %v167 = vpack.c.bf16 %v156, %v156
  %v168 = vpack.c.bf16 %v158, %v158
  %170 = vrot.lane.b32.xlu0 %v161, 96
  %v171 = vpop.permute.xlu0 %170
  %vm172 = vcmask 64512
  %v174 = vsel %vm172, %v161, 0
  %v177 = vsel %vm172, %v171, 0
  %179 = vmatprep.subr.bf16.mxu0 0
  %180 = vmatpush1.bf16.xpose.msra.mxu0 %v177
  %181 = vmatprep.subr.bf16.mxu0 0
  %182 = vmatpush1.bf16.xpose.msra.mxu0 0
  %183 = vmatprep.subr.bf16.mxu0 0
  %184 = vmatpush1.bf16.xpose.msra.mxu0 0
  %185 = vmatprep.subr.bf16.mxu0 0
  %186 = vmatpush1.bf16.xpose.msra.mxu0 0
  %187 = vmatprep.subr.bf16.mxu0 0
  %188 = vmatpush1.bf16.xpose.msra.mxu0 0
  %189 = vmatprep.subr.bf16.mxu0 0
  %190 = vmatpush1.bf16.xpose.msra.mxu0 0
  %191 = vmatprep.subr.bf16.mxu0 0
  %192 = vmatpush1.bf16.xpose.msra.mxu0 0
  %193 = vmatprep.subr.bf16.mxu0 0
  %194 = vmatpush1.bf16.xpose.msra.mxu0 0
  %195 = vmatprep.subr.bf16.mxu0 0
  %196 = vmatpush1.bf16.xpose.msra.mxu0 0
  %197 = vmatprep.subr.bf16.mxu0 0
  %198 = vmatpush1.bf16.xpose.msra.mxu0 0
  %199 = vmatprep.subr.bf16.mxu0 0
  %200 = vmatpush1.bf16.xpose.msra.mxu0 0
  %201 = vmatprep.subr.bf16.mxu0 0
  %202 = vmatpush1.bf16.xpose.msra.mxu0 0
  %203 = vmatprep.subr.bf16.mxu0 0
  %204 = vmatpush1.bf16.xpose.msra.mxu0 0
  %205 = vmatprep.subr.bf16.mxu0 0
  %206 = vmatpush1.bf16.xpose.msra.mxu0 0
  %207 = vmatprep.subr.bf16.mxu0 0
  %208 = vmatpush1.bf16.xpose.msra.mxu0 0
  %209 = vmatprep.subr.bf16.mxu0 0
  %210 = vmatpush1.bf16.xpose.msra.mxu0 0
  %211 = vmatprep.mubr.bf16.mxu0 0
  %212 = vmatmul.mubr.bf16.gmra.mrb[0].mxu0 %v174
  %v213 = vpop.f32.mrb[0].mxu0
  %v214 = vadd.f32 0.0, %v213
  %v215 = vpop.f32.mrb[0].mxu0
  %v216 = vpop.f32.mrb[0].mxu0
  %v217 = vpop.f32.mrb[0].mxu0
  %218 = vdwg.mxu0
  %220 = vrot.lane.b32.xlu0 %v162, 96
  %v221 = vpop.permute.xlu0 %220
  %v223 = vsel %vm172, %v162, 0
  %v226 = vsel %vm172, %v221, 0
  %228 = vmatprep.subr.bf16.mxu0 0
  %229 = vmatpush1.bf16.xpose.msra.mxu0 %v226
  %230 = vmatprep.subr.bf16.mxu0 0
  %231 = vmatpush1.bf16.xpose.msra.mxu0 0
  %232 = vmatprep.subr.bf16.mxu0 0
  %233 = vmatpush1.bf16.xpose.msra.mxu0 0
  %234 = vmatprep.subr.bf16.mxu0 0
  %235 = vmatpush1.bf16.xpose.msra.mxu0 0
  %236 = vmatprep.subr.bf16.mxu0 0
  %237 = vmatpush1.bf16.xpose.msra.mxu0 0
  %238 = vmatprep.subr.bf16.mxu0 0
  %239 = vmatpush1.bf16.xpose.msra.mxu0 0
  %240 = vmatprep.subr.bf16.mxu0 0
  %241 = vmatpush1.bf16.xpose.msra.mxu0 0
  %242 = vmatprep.subr.bf16.mxu0 0
  %243 = vmatpush1.bf16.xpose.msra.mxu0 0
  %244 = vmatprep.subr.bf16.mxu0 0
  %245 = vmatpush1.bf16.xpose.msra.mxu0 0
  %246 = vmatprep.subr.bf16.mxu0 0
  %247 = vmatpush1.bf16.xpose.msra.mxu0 0
  %248 = vmatprep.subr.bf16.mxu0 0
  %249 = vmatpush1.bf16.xpose.msra.mxu0 0
  %250 = vmatprep.subr.bf16.mxu0 0
  %251 = vmatpush1.bf16.xpose.msra.mxu0 0
  %252 = vmatprep.subr.bf16.mxu0 0
  %253 = vmatpush1.bf16.xpose.msra.mxu0 0
  %254 = vmatprep.subr.bf16.mxu0 0
  %255 = vmatpush1.bf16.xpose.msra.mxu0 0
  %256 = vmatprep.subr.bf16.mxu0 0
  %257 = vmatpush1.bf16.xpose.msra.mxu0 0
  %258 = vmatprep.subr.bf16.mxu0 0
  %259 = vmatpush1.bf16.xpose.msra.mxu0 0
  %260 = vmatprep.mubr.bf16.mxu0 0
  %261 = vmatmul.mubr.bf16.gmra.mrb[0].mxu0 %v223
  %v262 = vpop.f32.mrb[0].mxu0
  %v263 = vadd.f32 0.0, %v262
  %v264 = vpop.f32.mrb[0].mxu0
  %v265 = vpop.f32.mrb[0].mxu0
  %v266 = vpop.f32.mrb[0].mxu0
  %267 = vdwg.mxu0
  %269 = vrot.lane.b32.xlu0 %v163, 96
  %v270 = vpop.permute.xlu0 %269
  %v272 = vsel %vm172, %v163, 0
  %v275 = vsel %vm172, %v270, 0
  %277 = vmatprep.subr.bf16.mxu0 0
  %278 = vmatpush1.bf16.xpose.msra.mxu0 %v275
  %279 = vmatprep.subr.bf16.mxu0 0
  %280 = vmatpush1.bf16.xpose.msra.mxu0 0
  %281 = vmatprep.subr.bf16.mxu0 0
  %282 = vmatpush1.bf16.xpose.msra.mxu0 0
  %283 = vmatprep.subr.bf16.mxu0 0
  %284 = vmatpush1.bf16.xpose.msra.mxu0 0
  %285 = vmatprep.subr.bf16.mxu0 0
  %286 = vmatpush1.bf16.xpose.msra.mxu0 0
  %287 = vmatprep.subr.bf16.mxu0 0
  %288 = vmatpush1.bf16.xpose.msra.mxu0 0
  %289 = vmatprep.subr.bf16.mxu0 0
  %290 = vmatpush1.bf16.xpose.msra.mxu0 0
  %291 = vmatprep.subr.bf16.mxu0 0
  %292 = vmatpush1.bf16.xpose.msra.mxu0 0
  %293 = vmatprep.subr.bf16.mxu0 0
  %294 = vmatpush1.bf16.xpose.msra.mxu0 0
  %295 = vmatprep.subr.bf16.mxu0 0
  %296 = vmatpush1.bf16.xpose.msra.mxu0 0
  %297 = vmatprep.subr.bf16.mxu0 0
  %298 = vmatpush1.bf16.xpose.msra.mxu0 0
  %299 = vmatprep.subr.bf16.mxu0 0
  %300 = vmatpush1.bf16.xpose.msra.mxu0 0
  %301 = vmatprep.subr.bf16.mxu0 0
  %302 = vmatpush1.bf16.xpose.msra.mxu0 0
  %303 = vmatprep.subr.bf16.mxu0 0
  %304 = vmatpush1.bf16.xpose.msra.mxu0 0
  %305 = vmatprep.subr.bf16.mxu0 0
  %306 = vmatpush1.bf16.xpose.msra.mxu0 0
  %307 = vmatprep.subr.bf16.mxu0 0
  %308 = vmatpush1.bf16.xpose.msra.mxu0 0
  %309 = vmatprep.mubr.bf16.mxu0 0
  %310 = vmatmul.mubr.bf16.gmra.mrb[0].mxu0 %v272
  %v311 = vpop.f32.mrb[0].mxu0
  %v312 = vadd.f32 0.0, %v311
  %v313 = vpop.f32.mrb[0].mxu0
  %v314 = vpop.f32.mrb[0].mxu0
  %v315 = vpop.f32.mrb[0].mxu0
  %316 = vdwg.mxu0
  %318 = vrot.lane.b32.xlu0 %v164, 96
  %v319 = vpop.permute.xlu0 %318
  %v321 = vsel %vm172, %v164, 0
  %v324 = vsel %vm172, %v319, 0
  %326 = vmatprep.subr.bf16.mxu0 0
  %327 = vmatpush1.bf16.xpose.msra.mxu0 %v324
  %328 = vmatprep.subr.bf16.mxu0 0
  %329 = vmatpush1.bf16.xpose.msra.mxu0 0
  %330 = vmatprep.subr.bf16.mxu0 0
  %331 = vmatpush1.bf16.xpose.msra.mxu0 0
  %332 = vmatprep.subr.bf16.mxu0 0
  %333 = vmatpush1.bf16.xpose.msra.mxu0 0
  %334 = vmatprep.subr.bf16.mxu0 0
  %335 = vmatpush1.bf16.xpose.msra.mxu0 0
  %336 = vmatprep.subr.bf16.mxu0 0
  %337 = vmatpush1.bf16.xpose.msra.mxu0 0
  %338 = vmatprep.subr.bf16.mxu0 0
  %339 = vmatpush1.bf16.xpose.msra.mxu0 0
  %340 = vmatprep.subr.bf16.mxu0 0
  %341 = vmatpush1.bf16.xpose.msra.mxu0 0
  %342 = vmatprep.subr.bf16.mxu0 0
  %343 = vmatpush1.bf16.xpose.msra.mxu0 0
  %344 = vmatprep.subr.bf16.mxu0 0
  %345 = vmatpush1.bf16.xpose.msra.mxu0 0
  %346 = vmatprep.subr.bf16.mxu0 0
  %347 = vmatpush1.bf16.xpose.msra.mxu0 0
  %348 = vmatprep.subr.bf16.mxu0 0
  %349 = vmatpush1.bf16.xpose.msra.mxu0 0
  %350 = vmatprep.subr.bf16.mxu0 0
  %351 = vmatpush1.bf16.xpose.msra.mxu0 0
  %352 = vmatprep.subr.bf16.mxu0 0
  %353 = vmatpush1.bf16.xpose.msra.mxu0 0
  %354 = vmatprep.subr.bf16.mxu0 0
  %355 = vmatpush1.bf16.xpose.msra.mxu0 0
  %356 = vmatprep.subr.bf16.mxu0 0
  %357 = vmatpush1.bf16.xpose.msra.mxu0 0
  %358 = vmatprep.mubr.bf16.mxu0 0
  %359 = vmatmul.mubr.bf16.gmra.mrb[0].mxu0 %v321
  %v360 = vpop.f32.mrb[0].mxu0
  %v361 = vadd.f32 0.0, %v360
  %v362 = vpop.f32.mrb[0].mxu0
  %v363 = vpop.f32.mrb[0].mxu0
  %v364 = vpop.f32.mrb[0].mxu0
  %365 = vdwg.mxu0
  %367 = vrot.lane.b32.xlu0 %v165, 96
  %v368 = vpop.permute.xlu0 %367
  %v370 = vsel %vm172, %v165, 0
  %v373 = vsel %vm172, %v368, 0
  %375 = vmatprep.subr.bf16.mxu0 0
  %376 = vmatpush1.bf16.xpose.msra.mxu0 %v373
  %377 = vmatprep.subr.bf16.mxu0 0
  %378 = vmatpush1.bf16.xpose.msra.mxu0 0
  %379 = vmatprep.subr.bf16.mxu0 0
  %380 = vmatpush1.bf16.xpose.msra.mxu0 0
  %381 = vmatprep.subr.bf16.mxu0 0
  %382 = vmatpush1.bf16.xpose.msra.mxu0 0
  %383 = vmatprep.subr.bf16.mxu0 0
  %384 = vmatpush1.bf16.xpose.msra.mxu0 0
  %385 = vmatprep.subr.bf16.mxu0 0
  %386 = vmatpush1.bf16.xpose.msra.mxu0 0
  %387 = vmatprep.subr.bf16.mxu0 0
  %388 = vmatpush1.bf16.xpose.msra.mxu0 0
  %389 = vmatprep.subr.bf16.mxu0 0
  %390 = vmatpush1.bf16.xpose.msra.mxu0 0
  %391 = vmatprep.subr.bf16.mxu0 0
  %392 = vmatpush1.bf16.xpose.msra.mxu0 0
  %393 = vmatprep.subr.bf16.mxu0 0
  %394 = vmatpush1.bf16.xpose.msra.mxu0 0
  %395 = vmatprep.subr.bf16.mxu0 0
  %396 = vmatpush1.bf16.xpose.msra.mxu0 0
  %397 = vmatprep.subr.bf16.mxu0 0
  %398 = vmatpush1.bf16.xpose.msra.mxu0 0
  %399 = vmatprep.subr.bf16.mxu0 0
  %400 = vmatpush1.bf16.xpose.msra.mxu0 0
  %401 = vmatprep.subr.bf16.mxu0 0
  %402 = vmatpush1.bf16.xpose.msra.mxu0 0
  %403 = vmatprep.subr.bf16.mxu0 0
  %404 = vmatpush1.bf16.xpose.msra.mxu0 0
  %405 = vmatprep.subr.bf16.mxu0 0
  %406 = vmatpush1.bf16.xpose.msra.mxu0 0
  %407 = vmatprep.mubr.bf16.mxu0 0
  %408 = vmatmul.mubr.bf16.gmra.mrb[0].mxu0 %v370
  %v409 = vpop.f32.mrb[0].mxu0
  %v410 = vadd.f32 0.0, %v409
  %v411 = vpop.f32.mrb[0].mxu0
  %v412 = vpop.f32.mrb[0].mxu0
  %v413 = vpop.f32.mrb[0].mxu0
  %414 = vdwg.mxu0
  %416 = vrot.lane.b32.xlu0 %v166, 96
  %v417 = vpop.permute.xlu0 %416
  %v419 = vsel %vm172, %v166, 0
  %v422 = vsel %vm172, %v417, 0
  %424 = vmatprep.subr.bf16.mxu0 0
  %425 = vmatpush1.bf16.xpose.msra.mxu0 %v422
  %426 = vmatprep.subr.bf16.mxu0 0
  %427 = vmatpush1.bf16.xpose.msra.mxu0 0
  %428 = vmatprep.subr.bf16.mxu0 0
  %429 = vmatpush1.bf16.xpose.msra.mxu0 0
  %430 = vmatprep.subr.bf16.mxu0 0
  %431 = vmatpush1.bf16.xpose.msra.mxu0 0
  %432 = vmatprep.subr.bf16.mxu0 0
  %433 = vmatpush1.bf16.xpose.msra.mxu0 0
  %434 = vmatprep.subr.bf16.mxu0 0
  %435 = vmatpush1.bf16.xpose.msra.mxu0 0
  %436 = vmatprep.subr.bf16.mxu0 0
  %437 = vmatpush1.bf16.xpose.msra.mxu0 0
  %438 = vmatprep.subr.bf16.mxu0 0
  %439 = vmatpush1.bf16.xpose.msra.mxu0 0
  %440 = vmatprep.subr.bf16.mxu0 0
  %441 = vmatpush1.bf16.xpose.msra.mxu0 0
  %442 = vmatprep.subr.bf16.mxu0 0
  %443 = vmatpush1.bf16.xpose.msra.mxu0 0
  %444 = vmatprep.subr.bf16.mxu0 0
  %445 = vmatpush1.bf16.xpose.msra.mxu0 0
  %446 = vmatprep.subr.bf16.mxu0 0
  %447 = vmatpush1.bf16.xpose.msra.mxu0 0
  %448 = vmatprep.subr.bf16.mxu0 0
  %449 = vmatpush1.bf16.xpose.msra.mxu0 0
  %450 = vmatprep.subr.bf16.mxu0 0
  %451 = vmatpush1.bf16.xpose.msra.mxu0 0
  %452 = vmatprep.subr.bf16.mxu0 0
  %453 = vmatpush1.bf16.xpose.msra.mxu0 0
  %454 = vmatprep.subr.bf16.mxu0 0
  %455 = vmatpush1.bf16.xpose.msra.mxu0 0
  %456 = vmatprep.mubr.bf16.mxu0 0
  %457 = vmatmul.mubr.bf16.gmra.mrb[0].mxu0 %v419
  %v458 = vpop.f32.mrb[0].mxu0
  %v459 = vadd.f32 0.0, %v458
  %v460 = vpop.f32.mrb[0].mxu0
  %v461 = vpop.f32.mrb[0].mxu0
  %v462 = vpop.f32.mrb[0].mxu0
  %463 = vdwg.mxu0
  %465 = vrot.lane.b32.xlu0 %v167, 96
  %v466 = vpop.permute.xlu0 %465
  %v468 = vsel %vm172, %v167, 0
  %v471 = vsel %vm172, %v466, 0
  %473 = vmatprep.subr.bf16.mxu0 0
  %474 = vmatpush1.bf16.xpose.msra.mxu0 %v471
  %475 = vmatprep.subr.bf16.mxu0 0
  %476 = vmatpush1.bf16.xpose.msra.mxu0 0
  %477 = vmatprep.subr.bf16.mxu0 0
  %478 = vmatpush1.bf16.xpose.msra.mxu0 0
  %479 = vmatprep.subr.bf16.mxu0 0
  %480 = vmatpush1.bf16.xpose.msra.mxu0 0
  %481 = vmatprep.subr.bf16.mxu0 0
  %482 = vmatpush1.bf16.xpose.msra.mxu0 0
  %483 = vmatprep.subr.bf16.mxu0 0
  %484 = vmatpush1.bf16.xpose.msra.mxu0 0
  %485 = vmatprep.subr.bf16.mxu0 0
  %486 = vmatpush1.bf16.xpose.msra.mxu0 0
  %487 = vmatprep.subr.bf16.mxu0 0
  %488 = vmatpush1.bf16.xpose.msra.mxu0 0
  %489 = vmatprep.subr.bf16.mxu0 0
  %490 = vmatpush1.bf16.xpose.msra.mxu0 0
  %491 = vmatprep.subr.bf16.mxu0 0
  %492 = vmatpush1.bf16.xpose.msra.mxu0 0
  %493 = vmatprep.subr.bf16.mxu0 0
  %494 = vmatpush1.bf16.xpose.msra.mxu0 0
  %495 = vmatprep.subr.bf16.mxu0 0
  %496 = vmatpush1.bf16.xpose.msra.mxu0 0
  %497 = vmatprep.subr.bf16.mxu0 0
  %498 = vmatpush1.bf16.xpose.msra.mxu0 0
  %499 = vmatprep.subr.bf16.mxu0 0
  %500 = vmatpush1.bf16.xpose.msra.mxu0 0
  %501 = vmatprep.subr.bf16.mxu0 0
  %502 = vmatpush1.bf16.xpose.msra.mxu0 0
  %503 = vmatprep.subr.bf16.mxu0 0
  %504 = vmatpush1.bf16.xpose.msra.mxu0 0
  %505 = vmatprep.mubr.bf16.mxu0 0
  %506 = vmatmul.mubr.bf16.gmra.mrb[0].mxu0 %v468
  %v507 = vpop.f32.mrb[0].mxu0
  %v508 = vadd.f32 0.0, %v507
  %v509 = vpop.f32.mrb[0].mxu0
  %v510 = vpop.f32.mrb[0].mxu0
  %v511 = vpop.f32.mrb[0].mxu0
  %512 = vdwg.mxu0
  %514 = vrot.lane.b32.xlu0 %v168, 96
  %v515 = vpop.permute.xlu0 %514
  %v517 = vsel %vm172, %v168, 0
  %v520 = vsel %vm172, %v515, 0
  %522 = vmatprep.subr.bf16.mxu0 0
  %523 = vmatpush1.bf16.xpose.msra.mxu0 %v520
  %524 = vmatprep.subr.bf16.mxu0 0
  %525 = vmatpush1.bf16.xpose.msra.mxu0 0
  %526 = vmatprep.subr.bf16.mxu0 0
  %527 = vmatpush1.bf16.xpose.msra.mxu0 0
  %528 = vmatprep.subr.bf16.mxu0 0
  %529 = vmatpush1.bf16.xpose.msra.mxu0 0
  %530 = vmatprep.subr.bf16.mxu0 0
  %531 = vmatpush1.bf16.xpose.msra.mxu0 0
  %532 = vmatprep.subr.bf16.mxu0 0
  %533 = vmatpush1.bf16.xpose.msra.mxu0 0
  %534 = vmatprep.subr.bf16.mxu0 0
  %535 = vmatpush1.bf16.xpose.msra.mxu0 0
  %536 = vmatprep.subr.bf16.mxu0 0
  %537 = vmatpush1.bf16.xpose.msra.mxu0 0
  %538 = vmatprep.subr.bf16.mxu0 0
  %539 = vmatpush1.bf16.xpose.msra.mxu0 0
  %540 = vmatprep.subr.bf16.mxu0 0
  %541 = vmatpush1.bf16.xpose.msra.mxu0 0
  %542 = vmatprep.subr.bf16.mxu0 0
  %543 = vmatpush1.bf16.xpose.msra.mxu0 0
  %544 = vmatprep.subr.bf16.mxu0 0
  %545 = vmatpush1.bf16.xpose.msra.mxu0 0
  %546 = vmatprep.subr.bf16.mxu0 0
  %547 = vmatpush1.bf16.xpose.msra.mxu0 0
  %548 = vmatprep.subr.bf16.mxu0 0
  %549 = vmatpush1.bf16.xpose.msra.mxu0 0
  %550 = vmatprep.subr.bf16.mxu0 0
  %551 = vmatpush1.bf16.xpose.msra.mxu0 0
  %552 = vmatprep.subr.bf16.mxu0 0
  %553 = vmatpush1.bf16.xpose.msra.mxu0 0
  %554 = vmatprep.mubr.bf16.mxu0 0
  %555 = vmatmul.mubr.bf16.gmra.mrb[0].mxu0 %v517
  %v556 = vpop.f32.mrb[0].mxu0
  %v557 = vadd.f32 0.0, %v556
  %v558 = vpop.f32.mrb[0].mxu0
  %v559 = vpop.f32.mrb[0].mxu0
  %v560 = vpop.f32.mrb[0].mxu0
  %561 = vdwg.mxu0
  %v562 = vsel %vm172, %v214, -inf
  %563 = vmax.xlane.f32.xlu0 %v562
  %v564 = vpop.xlane.xlu0 %563
  %v565 = vsel %vm172, %v263, -inf
  %566 = vmax.xlane.f32.xlu0 %v565
  %v567 = vpop.xlane.xlu0 %566
  %v568 = vsel %vm172, %v312, -inf
  %569 = vmax.xlane.f32.xlu0 %v568
  %v570 = vpop.xlane.xlu0 %569
  %v571 = vsel %vm172, %v361, -inf
  %572 = vmax.xlane.f32.xlu0 %v571
  %v573 = vpop.xlane.xlu0 %572
  %v574 = vsel %vm172, %v410, -inf
  %575 = vmax.xlane.f32.xlu0 %v574
  %v576 = vpop.xlane.xlu0 %575
  %v577 = vsel %vm172, %v459, -inf
  %578 = vmax.xlane.f32.xlu0 %v577
  %v579 = vpop.xlane.xlu0 %578
  %v580 = vsel %vm172, %v508, -inf
  %581 = vmax.xlane.f32.xlu0 %v580
  %v582 = vpop.xlane.xlu0 %581
  %v583 = vsel %vm172, %v557, -inf
  %584 = vmax.xlane.f32.xlu0 %v583
  %v585 = vpop.xlane.xlu0 %584
  %v586 = vsub.f32 %v214, %v564
  %v587 = vsub.f32 %v263, %v567
  %v588 = vsub.f32 %v312, %v570
  %v589 = vsub.f32 %v361, %v573
  %v590 = vsub.f32 %v410, %v576
  %v591 = vsub.f32 %v459, %v579
  %v592 = vsub.f32 %v508, %v582
  %v593 = vsub.f32 %v557, %v585
  %v594 = vmul.f32 %v586, 1.442695
  %v595 = vpow.pop %v594
  %v596 = vmul.f32 %v587, 1.442695
  %v597 = vpow.pop %v596
  %v598 = vmul.f32 %v588, 1.442695
  %v599 = vpow.pop %v598
  %v600 = vmul.f32 %v589, 1.442695
  %v601 = vpow.pop %v600
  %v602 = vmul.f32 %v590, 1.442695
  %v603 = vpow.pop %v602
  %v604 = vmul.f32 %v591, 1.442695
  %v605 = vpow.pop %v604
  %v606 = vmul.f32 %v592, 1.442695
  %v607 = vpow.pop %v606
  %v608 = vmul.f32 %v593, 1.442695
  %v609 = vpow.pop %v608
  %v610 = vsel %vm172, %v595, 0.0
  %611 = vadd.xlane.f32.xlu0 %v610
  %v612 = vpop.xlane.xlu0 %611
  %v613 = vsel %vm172, %v597, 0.0
  %614 = vadd.xlane.f32.xlu0 %v613
  %v615 = vpop.xlane.xlu0 %614
  %v616 = vsel %vm172, %v599, 0.0
  %617 = vadd.xlane.f32.xlu0 %v616
  %v618 = vpop.xlane.xlu0 %617
  %v619 = vsel %vm172, %v601, 0.0
  %620 = vadd.xlane.f32.xlu0 %v619
  %v621 = vpop.xlane.xlu0 %620
  %v622 = vsel %vm172, %v603, 0.0
  %623 = vadd.xlane.f32.xlu0 %v622
  %v624 = vpop.xlane.xlu0 %623
  %v625 = vsel %vm172, %v605, 0.0
  %626 = vadd.xlane.f32.xlu0 %v625
  %v627 = vpop.xlane.xlu0 %626
  %v628 = vsel %vm172, %v607, 0.0
  %629 = vadd.xlane.f32.xlu0 %v628
  %v630 = vpop.xlane.xlu0 %629
  %v631 = vsel %vm172, %v609, 0.0
  %632 = vadd.xlane.f32.xlu0 %v631
  %v633 = vpop.xlane.xlu0 %632
  %v634 = vrcp.pop %v612
  %v635 = vrcp.pop %v615
  %v636 = vrcp.pop %v618
  %v637 = vrcp.pop %v621
  %v638 = vrcp.pop %v624
  %v639 = vrcp.pop %v627
  %v640 = vrcp.pop %v630
  %v641 = vrcp.pop %v633
  %v642 = vmul.f32 %v595, %v634
  %v643 = vmul.f32 %v597, %v635
  %v644 = vmul.f32 %v599, %v636
  %v645 = vmul.f32 %v601, %v637
  %v646 = vmul.f32 %v603, %v638
  %v647 = vmul.f32 %v605, %v639
  %v648 = vmul.f32 %v607, %v640
  %v649 = vmul.f32 %v609, %v641
  %v650 = vpack.c.bf16 %v642, %v642
  %v651 = vpack.c.bf16 %v643, %v643
  %v652 = vpack.c.bf16 %v644, %v644
  %v653 = vpack.c.bf16 %v645, %v645
  %v654 = vpack.c.bf16 %v646, %v646
  %v655 = vpack.c.bf16 %v647, %v647
  %v656 = vpack.c.bf16 %v648, %v648
  %v657 = vpack.c.bf16 %v649, %v649
  %658 = vrot.lane.b32.xlu0 %v161, 64
  %v659 = vpop.permute.xlu0 %658
  %v661 = vsel %vm172, %v650, 0
  %vm663 = vcmask 1043456
  %v665 = vsel %vm663, %v659, 0
  %667 = vmatprep.subr.bf16.mxu0 0
  %668 = vmatpush1.bf16.msra.mxu0 %v665
  %669 = vmatprep.subr.bf16.mxu0 0
  %670 = vmatpush1.bf16.msra.mxu0 0
  %671 = vmatprep.subr.bf16.mxu0 0
  %672 = vmatpush1.bf16.msra.mxu0 0
  %673 = vmatprep.subr.bf16.mxu0 0
  %674 = vmatpush1.bf16.msra.mxu0 0
  %675 = vmatprep.subr.bf16.mxu0 0
  %676 = vmatpush1.bf16.msra.mxu0 0
  %677 = vmatprep.subr.bf16.mxu0 0
  %678 = vmatpush1.bf16.msra.mxu0 0
  %679 = vmatprep.subr.bf16.mxu0 0
  %680 = vmatpush1.bf16.msra.mxu0 0
  %681 = vmatprep.subr.bf16.mxu0 0
  %682 = vmatpush1.bf16.msra.mxu0 0
  %683 = vmatprep.subr.bf16.mxu0 0
  %684 = vmatpush1.bf16.msra.mxu0 0
  %685 = vmatprep.subr.bf16.mxu0 0
  %686 = vmatpush1.bf16.msra.mxu0 0
  %687 = vmatprep.subr.bf16.mxu0 0
  %688 = vmatpush1.bf16.msra.mxu0 0
  %689 = vmatprep.subr.bf16.mxu0 0
  %690 = vmatpush1.bf16.msra.mxu0 0
  %691 = vmatprep.subr.bf16.mxu0 0
  %692 = vmatpush1.bf16.msra.mxu0 0
  %693 = vmatprep.subr.bf16.mxu0 0
  %694 = vmatpush1.bf16.msra.mxu0 0
  %695 = vmatprep.subr.bf16.mxu0 0
  %696 = vmatpush1.bf16.msra.mxu0 0
  %697 = vmatprep.subr.bf16.mxu0 0
  %698 = vmatpush1.bf16.msra.mxu0 0
  %699 = vmatprep.mubr.bf16.mxu0 0
  %700 = vmatmul.mubr.bf16.gmra.mrb[0].mxu0 %v661
  %v701 = vpop.f32.mrb[0].mxu0
  %v702 = vadd.f32 0.0, %v701
  %v703 = vpop.f32.mrb[0].mxu0
  %v704 = vpop.f32.mrb[0].mxu0
  %v705 = vpop.f32.mrb[0].mxu0
  %706 = vdwg.mxu0
  %707 = vrot.lane.b32.xlu0 %v162, 64
  %v708 = vpop.permute.xlu0 %707
  %v710 = vsel %vm172, %v651, 0
  %v713 = vsel %vm663, %v708, 0
  %715 = vmatprep.subr.bf16.mxu0 0
  %716 = vmatpush1.bf16.msra.mxu0 %v713
  %717 = vmatprep.subr.bf16.mxu0 0
  %718 = vmatpush1.bf16.msra.mxu0 0
  %719 = vmatprep.subr.bf16.mxu0 0
  %720 = vmatpush1.bf16.msra.mxu0 0
  %721 = vmatprep.subr.bf16.mxu0 0
  %722 = vmatpush1.bf16.msra.mxu0 0
  %723 = vmatprep.subr.bf16.mxu0 0
  %724 = vmatpush1.bf16.msra.mxu0 0
  %725 = vmatprep.subr.bf16.mxu0 0
  %726 = vmatpush1.bf16.msra.mxu0 0
  %727 = vmatprep.subr.bf16.mxu0 0
  %728 = vmatpush1.bf16.msra.mxu0 0
  %729 = vmatprep.subr.bf16.mxu0 0
  %730 = vmatpush1.bf16.msra.mxu0 0
  %731 = vmatprep.subr.bf16.mxu0 0
  %732 = vmatpush1.bf16.msra.mxu0 0
  %733 = vmatprep.subr.bf16.mxu0 0
  %734 = vmatpush1.bf16.msra.mxu0 0
  %735 = vmatprep.subr.bf16.mxu0 0
  %736 = vmatpush1.bf16.msra.mxu0 0
  %737 = vmatprep.subr.bf16.mxu0 0
  %738 = vmatpush1.bf16.msra.mxu0 0
  %739 = vmatprep.subr.bf16.mxu0 0
  %740 = vmatpush1.bf16.msra.mxu0 0
  %741 = vmatprep.subr.bf16.mxu0 0
  %742 = vmatpush1.bf16.msra.mxu0 0
  %743 = vmatprep.subr.bf16.mxu0 0
  %744 = vmatpush1.bf16.msra.mxu0 0
  %745 = vmatprep.subr.bf16.mxu0 0
  %746 = vmatpush1.bf16.msra.mxu0 0
  %747 = vmatprep.mubr.bf16.mxu0 0
  %748 = vmatmul.mubr.bf16.gmra.mrb[0].mxu0 %v710
  %v749 = vpop.f32.mrb[0].mxu0
  %v750 = vadd.f32 0.0, %v749
  %v751 = vpop.f32.mrb[0].mxu0
  %v752 = vpop.f32.mrb[0].mxu0
  %v753 = vpop.f32.mrb[0].mxu0
  %754 = vdwg.mxu0
  %755 = vrot.lane.b32.xlu0 %v163, 64
  %v756 = vpop.permute.xlu0 %755
  %v758 = vsel %vm172, %v652, 0
  %v761 = vsel %vm663, %v756, 0
  %763 = vmatprep.subr.bf16.mxu0 0
  %764 = vmatpush1.bf16.msra.mxu0 %v761
  %765 = vmatprep.subr.bf16.mxu0 0
  %766 = vmatpush1.bf16.msra.mxu0 0
  %767 = vmatprep.subr.bf16.mxu0 0
  %768 = vmatpush1.bf16.msra.mxu0 0
  %769 = vmatprep.subr.bf16.mxu0 0
  %770 = vmatpush1.bf16.msra.mxu0 0
  %771 = vmatprep.subr.bf16.mxu0 0
  %772 = vmatpush1.bf16.msra.mxu0 0
  %773 = vmatprep.subr.bf16.mxu0 0
  %774 = vmatpush1.bf16.msra.mxu0 0
  %775 = vmatprep.subr.bf16.mxu0 0
  %776 = vmatpush1.bf16.msra.mxu0 0
  %777 = vmatprep.subr.bf16.mxu0 0
  %778 = vmatpush1.bf16.msra.mxu0 0
  %779 = vmatprep.subr.bf16.mxu0 0
  %780 = vmatpush1.bf16.msra.mxu0 0
  %781 = vmatprep.subr.bf16.mxu0 0
  %782 = vmatpush1.bf16.msra.mxu0 0
  %783 = vmatprep.subr.bf16.mxu0 0
  %784 = vmatpush1.bf16.msra.mxu0 0
  %785 = vmatprep.subr.bf16.mxu0 0
  %786 = vmatpush1.bf16.msra.mxu0 0
  %787 = vmatprep.subr.bf16.mxu0 0
  %788 = vmatpush1.bf16.msra.mxu0 0
  %789 = vmatprep.subr.bf16.mxu0 0
  %790 = vmatpush1.bf16.msra.mxu0 0
  %791 = vmatprep.subr.bf16.mxu0 0
  %792 = vmatpush1.bf16.msra.mxu0 0
  %793 = vmatprep.subr.bf16.mxu0 0
  %794 = vmatpush1.bf16.msra.mxu0 0
  %795 = vmatprep.mubr.bf16.mxu0 0
  %796 = vmatmul.mubr.bf16.gmra.mrb[0].mxu0 %v758
  %v797 = vpop.f32.mrb[0].mxu0
  %v798 = vadd.f32 0.0, %v797
  %v799 = vpop.f32.mrb[0].mxu0
  %v800 = vpop.f32.mrb[0].mxu0
  %v801 = vpop.f32.mrb[0].mxu0
  %802 = vdwg.mxu0
  %803 = vrot.lane.b32.xlu0 %v164, 64
  %v804 = vpop.permute.xlu0 %803
  %v806 = vsel %vm172, %v653, 0
  %v809 = vsel %vm663, %v804, 0
  %811 = vmatprep.subr.bf16.mxu0 0
  %812 = vmatpush1.bf16.msra.mxu0 %v809
  %813 = vmatprep.subr.bf16.mxu0 0
  %814 = vmatpush1.bf16.msra.mxu0 0
  %815 = vmatprep.subr.bf16.mxu0 0
  %816 = vmatpush1.bf16.msra.mxu0 0
  %817 = vmatprep.subr.bf16.mxu0 0
  %818 = vmatpush1.bf16.msra.mxu0 0
  %819 = vmatprep.subr.bf16.mxu0 0
  %820 = vmatpush1.bf16.msra.mxu0 0
  %821 = vmatprep.subr.bf16.mxu0 0
  %822 = vmatpush1.bf16.msra.mxu0 0
  %823 = vmatprep.subr.bf16.mxu0 0
  %824 = vmatpush1.bf16.msra.mxu0 0
  %825 = vmatprep.subr.bf16.mxu0 0
  %826 = vmatpush1.bf16.msra.mxu0 0
  %827 = vmatprep.subr.bf16.mxu0 0
  %828 = vmatpush1.bf16.msra.mxu0 0
  %829 = vmatprep.subr.bf16.mxu0 0
  %830 = vmatpush1.bf16.msra.mxu0 0
  %831 = vmatprep.subr.bf16.mxu0 0
  %832 = vmatpush1.bf16.msra.mxu0 0
  %833 = vmatprep.subr.bf16.mxu0 0
  %834 = vmatpush1.bf16.msra.mxu0 0
  %835 = vmatprep.subr.bf16.mxu0 0
  %836 = vmatpush1.bf16.msra.mxu0 0
  %837 = vmatprep.subr.bf16.mxu0 0
  %838 = vmatpush1.bf16.msra.mxu0 0
  %839 = vmatprep.subr.bf16.mxu0 0
  %840 = vmatpush1.bf16.msra.mxu0 0
  %841 = vmatprep.subr.bf16.mxu0 0
  %842 = vmatpush1.bf16.msra.mxu0 0
  %843 = vmatprep.mubr.bf16.mxu0 0
  %844 = vmatmul.mubr.bf16.gmra.mrb[0].mxu0 %v806
  %v845 = vpop.f32.mrb[0].mxu0
  %v846 = vadd.f32 0.0, %v845
  %v847 = vpop.f32.mrb[0].mxu0
  %v848 = vpop.f32.mrb[0].mxu0
  %v849 = vpop.f32.mrb[0].mxu0
  %850 = vdwg.mxu0
  %851 = vrot.lane.b32.xlu0 %v165, 64
  %v852 = vpop.permute.xlu0 %851
  %v854 = vsel %vm172, %v654, 0
  %v857 = vsel %vm663, %v852, 0
  %859 = vmatprep.subr.bf16.mxu0 0
  %860 = vmatpush1.bf16.msra.mxu0 %v857
  %861 = vmatprep.subr.bf16.mxu0 0
  %862 = vmatpush1.bf16.msra.mxu0 0
  %863 = vmatprep.subr.bf16.mxu0 0
  %864 = vmatpush1.bf16.msra.mxu0 0
  %865 = vmatprep.subr.bf16.mxu0 0
  %866 = vmatpush1.bf16.msra.mxu0 0
  %867 = vmatprep.subr.bf16.mxu0 0
  %868 = vmatpush1.bf16.msra.mxu0 0
  %869 = vmatprep.subr.bf16.mxu0 0
  %870 = vmatpush1.bf16.msra.mxu0 0
  %871 = vmatprep.subr.bf16.mxu0 0
  %872 = vmatpush1.bf16.msra.mxu0 0
  %873 = vmatprep.subr.bf16.mxu0 0
  %874 = vmatpush1.bf16.msra.mxu0 0
  %875 = vmatprep.subr.bf16.mxu0 0
  %876 = vmatpush1.bf16.msra.mxu0 0
  %877 = vmatprep.subr.bf16.mxu0 0
  %878 = vmatpush1.bf16.msra.mxu0 0
  %879 = vmatprep.subr.bf16.mxu0 0
  %880 = vmatpush1.bf16.msra.mxu0 0
  %881 = vmatprep.subr.bf16.mxu0 0
  %882 = vmatpush1.bf16.msra.mxu0 0
  %883 = vmatprep.subr.bf16.mxu0 0
  %884 = vmatpush1.bf16.msra.mxu0 0
  %885 = vmatprep.subr.bf16.mxu0 0
  %886 = vmatpush1.bf16.msra.mxu0 0
  %887 = vmatprep.subr.bf16.mxu0 0
  %888 = vmatpush1.bf16.msra.mxu0 0
  %889 = vmatprep.subr.bf16.mxu0 0
  %890 = vmatpush1.bf16.msra.mxu0 0
  %891 = vmatprep.mubr.bf16.mxu0 0
  %892 = vmatmul.mubr.bf16.gmra.mrb[0].mxu0 %v854
  %v893 = vpop.f32.mrb[0].mxu0
  %v894 = vadd.f32 0.0, %v893
  %v895 = vpop.f32.mrb[0].mxu0
  %v896 = vpop.f32.mrb[0].mxu0
  %v897 = vpop.f32.mrb[0].mxu0
  %898 = vdwg.mxu0
  %899 = vrot.lane.b32.xlu0 %v166, 64
  %v900 = vpop.permute.xlu0 %899
  %v902 = vsel %vm172, %v655, 0
  %v905 = vsel %vm663, %v900, 0
  %907 = vmatprep.subr.bf16.mxu0 0
  %908 = vmatpush1.bf16.msra.mxu0 %v905
  %909 = vmatprep.subr.bf16.mxu0 0
  %910 = vmatpush1.bf16.msra.mxu0 0
  %911 = vmatprep.subr.bf16.mxu0 0
  %912 = vmatpush1.bf16.msra.mxu0 0
  %913 = vmatprep.subr.bf16.mxu0 0
  %914 = vmatpush1.bf16.msra.mxu0 0
  %915 = vmatprep.subr.bf16.mxu0 0
  %916 = vmatpush1.bf16.msra.mxu0 0
  %917 = vmatprep.subr.bf16.mxu0 0
  %918 = vmatpush1.bf16.msra.mxu0 0
  %919 = vmatprep.subr.bf16.mxu0 0
  %920 = vmatpush1.bf16.msra.mxu0 0
  %921 = vmatprep.subr.bf16.mxu0 0
  %922 = vmatpush1.bf16.msra.mxu0 0
  %923 = vmatprep.subr.bf16.mxu0 0
  %924 = vmatpush1.bf16.msra.mxu0 0
  %925 = vmatprep.subr.bf16.mxu0 0
  %926 = vmatpush1.bf16.msra.mxu0 0
  %927 = vmatprep.subr.bf16.mxu0 0
  %928 = vmatpush1.bf16.msra.mxu0 0
  %929 = vmatprep.subr.bf16.mxu0 0
  %930 = vmatpush1.bf16.msra.mxu0 0
  %931 = vmatprep.subr.bf16.mxu0 0
  %932 = vmatpush1.bf16.msra.mxu0 0
  %933 = vmatprep.subr.bf16.mxu0 0
  %934 = vmatpush1.bf16.msra.mxu0 0
  %935 = vmatprep.subr.bf16.mxu0 0
  %936 = vmatpush1.bf16.msra.mxu0 0
  %937 = vmatprep.subr.bf16.mxu0 0
  %938 = vmatpush1.bf16.msra.mxu0 0
  %939 = vmatprep.mubr.bf16.mxu0 0
  %940 = vmatmul.mubr.bf16.gmra.mrb[0].mxu0 %v902
  %v941 = vpop.f32.mrb[0].mxu0
  %v942 = vadd.f32 0.0, %v941
  %v943 = vpop.f32.mrb[0].mxu0
  %v944 = vpop.f32.mrb[0].mxu0
  %v945 = vpop.f32.mrb[0].mxu0
  %946 = vdwg.mxu0
  %947 = vrot.lane.b32.xlu0 %v167, 64
  %v948 = vpop.permute.xlu0 %947
  %v950 = vsel %vm172, %v656, 0
  %v953 = vsel %vm663, %v948, 0
  %955 = vmatprep.subr.bf16.mxu0 0
  %956 = vmatpush1.bf16.msra.mxu0 %v953
  %957 = vmatprep.subr.bf16.mxu0 0
  %958 = vmatpush1.bf16.msra.mxu0 0
  %959 = vmatprep.subr.bf16.mxu0 0
  %960 = vmatpush1.bf16.msra.mxu0 0
  %961 = vmatprep.subr.bf16.mxu0 0
  %962 = vmatpush1.bf16.msra.mxu0 0
  %963 = vmatprep.subr.bf16.mxu0 0
  %964 = vmatpush1.bf16.msra.mxu0 0
  %965 = vmatprep.subr.bf16.mxu0 0
  %966 = vmatpush1.bf16.msra.mxu0 0
  %967 = vmatprep.subr.bf16.mxu0 0
  %968 = vmatpush1.bf16.msra.mxu0 0
  %969 = vmatprep.subr.bf16.mxu0 0
  %970 = vmatpush1.bf16.msra.mxu0 0
  %971 = vmatprep.subr.bf16.mxu0 0
  %972 = vmatpush1.bf16.msra.mxu0 0
  %973 = vmatprep.subr.bf16.mxu0 0
  %974 = vmatpush1.bf16.msra.mxu0 0
  %975 = vmatprep.subr.bf16.mxu0 0
  %976 = vmatpush1.bf16.msra.mxu0 0
  %977 = vmatprep.subr.bf16.mxu0 0
  %978 = vmatpush1.bf16.msra.mxu0 0
  %979 = vmatprep.subr.bf16.mxu0 0
  %980 = vmatpush1.bf16.msra.mxu0 0
  %981 = vmatprep.subr.bf16.mxu0 0
  %982 = vmatpush1.bf16.msra.mxu0 0
  %983 = vmatprep.subr.bf16.mxu0 0
  %984 = vmatpush1.bf16.msra.mxu0 0
  %985 = vmatprep.subr.bf16.mxu0 0
  %986 = vmatpush1.bf16.msra.mxu0 0
  %987 = vmatprep.mubr.bf16.mxu0 0
  %988 = vmatmul.mubr.bf16.gmra.mrb[0].mxu0 %v950
  %v989 = vpop.f32.mrb[0].mxu0
  %v990 = vadd.f32 0.0, %v989
  %v991 = vpop.f32.mrb[0].mxu0
  %v992 = vpop.f32.mrb[0].mxu0
  %v993 = vpop.f32.mrb[0].mxu0
  %994 = vdwg.mxu0
  %995 = vrot.lane.b32.xlu0 %v168, 64
  %v996 = vpop.permute.xlu0 %995
  %v998 = vsel %vm172, %v657, 0
  %v1001 = vsel %vm663, %v996, 0
  %1003 = vmatprep.subr.bf16.mxu0 0
  %1004 = vmatpush1.bf16.msra.mxu0 %v1001
  %1005 = vmatprep.subr.bf16.mxu0 0
  %1006 = vmatpush1.bf16.msra.mxu0 0
  %1007 = vmatprep.subr.bf16.mxu0 0
  %1008 = vmatpush1.bf16.msra.mxu0 0
  %1009 = vmatprep.subr.bf16.mxu0 0
  %1010 = vmatpush1.bf16.msra.mxu0 0
  %1011 = vmatprep.subr.bf16.mxu0 0
  %1012 = vmatpush1.bf16.msra.mxu0 0
  %1013 = vmatprep.subr.bf16.mxu0 0
  %1014 = vmatpush1.bf16.msra.mxu0 0
  %1015 = vmatprep.subr.bf16.mxu0 0
  %1016 = vmatpush1.bf16.msra.mxu0 0
  %1017 = vmatprep.subr.bf16.mxu0 0
  %1018 = vmatpush1.bf16.msra.mxu0 0
  %1019 = vmatprep.subr.bf16.mxu0 0
  %1020 = vmatpush1.bf16.msra.mxu0 0
  %1021 = vmatprep.subr.bf16.mxu0 0
  %1022 = vmatpush1.bf16.msra.mxu0 0
  %1023 = vmatprep.subr.bf16.mxu0 0
  %1024 = vmatpush1.bf16.msra.mxu0 0
  %1025 = vmatprep.subr.bf16.mxu0 0
  %1026 = vmatpush1.bf16.msra.mxu0 0
  %1027 = vmatprep.subr.bf16.mxu0 0
  %1028 = vmatpush1.bf16.msra.mxu0 0
  %1029 = vmatprep.subr.bf16.mxu0 0
  %1030 = vmatpush1.bf16.msra.mxu0 0
  %1031 = vmatprep.subr.bf16.mxu0 0
  %1032 = vmatpush1.bf16.msra.mxu0 0
  %1033 = vmatprep.subr.bf16.mxu0 0
  %1034 = vmatpush1.bf16.msra.mxu0 0
  %1035 = vmatprep.mubr.bf16.mxu0 0
  %1036 = vmatmul.mubr.bf16.gmra.mrb[0].mxu0 %v998
  %v1037 = vpop.f32.mrb[0].mxu0
  %v1038 = vadd.f32 0.0, %v1037
  %v1039 = vpop.f32.mrb[0].mxu0
  %v1040 = vpop.f32.mrb[0].mxu0
  %v1041 = vpop.f32.mrb[0].mxu0
  %1042 = vdwg.mxu0
  %v1043 = vpack.c.bf16 %v750, %v702
  %v1044 = vpack.c.bf16 %v846, %v798
  %v1045 = vpack.c.bf16 %v942, %v894
  %v1046 = vpack.c.bf16 %v1038, %v990
  %v1047 = vld [vmem:[%s3] sm:$0xf]
  %v1048 = vld [vmem:[%s3 + $0x4] sm:$0xf]
  %v1049 = vld [vmem:[%s3 + $0x8] sm:$0xf]
  %v1050 = vld [vmem:[%s3 + $0xc] sm:$0xf]
  %v1052 = vsel %vm172, %v1043, 0
  %v1055 = vsel %vm663, %v1047, 0
  %1057 = vmatprep.subr.bf16.mxu0 0
  %1058 = vmatpush1.bf16.msra.mxu0 %v1055
  %1059 = vmatprep.subr.bf16.mxu0 0
  %1060 = vmatpush1.bf16.msra.mxu0 0
  %1061 = vmatprep.subr.bf16.mxu0 0
  %1062 = vmatpush1.bf16.msra.mxu0 0
  %1063 = vmatprep.subr.bf16.mxu0 0
  %1064 = vmatpush1.bf16.msra.mxu0 0
  %1065 = vmatprep.subr.bf16.mxu0 0
  %1066 = vmatpush1.bf16.msra.mxu0 0
  %1067 = vmatprep.subr.bf16.mxu0 0
  %1068 = vmatpush1.bf16.msra.mxu0 0
  %1069 = vmatprep.subr.bf16.mxu0 0
  %1070 = vmatpush1.bf16.msra.mxu0 0
  %1071 = vmatprep.subr.bf16.mxu0 0
  %1072 = vmatpush1.bf16.msra.mxu0 0
  %1073 = vmatprep.subr.bf16.mxu0 0
  %1074 = vmatpush1.bf16.msra.mxu0 0
  %1075 = vmatprep.subr.bf16.mxu0 0
  %1076 = vmatpush1.bf16.msra.mxu0 0
  %1077 = vmatprep.subr.bf16.mxu0 0
  %1078 = vmatpush1.bf16.msra.mxu0 0
  %1079 = vmatprep.subr.bf16.mxu0 0
  %1080 = vmatpush1.bf16.msra.mxu0 0
  %1081 = vmatprep.subr.bf16.mxu0 0
  %1082 = vmatpush1.bf16.msra.mxu0 0
  %1083 = vmatprep.subr.bf16.mxu0 0
  %1084 = vmatpush1.bf16.msra.mxu0 0
  %1085 = vmatprep.subr.bf16.mxu0 0
  %1086 = vmatpush1.bf16.msra.mxu0 0
  %1087 = vmatprep.subr.bf16.mxu0 0
  %1088 = vmatpush1.bf16.msra.mxu0 0
  %1089 = vmatprep.mubr.bf16.mxu0 0
  %1090 = vmatmul.mubr.bf16.gmra.mrb[0].mxu0 %v1052
  %v1091 = vpop.f32.mrb[0].mxu0
  %v1092 = vadd.f32 0.0, %v1091
  %v1093 = vpop.f32.mrb[0].mxu0
  %v1094 = vpop.f32.mrb[0].mxu0
  %v1095 = vadd.f32 0.0, %v1094
  %v1096 = vpop.f32.mrb[0].mxu0
  %1097 = vdwg.mxu0
  %v1099 = vsel %vm172, %v1044, 0
  %v1102 = vsel %vm663, %v1048, 0
  %1104 = vmatprep.subr.bf16.mxu0 0
  %1105 = vmatpush1.bf16.msra.mxu0 %v1102
  %1106 = vmatprep.subr.bf16.mxu0 0
  %1107 = vmatpush1.bf16.msra.mxu0 0
  %1108 = vmatprep.subr.bf16.mxu0 0
  %1109 = vmatpush1.bf16.msra.mxu0 0
  %1110 = vmatprep.subr.bf16.mxu0 0
  %1111 = vmatpush1.bf16.msra.mxu0 0
  %1112 = vmatprep.subr.bf16.mxu0 0
  %1113 = vmatpush1.bf16.msra.mxu0 0
  %1114 = vmatprep.subr.bf16.mxu0 0
  %1115 = vmatpush1.bf16.msra.mxu0 0
  %1116 = vmatprep.subr.bf16.mxu0 0
  %1117 = vmatpush1.bf16.msra.mxu0 0
  %1118 = vmatprep.subr.bf16.mxu0 0
  %1119 = vmatpush1.bf16.msra.mxu0 0
  %1120 = vmatprep.subr.bf16.mxu0 0
  %1121 = vmatpush1.bf16.msra.mxu0 0
  %1122 = vmatprep.subr.bf16.mxu0 0
  %1123 = vmatpush1.bf16.msra.mxu0 0
  %1124 = vmatprep.subr.bf16.mxu0 0
  %1125 = vmatpush1.bf16.msra.mxu0 0
  %1126 = vmatprep.subr.bf16.mxu0 0
  %1127 = vmatpush1.bf16.msra.mxu0 0
  %1128 = vmatprep.subr.bf16.mxu0 0
  %1129 = vmatpush1.bf16.msra.mxu0 0
  %1130 = vmatprep.subr.bf16.mxu0 0
  %1131 = vmatpush1.bf16.msra.mxu0 0
  %1132 = vmatprep.subr.bf16.mxu0 0
  %1133 = vmatpush1.bf16.msra.mxu0 0
  %1134 = vmatprep.subr.bf16.mxu0 0
  %1135 = vmatpush1.bf16.msra.mxu0 0
  %1136 = vmatprep.mubr.bf16.mxu0 0
  %1137 = vmatmul.mubr.bf16.gmra.mrb[0].mxu0 %v1099
  %v1138 = vpop.f32.mrb[0].mxu0
  %v1139 = vadd.f32 0.0, %v1138
  %v1140 = vpop.f32.mrb[0].mxu0
  %v1141 = vpop.f32.mrb[0].mxu0
  %v1142 = vadd.f32 0.0, %v1141
  %v1143 = vpop.f32.mrb[0].mxu0
  %1144 = vdwg.mxu0
  %v1146 = vsel %vm172, %v1045, 0
  %v1149 = vsel %vm663, %v1049, 0
  %1151 = vmatprep.subr.bf16.mxu0 0
  %1152 = vmatpush1.bf16.msra.mxu0 %v1149
  %1153 = vmatprep.subr.bf16.mxu0 0
  %1154 = vmatpush1.bf16.msra.mxu0 0
  %1155 = vmatprep.subr.bf16.mxu0 0
  %1156 = vmatpush1.bf16.msra.mxu0 0
  %1157 = vmatprep.subr.bf16.mxu0 0
  %1158 = vmatpush1.bf16.msra.mxu0 0
  %1159 = vmatprep.subr.bf16.mxu0 0
  %1160 = vmatpush1.bf16.msra.mxu0 0
  %1161 = vmatprep.subr.bf16.mxu0 0
  %1162 = vmatpush1.bf16.msra.mxu0 0
  %1163 = vmatprep.subr.bf16.mxu0 0
  %1164 = vmatpush1.bf16.msra.mxu0 0
  %1165 = vmatprep.subr.bf16.mxu0 0
  %1166 = vmatpush1.bf16.msra.mxu0 0
  %1167 = vmatprep.subr.bf16.mxu0 0
  %1168 = vmatpush1.bf16.msra.mxu0 0
  %1169 = vmatprep.subr.bf16.mxu0 0
  %1170 = vmatpush1.bf16.msra.mxu0 0
  %1171 = vmatprep.subr.bf16.mxu0 0
  %1172 = vmatpush1.bf16.msra.mxu0 0
  %1173 = vmatprep.subr.bf16.mxu0 0
  %1174 = vmatpush1.bf16.msra.mxu0 0
  %1175 = vmatprep.subr.bf16.mxu0 0
  %1176 = vmatpush1.bf16.msra.mxu0 0
  %1177 = vmatprep.subr.bf16.mxu0 0
  %1178 = vmatpush1.bf16.msra.mxu0 0
  %1179 = vmatprep.subr.bf16.mxu0 0
  %1180 = vmatpush1.bf16.msra.mxu0 0
  %1181 = vmatprep.subr.bf16.mxu0 0
  %1182 = vmatpush1.bf16.msra.mxu0 0
  %1183 = vmatprep.mubr.bf16.mxu0 0
  %1184 = vmatmul.mubr.bf16.gmra.mrb[0].mxu0 %v1146
  %v1185 = vpop.f32.mrb[0].mxu0
  %v1186 = vadd.f32 0.0, %v1185
  %v1187 = vpop.f32.mrb[0].mxu0
  %v1188 = vpop.f32.mrb[0].mxu0
  %v1189 = vadd.f32 0.0, %v1188
  %v1190 = vpop.f32.mrb[0].mxu0
  %1191 = vdwg.mxu0
  %v1193 = vsel %vm172, %v1046, 0
  %v1196 = vsel %vm663, %v1050, 0
  %1198 = vmatprep.subr.bf16.mxu0 0
  %1199 = vmatpush1.bf16.msra.mxu0 %v1196
  %1200 = vmatprep.subr.bf16.mxu0 0
  %1201 = vmatpush1.bf16.msra.mxu0 0
  %1202 = vmatprep.subr.bf16.mxu0 0
  %1203 = vmatpush1.bf16.msra.mxu0 0
  %1204 = vmatprep.subr.bf16.mxu0 0
  %1205 = vmatpush1.bf16.msra.mxu0 0
  %1206 = vmatprep.subr.bf16.mxu0 0
  %1207 = vmatpush1.bf16.msra.mxu0 0
  %1208 = vmatprep.subr.bf16.mxu0 0
  %1209 = vmatpush1.bf16.msra.mxu0 0
  %1210 = vmatprep.subr.bf16.mxu0 0
  %1211 = vmatpush1.bf16.msra.mxu0 0
  %1212 = vmatprep.subr.bf16.mxu0 0
  %1213 = vmatpush1.bf16.msra.mxu0 0
  %1214 = vmatprep.subr.bf16.mxu0 0
  %1215 = vmatpush1.bf16.msra.mxu0 0
  %1216 = vmatprep.subr.bf16.mxu0 0
  %1217 = vmatpush1.bf16.msra.mxu0 0
  %1218 = vmatprep.subr.bf16.mxu0 0
  %1219 = vmatpush1.bf16.msra.mxu0 0
  %1220 = vmatprep.subr.bf16.mxu0 0
  %1221 = vmatpush1.bf16.msra.mxu0 0
  %1222 = vmatprep.subr.bf16.mxu0 0
  %1223 = vmatpush1.bf16.msra.mxu0 0
  %1224 = vmatprep.subr.bf16.mxu0 0
  %1225 = vmatpush1.bf16.msra.mxu0 0
  %1226 = vmatprep.subr.bf16.mxu0 0
  %1227 = vmatpush1.bf16.msra.mxu0 0
  %1228 = vmatprep.subr.bf16.mxu0 0
  %1229 = vmatpush1.bf16.msra.mxu0 0
  %1230 = vmatprep.mubr.bf16.mxu0 0
  %1231 = vmatmul.mubr.bf16.gmra.mrb[0].mxu0 %v1193
  %v1232 = vpop.f32.mrb[0].mxu0
  %v1233 = vadd.f32 0.0, %v1232
  %v1234 = vpop.f32.mrb[0].mxu0
  %v1235 = vpop.f32.mrb[0].mxu0
  %v1236 = vadd.f32 0.0, %v1235
  %v1237 = vpop.f32.mrb[0].mxu0
  %1238 = vdwg.mxu0
  %v1239 = vsel %vm33, %v1092, 0.0
  %v1240 = vsel %vm33, %v1139, 0.0
  %v1241 = vadd.f32 %v1239, %v1240
  %v1242 = vsel %vm33, %v1186, 0.0
  %v1243 = vadd.f32 %v1241, %v1242
  %v1244 = vsel %vm33, %v1233, 0.0
  %v1245 = vadd.f32 %v1243, %v1244
  %v1246 = vsel %vm33, %v1095, 0.0
  %v1247 = vsel %vm33, %v1142, 0.0
  %v1248 = vadd.f32 %v1246, %v1247
  %v1249 = vsel %vm33, %v1189, 0.0
  %v1250 = vadd.f32 %v1248, %v1249
  %v1251 = vsel %vm33, %v1236, 0.0
  %v1252 = vadd.f32 %v1250, %v1251
  %v1253 = vadd.f32 %v30, %v1245
  %v1254 = vadd.f32 %v31, %v1252
  %v1255 = vlaneseq
  %v1256 = vshrl.u32 %v1255, 7
  %v1257 = vsub.s32 2, %v1256
  %v1258 = vrot.slane %v32, %v1257
  %v1259 = vadd.f32 %v1253, %v1258
  %v1260 = vadd.f32 %v1254, %v1258
  %v1261 = vsel %vm33, %v1259, 0.0
  %1262 = vadd.xlane.f32.xlu0 %v1261
  %v1263 = vpop.xlane.xlu0 %1262
  %v1264 = vsel %vm33, %v1260, 0.0
  %1265 = vadd.xlane.f32.xlu0 %v1264
  %v1266 = vpop.xlane.xlu0 %1265
  %v1267 = vmul.f32 %v1263, %v40
  %v1268 = vmul.f32 %v1266, %v40
  %v1269 = vsub.f32 %v1259, %v1267
  %v1270 = vsub.f32 %v1260, %v1268
  %v1271 = vmul.f32 %v1269, %v1269
  %v1272 = vmul.f32 %v1270, %v1270
  %v1273 = vsel %vm33, %v1271, 0.0
  %1274 = vadd.xlane.f32.xlu0 %v1273
  %v1275 = vpop.xlane.xlu0 %1274
  %v1276 = vsel %vm33, %v1272, 0.0
  %1277 = vadd.xlane.f32.xlu0 %v1276
  %v1278 = vpop.xlane.xlu0 %1277
  %v1279 = vmul.f32 %v1275, %v40
  %v1280 = vmul.f32 %v1278, %v40
  %v1281 = vadd.f32 %v1279, 1e-05
  %v1282 = vadd.f32 %v1280, 1e-05
  %v1283 = vrsqrt.pop %v1281
  %v1284 = vrsqrt.pop %v1282
  %v1285 = vmul.f32 %v1269, %v1283
  %v1286 = vmul.f32 %v1270, %v1284
  %v1287 = vlaneseq
  %v1288 = vshrl.u32 %v1287, 7
  %v1289 = vsub.s32 3, %v1288
  %v1290 = vrot.slane %v32, %v1289
  %v1291 = vmul.f32 %v1285, %v1290
  %v1292 = vmul.f32 %v1286, %v1290
  %v1293 = vlaneseq
  %v1294 = vshrl.u32 %v1293, 7
  %v1295 = vsub.s32 4, %v1294
  %v1296 = vrot.slane %v32, %v1295
  %v1297 = vadd.f32 %v1291, %v1296
  %v1298 = vadd.f32 %v1292, %v1296
  %v1299 = vpack.c.bf16 %v1298, %v1297
  %v1300 = vld [vmem:[%s4] sm:$0xf]
  %v1301 = vld [vmem:[%s4 + $0x4] sm:$0xf]
  %v1302 = vld [vmem:[%s4 + $0x8] sm:$0xf]
  %v1303 = vld [vmem:[%s4 + $0xc] sm:$0xf]
  %v1304 = vld [vmem:[%s5] sm:$0x1]
  %v1306 = vlaneseq
  %v1307 = vshrl.u32 %v1306, 7
  %v1308 = vsub.s32 0, %v1307
  %v1309 = vrot.slane %v1304, %v1308
  %v1315 = vunpack.c.l.b16 %v1300
  %v1316 = vunpack.c.l.b16 %v1301
  %v1317 = vunpack.c.l.b16 %v1302
  %v1318 = vunpack.c.l.b16 %v1303
  %v1319 = vpack.c.b16 %v1316, %v1315
  %v1320 = vpack.c.b16 %v1318, %v1317
  %v1324 = vsel %vm33, %v1299, 0
  %1326 = vmatprep.subr.bf16.mxu0 0
  %1327 = vmatpush1.bf16.msra.mxu0 %v1319
  %1328 = vmatprep.subr.bf16.mxu0 0
  %1329 = vmatpush1.bf16.msra.mxu0 %v1320
  %1330 = vmatprep.subr.bf16.mxu0 0
  %1331 = vmatpush1.bf16.msra.mxu0 0
  %1332 = vmatprep.subr.bf16.mxu0 0
  %1333 = vmatpush1.bf16.msra.mxu0 0
  %1334 = vmatprep.subr.bf16.mxu0 0
  %1335 = vmatpush1.bf16.msra.mxu0 0
  %1336 = vmatprep.subr.bf16.mxu0 0
  %1337 = vmatpush1.bf16.msra.mxu0 0
  %1338 = vmatprep.subr.bf16.mxu0 0
  %1339 = vmatpush1.bf16.msra.mxu0 0
  %1340 = vmatprep.subr.bf16.mxu0 0
  %1341 = vmatpush1.bf16.msra.mxu0 0
  %1342 = vmatprep.subr.bf16.mxu0 0
  %1343 = vmatpush1.bf16.msra.mxu0 0
  %1344 = vmatprep.subr.bf16.mxu0 0
  %1345 = vmatpush1.bf16.msra.mxu0 0
  %1346 = vmatprep.subr.bf16.mxu0 0
  %1347 = vmatpush1.bf16.msra.mxu0 0
  %1348 = vmatprep.subr.bf16.mxu0 0
  %1349 = vmatpush1.bf16.msra.mxu0 0
  %1350 = vmatprep.subr.bf16.mxu0 0
  %1351 = vmatpush1.bf16.msra.mxu0 0
  %1352 = vmatprep.subr.bf16.mxu0 0
  %1353 = vmatpush1.bf16.msra.mxu0 0
  %1354 = vmatprep.subr.bf16.mxu0 0
  %1355 = vmatpush1.bf16.msra.mxu0 0
  %1356 = vmatprep.subr.bf16.mxu0 0
  %1357 = vmatpush1.bf16.msra.mxu0 0
  %1358 = vmatprep.mubr.bf16.mxu0 0
  %1359 = vmatmul.mubr.bf16.gmra.mrb[0].mxu0 %v1324
  %v1360 = vpop.f32.mrb[0].mxu0
  %v1361 = vadd.f32 %v1309, %v1360
  %v1362 = vpop.f32.mrb[0].mxu0
  %v1363 = vpop.f32.mrb[0].mxu0
  %v1364 = vadd.f32 %v1309, %v1363
  %v1365 = vpop.f32.mrb[0].mxu0
  %1366 = vdwg.mxu0
  %v1367 = vmul.f32 %v1361, 0.851
  %v1368 = vmul.f32 %v1364, 0.851
  %v1369 = vtanh.pop %v1367
  %v1370 = vtanh.pop %v1368
  %v1371 = vmul.f32 %v1369, 0.5
  %v1372 = vmul.f32 %v1370, 0.5
  %v1373 = vadd.f32 %v1371, 0.5
  %v1374 = vadd.f32 %v1372, 0.5
  %v1375 = vmul.f32 %v1361, %v1373
  %v1376 = vmul.f32 %v1364, %v1374
  %v1377 = vpack.c.bf16 %v1376, %v1375
  %v1378 = vld [vmem:[%s6] sm:$0xf]
  %v1379 = vld [vmem:[%s6 + $0x4] sm:$0xf]
  %v1380 = vld [vmem:[%s6 + $0x8] sm:$0xf]
  %v1381 = vld [vmem:[%s6 + $0xc] sm:$0xf]
  %v1382 = vld [vmem:[%s6 + $0x10] sm:$0xf]
  %v1383 = vld [vmem:[%s6 + $0x14] sm:$0xf]
  %v1384 = vld [vmem:[%s6 + $0x18] sm:$0xf]
  %v1385 = vld [vmem:[%s6 + $0x1c] sm:$0xf]
  %v1386 = vld [vmem:[%s6 + $0x20] sm:$0xf]
  %v1387 = vld [vmem:[%s6 + $0x24] sm:$0xf]
  %v1388 = vld [vmem:[%s6 + $0x28] sm:$0xf]
  %v1389 = vld [vmem:[%s6 + $0x2c] sm:$0xf]
  %v1390 = vld [vmem:[%s6 + $0x30] sm:$0xf]
  %v1391 = vld [vmem:[%s6 + $0x34] sm:$0xf]
  %v1392 = vld [vmem:[%s6 + $0x38] sm:$0xf]
  %v1393 = vld [vmem:[%s6 + $0x3c] sm:$0xf]
  %v1410 = vunpack.c.l.b16 %v1378
  %v1411 = vunpack.c.l.b16 %v1379
  %v1412 = vunpack.c.l.b16 %v1380
  %v1413 = vunpack.c.l.b16 %v1381
  %v1414 = vunpack.c.l.b16 %v1382
  %v1415 = vunpack.c.l.b16 %v1383
  %v1416 = vunpack.c.l.b16 %v1384
  %v1417 = vunpack.c.l.b16 %v1385
  %v1418 = vunpack.c.l.b16 %v1386
  %v1419 = vunpack.c.l.b16 %v1387
  %v1420 = vunpack.c.l.b16 %v1388
  %v1421 = vunpack.c.l.b16 %v1389
  %v1422 = vunpack.c.l.b16 %v1390
  %v1423 = vunpack.c.l.b16 %v1391
  %v1424 = vunpack.c.l.b16 %v1392
  %v1425 = vunpack.c.l.b16 %v1393
  %v1426 = vpack.c.b16 %v1411, %v1410
  %v1427 = vpack.c.b16 %v1413, %v1412
  %v1428 = vpack.c.b16 %v1415, %v1414
  %v1429 = vpack.c.b16 %v1417, %v1416
  %v1430 = vpack.c.b16 %v1419, %v1418
  %v1431 = vpack.c.b16 %v1421, %v1420
  %v1432 = vpack.c.b16 %v1423, %v1422
  %v1433 = vpack.c.b16 %v1425, %v1424
  %1442 = vmatprep.subr.bf16.mxu0 0
  %1443 = vmatpush1.bf16.msra.mxu0 %v1426
  %1444 = vmatprep.subr.bf16.mxu0 0
  %1445 = vmatpush1.bf16.msra.mxu0 %v1427
  %1446 = vmatprep.subr.bf16.mxu0 0
  %1447 = vmatpush1.bf16.msra.mxu0 %v1428
  %1448 = vmatprep.subr.bf16.mxu0 0
  %1449 = vmatpush1.bf16.msra.mxu0 %v1429
  %1450 = vmatprep.subr.bf16.mxu0 0
  %1451 = vmatpush1.bf16.msra.mxu0 %v1430
  %1452 = vmatprep.subr.bf16.mxu0 0
  %1453 = vmatpush1.bf16.msra.mxu0 %v1431
  %1454 = vmatprep.subr.bf16.mxu0 0
  %1455 = vmatpush1.bf16.msra.mxu0 %v1432
  %1456 = vmatprep.subr.bf16.mxu0 0
  %1457 = vmatpush1.bf16.msra.mxu0 %v1433
  %1458 = vmatprep.subr.bf16.mxu0 0
  %1459 = vmatpush1.bf16.msra.mxu0 0
  %1460 = vmatprep.subr.bf16.mxu0 0
  %1461 = vmatpush1.bf16.msra.mxu0 0
  %1462 = vmatprep.subr.bf16.mxu0 0
  %1463 = vmatpush1.bf16.msra.mxu0 0
  %1464 = vmatprep.subr.bf16.mxu0 0
  %1465 = vmatpush1.bf16.msra.mxu0 0
  %1466 = vmatprep.subr.bf16.mxu0 0
  %1467 = vmatpush1.bf16.msra.mxu0 0
  %1468 = vmatprep.subr.bf16.mxu0 0
  %1469 = vmatpush1.bf16.msra.mxu0 0
  %1470 = vmatprep.subr.bf16.mxu0 0
  %1471 = vmatpush1.bf16.msra.mxu0 0
  %1472 = vmatprep.subr.bf16.mxu0 0
  %1473 = vmatpush1.bf16.msra.mxu0 0
  %1474 = vmatprep.mubr.bf16.mxu0 0
  %1475 = vmatmul.mubr.bf16.gmra.mrb[0].mxu0 %v1377
  %v1476 = vpop.f32.mrb[0].mxu0
  %v1477 = vadd.f32 0.0, %v1476
  %v1478 = vpop.f32.mrb[0].mxu0
  %v1479 = vpop.f32.mrb[0].mxu0
  %v1480 = vadd.f32 0.0, %v1479
  %v1481 = vpop.f32.mrb[0].mxu0
  %1482 = vdwg.mxu0
  %v1483 = vadd.f32 %v1259, %v1477
  %v1484 = vadd.f32 %v1260, %v1480
  %v1485 = vlaneseq
  %v1486 = vshrl.u32 %v1485, 7
  %v1487 = vsub.s32 5, %v1486
  %v1488 = vrot.slane %v32, %v1487
  %v1489 = vadd.f32 %v1483, %v1488
  %v1490 = vadd.f32 %v1484, %v1488
  %s1491 = scalar_lea.vmem %s7, 8
  %v1492 = vld [vmem:[%s1491] sm:$0x3f]
  %v1493 = vsel %vm33, %v1489, 0.0
  %1494 = vadd.xlane.f32.xlu0 %v1493
  %v1495 = vpop.xlane.xlu0 %1494
  %v1496 = vsel %vm33, %v1490, 0.0
  %1497 = vadd.xlane.f32.xlu0 %v1496
  %v1498 = vpop.xlane.xlu0 %1497
  %v1499 = vmul.f32 %v1495, %v40
  %v1500 = vmul.f32 %v1498, %v40
  %v1501 = vsub.f32 %v1489, %v1499
  %v1502 = vsub.f32 %v1490, %v1500
  %v1503 = vmul.f32 %v1501, %v1501
  %v1504 = vmul.f32 %v1502, %v1502
  %v1505 = vsel %vm33, %v1503, 0.0
  %1506 = vadd.xlane.f32.xlu0 %v1505
  %v1507 = vpop.xlane.xlu0 %1506
  %v1508 = vsel %vm33, %v1504, 0.0
  %1509 = vadd.xlane.f32.xlu0 %v1508
  %v1510 = vpop.xlane.xlu0 %1509
  %v1511 = vmul.f32 %v1507, %v40
  %v1512 = vmul.f32 %v1510, %v40
  %v1513 = vadd.f32 %v1511, 1e-05
  %v1514 = vadd.f32 %v1512, 1e-05
  %v1515 = vrsqrt.pop %v1513
  %v1516 = vrsqrt.pop %v1514
  %v1517 = vmul.f32 %v1501, %v1515
  %v1518 = vmul.f32 %v1502, %v1516
  %v1519 = vlaneseq
  %v1520 = vshrl.u32 %v1519, 7
  %v1521 = vsub.s32 0, %v1520
  %v1522 = vrot.slane %v1492, %v1521
  %v1523 = vmul.f32 %v1517, %v1522
  %v1524 = vmul.f32 %v1518, %v1522
  %v1525 = vlaneseq
  %v1526 = vshrl.u32 %v1525, 7
  %v1527 = vsub.s32 1, %v1526
  %v1528 = vrot.slane %v1492, %v1527
  %v1529 = vadd.f32 %v1523, %v1528
  %v1530 = vadd.f32 %v1524, %v1528
  %v1531 = vpack.c.bf16 %v1530, %v1529
  %s1532 = scalar_lea.vmem %s1, 16
  %v1533 = vld [vmem:[%s1532] sm:$0xf]
  %v1534 = vld [vmem:[%s1532 + $0x4] sm:$0xf]
  %v1535 = vld [vmem:[%s1532 + $0x8] sm:$0xf]
  %v1536 = vld [vmem:[%s1532 + $0xc] sm:$0xf]
  %s1537 = scalar_lea.vmem %s2, 1
  %v1538 = vld [vmem:[%s1537] sm:$0x1]
  %v1540 = vlaneseq
  %v1541 = vshrl.u32 %v1540, 7
  %v1542 = vsub.s32 0, %v1541
  %v1543 = vrot.slane %v1538, %v1542
  %v1549 = vunpack.c.l.b16 %v1533
  %v1550 = vunpack.c.l.b16 %v1534
  %v1551 = vunpack.c.l.b16 %v1535
  %v1552 = vunpack.c.l.b16 %v1536
  %v1553 = vpack.c.b16 %v1550, %v1549
  %v1554 = vpack.c.b16 %v1552, %v1551
  %v1558 = vsel %vm33, %v1531, 0
  %1560 = vmatprep.subr.bf16.mxu0 0
  %1561 = vmatpush1.bf16.msra.mxu0 %v1553
  %1562 = vmatprep.subr.bf16.mxu0 0
  %1563 = vmatpush1.bf16.msra.mxu0 %v1554
  %1564 = vmatprep.subr.bf16.mxu0 0
  %1565 = vmatpush1.bf16.msra.mxu0 0
  %1566 = vmatprep.subr.bf16.mxu0 0
  %1567 = vmatpush1.bf16.msra.mxu0 0
  %1568 = vmatprep.subr.bf16.mxu0 0
  %1569 = vmatpush1.bf16.msra.mxu0 0
  %1570 = vmatprep.subr.bf16.mxu0 0
  %1571 = vmatpush1.bf16.msra.mxu0 0
  %1572 = vmatprep.subr.bf16.mxu0 0
  %1573 = vmatpush1.bf16.msra.mxu0 0
  %1574 = vmatprep.subr.bf16.mxu0 0
  %1575 = vmatpush1.bf16.msra.mxu0 0
  %1576 = vmatprep.subr.bf16.mxu0 0
  %1577 = vmatpush1.bf16.msra.mxu0 0
  %1578 = vmatprep.subr.bf16.mxu0 0
  %1579 = vmatpush1.bf16.msra.mxu0 0
  %1580 = vmatprep.subr.bf16.mxu0 0
  %1581 = vmatpush1.bf16.msra.mxu0 0
  %1582 = vmatprep.subr.bf16.mxu0 0
  %1583 = vmatpush1.bf16.msra.mxu0 0
  %1584 = vmatprep.subr.bf16.mxu0 0
  %1585 = vmatpush1.bf16.msra.mxu0 0
  %1586 = vmatprep.subr.bf16.mxu0 0
  %1587 = vmatpush1.bf16.msra.mxu0 0
  %1588 = vmatprep.subr.bf16.mxu0 0
  %1589 = vmatpush1.bf16.msra.mxu0 0
  %1590 = vmatprep.subr.bf16.mxu0 0
  %1591 = vmatpush1.bf16.msra.mxu0 0
  %1592 = vmatprep.mubr.bf16.mxu0 0
  %1593 = vmatmul.mubr.bf16.gmra.mrb[0].mxu0 %v1558
  %v1594 = vpop.f32.mrb[0].mxu0
  %v1595 = vadd.f32 %v1543, %v1594
  %v1596 = vpop.f32.mrb[0].mxu0
  %v1597 = vpop.f32.mrb[0].mxu0
  %v1598 = vadd.f32 %v1543, %v1597
  %v1599 = vpop.f32.mrb[0].mxu0
  %1600 = vdwg.mxu0
  %1603 = vrot.lane.b32.xlu0 %v1595, 120
  %v1604 = vpop.permute.xlu0 %1603
  %1605 = vrot.lane.b32.xlu0 %v1598, 120
  %v1606 = vpop.permute.xlu0 %1605
  %1609 = vrot.lane.b32.xlu0 %v1595, 112
  %v1610 = vpop.permute.xlu0 %1609
  %1611 = vrot.lane.b32.xlu0 %v1598, 112
  %v1612 = vpop.permute.xlu0 %1611
  %1615 = vrot.lane.b32.xlu0 %v1595, 104
  %v1616 = vpop.permute.xlu0 %1615
  %1617 = vrot.lane.b32.xlu0 %v1598, 104
  %v1618 = vpop.permute.xlu0 %1617
  %v1621 = vpack.c.bf16 %v1595, %v1595
  %v1622 = vpack.c.bf16 %v1598, %v1598
  %v1623 = vpack.c.bf16 %v1604, %v1604
  %v1624 = vpack.c.bf16 %v1606, %v1606
  %v1625 = vpack.c.bf16 %v1610, %v1610
  %v1626 = vpack.c.bf16 %v1612, %v1612
  %v1627 = vpack.c.bf16 %v1616, %v1616
  %v1628 = vpack.c.bf16 %v1618, %v1618
  %1630 = vrot.lane.b32.xlu0 %v1621, 96
  %v1631 = vpop.permute.xlu0 %1630
  %v1633 = vsel %vm172, %v1621, 0
  %v1636 = vsel %vm172, %v1631, 0
  %1638 = vmatprep.subr.bf16.mxu0 0
  %1639 = vmatpush1.bf16.xpose.msra.mxu0 %v1636
  %1640 = vmatprep.subr.bf16.mxu0 0
  %1641 = vmatpush1.bf16.xpose.msra.mxu0 0
  %1642 = vmatprep.subr.bf16.mxu0 0
  %1643 = vmatpush1.bf16.xpose.msra.mxu0 0
  %1644 = vmatprep.subr.bf16.mxu0 0
  %1645 = vmatpush1.bf16.xpose.msra.mxu0 0
  %1646 = vmatprep.subr.bf16.mxu0 0
  %1647 = vmatpush1.bf16.xpose.msra.mxu0 0
  %1648 = vmatprep.subr.bf16.mxu0 0
  %1649 = vmatpush1.bf16.xpose.msra.mxu0 0
  %1650 = vmatprep.subr.bf16.mxu0 0
  %1651 = vmatpush1.bf16.xpose.msra.mxu0 0
  %1652 = vmatprep.subr.bf16.mxu0 0
  %1653 = vmatpush1.bf16.xpose.msra.mxu0 0
  %1654 = vmatprep.subr.bf16.mxu0 0
  %1655 = vmatpush1.bf16.xpose.msra.mxu0 0
  %1656 = vmatprep.subr.bf16.mxu0 0
  %1657 = vmatpush1.bf16.xpose.msra.mxu0 0
  %1658 = vmatprep.subr.bf16.mxu0 0
  %1659 = vmatpush1.bf16.xpose.msra.mxu0 0
  %1660 = vmatprep.subr.bf16.mxu0 0
  %1661 = vmatpush1.bf16.xpose.msra.mxu0 0
  %1662 = vmatprep.subr.bf16.mxu0 0
  %1663 = vmatpush1.bf16.xpose.msra.mxu0 0
  %1664 = vmatprep.subr.bf16.mxu0 0
  %1665 = vmatpush1.bf16.xpose.msra.mxu0 0
  %1666 = vmatprep.subr.bf16.mxu0 0
  %1667 = vmatpush1.bf16.xpose.msra.mxu0 0
  %1668 = vmatprep.subr.bf16.mxu0 0
  %1669 = vmatpush1.bf16.xpose.msra.mxu0 0
  %1670 = vmatprep.mubr.bf16.mxu0 0
  %1671 = vmatmul.mubr.bf16.gmra.mrb[0].mxu0 %v1633
  %v1672 = vpop.f32.mrb[0].mxu0
  %v1673 = vadd.f32 0.0, %v1672
  %v1674 = vpop.f32.mrb[0].mxu0
  %v1675 = vpop.f32.mrb[0].mxu0
  %v1676 = vpop.f32.mrb[0].mxu0
  %1677 = vdwg.mxu0
  %1679 = vrot.lane.b32.xlu0 %v1622, 96
  %v1680 = vpop.permute.xlu0 %1679
  %v1682 = vsel %vm172, %v1622, 0
  %v1685 = vsel %vm172, %v1680, 0
  %1687 = vmatprep.subr.bf16.mxu0 0
  %1688 = vmatpush1.bf16.xpose.msra.mxu0 %v1685
  %1689 = vmatprep.subr.bf16.mxu0 0
  %1690 = vmatpush1.bf16.xpose.msra.mxu0 0
  %1691 = vmatprep.subr.bf16.mxu0 0
  %1692 = vmatpush1.bf16.xpose.msra.mxu0 0
  %1693 = vmatprep.subr.bf16.mxu0 0
  %1694 = vmatpush1.bf16.xpose.msra.mxu0 0
  %1695 = vmatprep.subr.bf16.mxu0 0
  %1696 = vmatpush1.bf16.xpose.msra.mxu0 0
  %1697 = vmatprep.subr.bf16.mxu0 0
  %1698 = vmatpush1.bf16.xpose.msra.mxu0 0
  %1699 = vmatprep.subr.bf16.mxu0 0
  %1700 = vmatpush1.bf16.xpose.msra.mxu0 0
  %1701 = vmatprep.subr.bf16.mxu0 0
  %1702 = vmatpush1.bf16.xpose.msra.mxu0 0
  %1703 = vmatprep.subr.bf16.mxu0 0
  %1704 = vmatpush1.bf16.xpose.msra.mxu0 0
  %1705 = vmatprep.subr.bf16.mxu0 0
  %1706 = vmatpush1.bf16.xpose.msra.mxu0 0
  %1707 = vmatprep.subr.bf16.mxu0 0
  %1708 = vmatpush1.bf16.xpose.msra.mxu0 0
  %1709 = vmatprep.subr.bf16.mxu0 0
  %1710 = vmatpush1.bf16.xpose.msra.mxu0 0
  %1711 = vmatprep.subr.bf16.mxu0 0
  %1712 = vmatpush1.bf16.xpose.msra.mxu0 0
  %1713 = vmatprep.subr.bf16.mxu0 0
  %1714 = vmatpush1.bf16.xpose.msra.mxu0 0
  %1715 = vmatprep.subr.bf16.mxu0 0
  %1716 = vmatpush1.bf16.xpose.msra.mxu0 0
  %1717 = vmatprep.subr.bf16.mxu0 0
  %1718 = vmatpush1.bf16.xpose.msra.mxu0 0
  %1719 = vmatprep.mubr.bf16.mxu0 0
  %1720 = vmatmul.mubr.bf16.gmra.mrb[0].mxu0 %v1682
  %v1721 = vpop.f32.mrb[0].mxu0
  %v1722 = vadd.f32 0.0, %v1721
  %v1723 = vpop.f32.mrb[0].mxu0
  %v1724 = vpop.f32.mrb[0].mxu0
  %v1725 = vpop.f32.mrb[0].mxu0
  %1726 = vdwg.mxu0
  %1728 = vrot.lane.b32.xlu0 %v1623, 96
  %v1729 = vpop.permute.xlu0 %1728
  %v1731 = vsel %vm172, %v1623, 0
  %v1734 = vsel %vm172, %v1729, 0
  %1736 = vmatprep.subr.bf16.mxu0 0
  %1737 = vmatpush1.bf16.xpose.msra.mxu0 %v1734
  %1738 = vmatprep.subr.bf16.mxu0 0
  %1739 = vmatpush1.bf16.xpose.msra.mxu0 0
  %1740 = vmatprep.subr.bf16.mxu0 0
  %1741 = vmatpush1.bf16.xpose.msra.mxu0 0
  %1742 = vmatprep.subr.bf16.mxu0 0
  %1743 = vmatpush1.bf16.xpose.msra.mxu0 0
  %1744 = vmatprep.subr.bf16.mxu0 0
  %1745 = vmatpush1.bf16.xpose.msra.mxu0 0
  %1746 = vmatprep.subr.bf16.mxu0 0
  %1747 = vmatpush1.bf16.xpose.msra.mxu0 0
  %1748 = vmatprep.subr.bf16.mxu0 0
  %1749 = vmatpush1.bf16.xpose.msra.mxu0 0
  %1750 = vmatprep.subr.bf16.mxu0 0
  %1751 = vmatpush1.bf16.xpose.msra.mxu0 0
  %1752 = vmatprep.subr.bf16.mxu0 0
  %1753 = vmatpush1.bf16.xpose.msra.mxu0 0
  %1754 = vmatprep.subr.bf16.mxu0 0
  %1755 = vmatpush1.bf16.xpose.msra.mxu0 0
  %1756 = vmatprep.subr.bf16.mxu0 0
  %1757 = vmatpush1.bf16.xpose.msra.mxu0 0
  %1758 = vmatprep.subr.bf16.mxu0 0
  %1759 = vmatpush1.bf16.xpose.msra.mxu0 0
  %1760 = vmatprep.subr.bf16.mxu0 0
  %1761 = vmatpush1.bf16.xpose.msra.mxu0 0
  %1762 = vmatprep.subr.bf16.mxu0 0
  %1763 = vmatpush1.bf16.xpose.msra.mxu0 0
  %1764 = vmatprep.subr.bf16.mxu0 0
  %1765 = vmatpush1.bf16.xpose.msra.mxu0 0
  %1766 = vmatprep.subr.bf16.mxu0 0
  %1767 = vmatpush1.bf16.xpose.msra.mxu0 0
  %1768 = vmatprep.mubr.bf16.mxu0 0
  %1769 = vmatmul.mubr.bf16.gmra.mrb[0].mxu0 %v1731
  %v1770 = vpop.f32.mrb[0].mxu0
  %v1771 = vadd.f32 0.0, %v1770
  %v1772 = vpop.f32.mrb[0].mxu0
  %v1773 = vpop.f32.mrb[0].mxu0
  %v1774 = vpop.f32.mrb[0].mxu0
  %1775 = vdwg.mxu0
  %1777 = vrot.lane.b32.xlu0 %v1624, 96
  %v1778 = vpop.permute.xlu0 %1777
  %v1780 = vsel %vm172, %v1624, 0
  %v1783 = vsel %vm172, %v1778, 0
  %1785 = vmatprep.subr.bf16.mxu0 0
  %1786 = vmatpush1.bf16.xpose.msra.mxu0 %v1783
  %1787 = vmatprep.subr.bf16.mxu0 0
  %1788 = vmatpush1.bf16.xpose.msra.mxu0 0
  %1789 = vmatprep.subr.bf16.mxu0 0
  %1790 = vmatpush1.bf16.xpose.msra.mxu0 0
  %1791 = vmatprep.subr.bf16.mxu0 0
  %1792 = vmatpush1.bf16.xpose.msra.mxu0 0
  %1793 = vmatprep.subr.bf16.mxu0 0
  %1794 = vmatpush1.bf16.xpose.msra.mxu0 0
  %1795 = vmatprep.subr.bf16.mxu0 0
  %1796 = vmatpush1.bf16.xpose.msra.mxu0 0
  %1797 = vmatprep.subr.bf16.mxu0 0
  %1798 = vmatpush1.bf16.xpose.msra.mxu0 0
  %1799 = vmatprep.subr.bf16.mxu0 0
  %1800 = vmatpush1.bf16.xpose.msra.mxu0 0
  %1801 = vmatprep.subr.bf16.mxu0 0
  %1802 = vmatpush1.bf16.xpose.msra.mxu0 0
  %1803 = vmatprep.subr.bf16.mxu0 0
  %1804 = vmatpush1.bf16.xpose.msra.mxu0 0
  %1805 = vmatprep.subr.bf16.mxu0 0
  %1806 = vmatpush1.bf16.xpose.msra.mxu0 0
  %1807 = vmatprep.subr.bf16.mxu0 0
  %1808 = vmatpush1.bf16.xpose.msra.mxu0 0
  %1809 = vmatprep.subr.bf16.mxu0 0
  %1810 = vmatpush1.bf16.xpose.msra.mxu0 0
  %1811 = vmatprep.subr.bf16.mxu0 0
  %1812 = vmatpush1.bf16.xpose.msra.mxu0 0
  %1813 = vmatprep.subr.bf16.mxu0 0
  %1814 = vmatpush1.bf16.xpose.msra.mxu0 0
  %1815 = vmatprep.subr.bf16.mxu0 0
  %1816 = vmatpush1.bf16.xpose.msra.mxu0 0
  %1817 = vmatprep.mubr.bf16.mxu0 0
  %1818 = vmatmul.mubr.bf16.gmra.mrb[0].mxu0 %v1780
  %v1819 = vpop.f32.mrb[0].mxu0
  %v1820 = vadd.f32 0.0, %v1819
  %v1821 = vpop.f32.mrb[0].mxu0
  %v1822 = vpop.f32.mrb[0].mxu0
  %v1823 = vpop.f32.mrb[0].mxu0
  %1824 = vdwg.mxu0
  %1826 = vrot.lane.b32.xlu0 %v1625, 96
  %v1827 = vpop.permute.xlu0 %1826
  %v1829 = vsel %vm172, %v1625, 0
  %v1832 = vsel %vm172, %v1827, 0
  %1834 = vmatprep.subr.bf16.mxu0 0
  %1835 = vmatpush1.bf16.xpose.msra.mxu0 %v1832
  %1836 = vmatprep.subr.bf16.mxu0 0
  %1837 = vmatpush1.bf16.xpose.msra.mxu0 0
  %1838 = vmatprep.subr.bf16.mxu0 0
  %1839 = vmatpush1.bf16.xpose.msra.mxu0 0
  %1840 = vmatprep.subr.bf16.mxu0 0
  %1841 = vmatpush1.bf16.xpose.msra.mxu0 0
  %1842 = vmatprep.subr.bf16.mxu0 0
  %1843 = vmatpush1.bf16.xpose.msra.mxu0 0
  %1844 = vmatprep.subr.bf16.mxu0 0
  %1845 = vmatpush1.bf16.xpose.msra.mxu0 0
  %1846 = vmatprep.subr.bf16.mxu0 0
  %1847 = vmatpush1.bf16.xpose.msra.mxu0 0
  %1848 = vmatprep.subr.bf16.mxu0 0
  %1849 = vmatpush1.bf16.xpose.msra.mxu0 0
  %1850 = vmatprep.subr.bf16.mxu0 0
  %1851 = vmatpush1.bf16.xpose.msra.mxu0 0
  %1852 = vmatprep.subr.bf16.mxu0 0
  %1853 = vmatpush1.bf16.xpose.msra.mxu0 0
  %1854 = vmatprep.subr.bf16.mxu0 0
  %1855 = vmatpush1.bf16.xpose.msra.mxu0 0
  %1856 = vmatprep.subr.bf16.mxu0 0
  %1857 = vmatpush1.bf16.xpose.msra.mxu0 0
  %1858 = vmatprep.subr.bf16.mxu0 0
  %1859 = vmatpush1.bf16.xpose.msra.mxu0 0
  %1860 = vmatprep.subr.bf16.mxu0 0
  %1861 = vmatpush1.bf16.xpose.msra.mxu0 0
  %1862 = vmatprep.subr.bf16.mxu0 0
  %1863 = vmatpush1.bf16.xpose.msra.mxu0 0
  %1864 = vmatprep.subr.bf16.mxu0 0
  %1865 = vmatpush1.bf16.xpose.msra.mxu0 0
  %1866 = vmatprep.mubr.bf16.mxu0 0
  %1867 = vmatmul.mubr.bf16.gmra.mrb[0].mxu0 %v1829
  %v1868 = vpop.f32.mrb[0].mxu0
  %v1869 = vadd.f32 0.0, %v1868
  %v1870 = vpop.f32.mrb[0].mxu0
  %v1871 = vpop.f32.mrb[0].mxu0
  %v1872 = vpop.f32.mrb[0].mxu0
  %1873 = vdwg.mxu0
  %1875 = vrot.lane.b32.xlu0 %v1626, 96
  %v1876 = vpop.permute.xlu0 %1875
  %v1878 = vsel %vm172, %v1626, 0
  %v1881 = vsel %vm172, %v1876, 0
  %1883 = vmatprep.subr.bf16.mxu0 0
  %1884 = vmatpush1.bf16.xpose.msra.mxu0 %v1881
  %1885 = vmatprep.subr.bf16.mxu0 0
  %1886 = vmatpush1.bf16.xpose.msra.mxu0 0
  %1887 = vmatprep.subr.bf16.mxu0 0
  %1888 = vmatpush1.bf16.xpose.msra.mxu0 0
  %1889 = vmatprep.subr.bf16.mxu0 0
  %1890 = vmatpush1.bf16.xpose.msra.mxu0 0
  %1891 = vmatprep.subr.bf16.mxu0 0
  %1892 = vmatpush1.bf16.xpose.msra.mxu0 0
  %1893 = vmatprep.subr.bf16.mxu0 0
  %1894 = vmatpush1.bf16.xpose.msra.mxu0 0
  %1895 = vmatprep.subr.bf16.mxu0 0
  %1896 = vmatpush1.bf16.xpose.msra.mxu0 0
  %1897 = vmatprep.subr.bf16.mxu0 0
  %1898 = vmatpush1.bf16.xpose.msra.mxu0 0
  %1899 = vmatprep.subr.bf16.mxu0 0
  %1900 = vmatpush1.bf16.xpose.msra.mxu0 0
  %1901 = vmatprep.subr.bf16.mxu0 0
  %1902 = vmatpush1.bf16.xpose.msra.mxu0 0
  %1903 = vmatprep.subr.bf16.mxu0 0
  %1904 = vmatpush1.bf16.xpose.msra.mxu0 0
  %1905 = vmatprep.subr.bf16.mxu0 0
  %1906 = vmatpush1.bf16.xpose.msra.mxu0 0
  %1907 = vmatprep.subr.bf16.mxu0 0
  %1908 = vmatpush1.bf16.xpose.msra.mxu0 0
  %1909 = vmatprep.subr.bf16.mxu0 0
  %1910 = vmatpush1.bf16.xpose.msra.mxu0 0
  %1911 = vmatprep.subr.bf16.mxu0 0
  %1912 = vmatpush1.bf16.xpose.msra.mxu0 0
  %1913 = vmatprep.subr.bf16.mxu0 0
  %1914 = vmatpush1.bf16.xpose.msra.mxu0 0
  %1915 = vmatprep.mubr.bf16.mxu0 0
  %1916 = vmatmul.mubr.bf16.gmra.mrb[0].mxu0 %v1878
  %v1917 = vpop.f32.mrb[0].mxu0
  %v1918 = vadd.f32 0.0, %v1917
  %v1919 = vpop.f32.mrb[0].mxu0
  %v1920 = vpop.f32.mrb[0].mxu0
  %v1921 = vpop.f32.mrb[0].mxu0
  %1922 = vdwg.mxu0
  %1924 = vrot.lane.b32.xlu0 %v1627, 96
  %v1925 = vpop.permute.xlu0 %1924
  %v1927 = vsel %vm172, %v1627, 0
  %v1930 = vsel %vm172, %v1925, 0
  %1932 = vmatprep.subr.bf16.mxu0 0
  %1933 = vmatpush1.bf16.xpose.msra.mxu0 %v1930
  %1934 = vmatprep.subr.bf16.mxu0 0
  %1935 = vmatpush1.bf16.xpose.msra.mxu0 0
  %1936 = vmatprep.subr.bf16.mxu0 0
  %1937 = vmatpush1.bf16.xpose.msra.mxu0 0
  %1938 = vmatprep.subr.bf16.mxu0 0
  %1939 = vmatpush1.bf16.xpose.msra.mxu0 0
  %1940 = vmatprep.subr.bf16.mxu0 0
  %1941 = vmatpush1.bf16.xpose.msra.mxu0 0
  %1942 = vmatprep.subr.bf16.mxu0 0
  %1943 = vmatpush1.bf16.xpose.msra.mxu0 0
  %1944 = vmatprep.subr.bf16.mxu0 0
  %1945 = vmatpush1.bf16.xpose.msra.mxu0 0
  %1946 = vmatprep.subr.bf16.mxu0 0
  %1947 = vmatpush1.bf16.xpose.msra.mxu0 0
  %1948 = vmatprep.subr.bf16.mxu0 0
  %1949 = vmatpush1.bf16.xpose.msra.mxu0 0
  %1950 = vmatprep.subr.bf16.mxu0 0
  %1951 = vmatpush1.bf16.xpose.msra.mxu0 0
  %1952 = vmatprep.subr.bf16.mxu0 0
  %1953 = vmatpush1.bf16.xpose.msra.mxu0 0
  %1954 = vmatprep.subr.bf16.mxu0 0
  %1955 = vmatpush1.bf16.xpose.msra.mxu0 0
  %1956 = vmatprep.subr.bf16.mxu0 0
  %1957 = vmatpush1.bf16.xpose.msra.mxu0 0
  %1958 = vmatprep.subr.bf16.mxu0 0
  %1959 = vmatpush1.bf16.xpose.msra.mxu0 0
  %1960 = vmatprep.subr.bf16.mxu0 0
  %1961 = vmatpush1.bf16.xpose.msra.mxu0 0
  %1962 = vmatprep.subr.bf16.mxu0 0
  %1963 = vmatpush1.bf16.xpose.msra.mxu0 0
  %1964 = vmatprep.mubr.bf16.mxu0 0
  %1965 = vmatmul.mubr.bf16.gmra.mrb[0].mxu0 %v1927
  %v1966 = vpop.f32.mrb[0].mxu0
  %v1967 = vadd.f32 0.0, %v1966
  %v1968 = vpop.f32.mrb[0].mxu0
  %v1969 = vpop.f32.mrb[0].mxu0
  %v1970 = vpop.f32.mrb[0].mxu0
  %1971 = vdwg.mxu0
  %1973 = vrot.lane.b32.xlu0 %v1628, 96
  %v1974 = vpop.permute.xlu0 %1973
  %v1976 = vsel %vm172, %v1628, 0
  %v1979 = vsel %vm172, %v1974, 0
  %1981 = vmatprep.subr.bf16.mxu0 0
  %1982 = vmatpush1.bf16.xpose.msra.mxu0 %v1979
  %1983 = vmatprep.subr.bf16.mxu0 0
  %1984 = vmatpush1.bf16.xpose.msra.mxu0 0
  %1985 = vmatprep.subr.bf16.mxu0 0
  %1986 = vmatpush1.bf16.xpose.msra.mxu0 0
  %1987 = vmatprep.subr.bf16.mxu0 0
  %1988 = vmatpush1.bf16.xpose.msra.mxu0 0
  %1989 = vmatprep.subr.bf16.mxu0 0
  %1990 = vmatpush1.bf16.xpose.msra.mxu0 0
  %1991 = vmatprep.subr.bf16.mxu0 0
  %1992 = vmatpush1.bf16.xpose.msra.mxu0 0
  %1993 = vmatprep.subr.bf16.mxu0 0
  %1994 = vmatpush1.bf16.xpose.msra.mxu0 0
  %1995 = vmatprep.subr.bf16.mxu0 0
  %1996 = vmatpush1.bf16.xpose.msra.mxu0 0
  %1997 = vmatprep.subr.bf16.mxu0 0
  %1998 = vmatpush1.bf16.xpose.msra.mxu0 0
  %1999 = vmatprep.subr.bf16.mxu0 0
  %2000 = vmatpush1.bf16.xpose.msra.mxu0 0
  %2001 = vmatprep.subr.bf16.mxu0 0
  %2002 = vmatpush1.bf16.xpose.msra.mxu0 0
  %2003 = vmatprep.subr.bf16.mxu0 0
  %2004 = vmatpush1.bf16.xpose.msra.mxu0 0
  %2005 = vmatprep.subr.bf16.mxu0 0
  %2006 = vmatpush1.bf16.xpose.msra.mxu0 0
  %2007 = vmatprep.subr.bf16.mxu0 0
  %2008 = vmatpush1.bf16.xpose.msra.mxu0 0
  %2009 = vmatprep.subr.bf16.mxu0 0
  %2010 = vmatpush1.bf16.xpose.msra.mxu0 0
  %2011 = vmatprep.subr.bf16.mxu0 0
  %2012 = vmatpush1.bf16.xpose.msra.mxu0 0
  %2013 = vmatprep.mubr.bf16.mxu0 0
  %2014 = vmatmul.mubr.bf16.gmra.mrb[0].mxu0 %v1976
  %v2015 = vpop.f32.mrb[0].mxu0
  %v2016 = vadd.f32 0.0, %v2015
  %v2017 = vpop.f32.mrb[0].mxu0
  %v2018 = vpop.f32.mrb[0].mxu0
  %v2019 = vpop.f32.mrb[0].mxu0
  %2020 = vdwg.mxu0
  %v2021 = vsel %vm172, %v1673, -inf
  %2022 = vmax.xlane.f32.xlu0 %v2021
  %v2023 = vpop.xlane.xlu0 %2022
  %v2024 = vsel %vm172, %v1722, -inf
  %2025 = vmax.xlane.f32.xlu0 %v2024
  %v2026 = vpop.xlane.xlu0 %2025
  %v2027 = vsel %vm172, %v1771, -inf
  %2028 = vmax.xlane.f32.xlu0 %v2027
  %v2029 = vpop.xlane.xlu0 %2028
  %v2030 = vsel %vm172, %v1820, -inf
  %2031 = vmax.xlane.f32.xlu0 %v2030
  %v2032 = vpop.xlane.xlu0 %2031
  %v2033 = vsel %vm172, %v1869, -inf
  %2034 = vmax.xlane.f32.xlu0 %v2033
  %v2035 = vpop.xlane.xlu0 %2034
  %v2036 = vsel %vm172, %v1918, -inf
  %2037 = vmax.xlane.f32.xlu0 %v2036
  %v2038 = vpop.xlane.xlu0 %2037
  %v2039 = vsel %vm172, %v1967, -inf
  %2040 = vmax.xlane.f32.xlu0 %v2039
  %v2041 = vpop.xlane.xlu0 %2040
  %v2042 = vsel %vm172, %v2016, -inf
  %2043 = vmax.xlane.f32.xlu0 %v2042
  %v2044 = vpop.xlane.xlu0 %2043
  %v2045 = vsub.f32 %v1673, %v2023
  %v2046 = vsub.f32 %v1722, %v2026
  %v2047 = vsub.f32 %v1771, %v2029
  %v2048 = vsub.f32 %v1820, %v2032
  %v2049 = vsub.f32 %v1869, %v2035
  %v2050 = vsub.f32 %v1918, %v2038
  %v2051 = vsub.f32 %v1967, %v2041
  %v2052 = vsub.f32 %v2016, %v2044
  %v2053 = vmul.f32 %v2045, 1.442695
  %v2054 = vpow.pop %v2053
  %v2055 = vmul.f32 %v2046, 1.442695
  %v2056 = vpow.pop %v2055
  %v2057 = vmul.f32 %v2047, 1.442695
  %v2058 = vpow.pop %v2057
  %v2059 = vmul.f32 %v2048, 1.442695
  %v2060 = vpow.pop %v2059
  %v2061 = vmul.f32 %v2049, 1.442695
  %v2062 = vpow.pop %v2061
  %v2063 = vmul.f32 %v2050, 1.442695
  %v2064 = vpow.pop %v2063
  %v2065 = vmul.f32 %v2051, 1.442695
  %v2066 = vpow.pop %v2065
  %v2067 = vmul.f32 %v2052, 1.442695
  %v2068 = vpow.pop %v2067
  %v2069 = vsel %vm172, %v2054, 0.0
  %2070 = vadd.xlane.f32.xlu0 %v2069
  %v2071 = vpop.xlane.xlu0 %2070
  %v2072 = vsel %vm172, %v2056, 0.0
  %2073 = vadd.xlane.f32.xlu0 %v2072
  %v2074 = vpop.xlane.xlu0 %2073
  %v2075 = vsel %vm172, %v2058, 0.0
  %2076 = vadd.xlane.f32.xlu0 %v2075
  %v2077 = vpop.xlane.xlu0 %2076
  %v2078 = vsel %vm172, %v2060, 0.0
  %2079 = vadd.xlane.f32.xlu0 %v2078
  %v2080 = vpop.xlane.xlu0 %2079
  %v2081 = vsel %vm172, %v2062, 0.0
  %2082 = vadd.xlane.f32.xlu0 %v2081
  %v2083 = vpop.xlane.xlu0 %2082
  %v2084 = vsel %vm172, %v2064, 0.0
  %2085 = vadd.xlane.f32.xlu0 %v2084
  %v2086 = vpop.xlane.xlu0 %2085
  %v2087 = vsel %vm172, %v2066, 0.0
  %2088 = vadd.xlane.f32.xlu0 %v2087
  %v2089 = vpop.xlane.xlu0 %2088
  %v2090 = vsel %vm172, %v2068, 0.0
  %2091 = vadd.xlane.f32.xlu0 %v2090
  %v2092 = vpop.xlane.xlu0 %2091
  %v2093 = vrcp.pop %v2071
  %v2094 = vrcp.pop %v2074
  %v2095 = vrcp.pop %v2077
  %v2096 = vrcp.pop %v2080
  %v2097 = vrcp.pop %v2083
  %v2098 = vrcp.pop %v2086
  %v2099 = vrcp.pop %v2089
  %v2100 = vrcp.pop %v2092
  %v2101 = vmul.f32 %v2054, %v2093
  %v2102 = vmul.f32 %v2056, %v2094
  %v2103 = vmul.f32 %v2058, %v2095
  %v2104 = vmul.f32 %v2060, %v2096
  %v2105 = vmul.f32 %v2062, %v2097
  %v2106 = vmul.f32 %v2064, %v2098
  %v2107 = vmul.f32 %v2066, %v2099
  %v2108 = vmul.f32 %v2068, %v2100
  %v2109 = vpack.c.bf16 %v2101, %v2101
  %v2110 = vpack.c.bf16 %v2102, %v2102
  %v2111 = vpack.c.bf16 %v2103, %v2103
  %v2112 = vpack.c.bf16 %v2104, %v2104
  %v2113 = vpack.c.bf16 %v2105, %v2105
  %v2114 = vpack.c.bf16 %v2106, %v2106
  %v2115 = vpack.c.bf16 %v2107, %v2107
  %v2116 = vpack.c.bf16 %v2108, %v2108
  %2117 = vrot.lane.b32.xlu0 %v1621, 64
  %v2118 = vpop.permute.xlu0 %2117
  %v2120 = vsel %vm172, %v2109, 0
  %v2123 = vsel %vm663, %v2118, 0
  %2125 = vmatprep.subr.bf16.mxu0 0
  %2126 = vmatpush1.bf16.msra.mxu0 %v2123
  %2127 = vmatprep.subr.bf16.mxu0 0
  %2128 = vmatpush1.bf16.msra.mxu0 0
  %2129 = vmatprep.subr.bf16.mxu0 0
  %2130 = vmatpush1.bf16.msra.mxu0 0
  %2131 = vmatprep.subr.bf16.mxu0 0
  %2132 = vmatpush1.bf16.msra.mxu0 0
  %2133 = vmatprep.subr.bf16.mxu0 0
  %2134 = vmatpush1.bf16.msra.mxu0 0
  %2135 = vmatprep.subr.bf16.mxu0 0
  %2136 = vmatpush1.bf16.msra.mxu0 0
  %2137 = vmatprep.subr.bf16.mxu0 0
  %2138 = vmatpush1.bf16.msra.mxu0 0
  %2139 = vmatprep.subr.bf16.mxu0 0
  %2140 = vmatpush1.bf16.msra.mxu0 0
  %2141 = vmatprep.subr.bf16.mxu0 0
  %2142 = vmatpush1.bf16.msra.mxu0 0
  %2143 = vmatprep.subr.bf16.mxu0 0
  %2144 = vmatpush1.bf16.msra.mxu0 0
  %2145 = vmatprep.subr.bf16.mxu0 0
  %2146 = vmatpush1.bf16.msra.mxu0 0
  %2147 = vmatprep.subr.bf16.mxu0 0
  %2148 = vmatpush1.bf16.msra.mxu0 0
  %2149 = vmatprep.subr.bf16.mxu0 0
  %2150 = vmatpush1.bf16.msra.mxu0 0
  %2151 = vmatprep.subr.bf16.mxu0 0
  %2152 = vmatpush1.bf16.msra.mxu0 0
  %2153 = vmatprep.subr.bf16.mxu0 0
  %2154 = vmatpush1.bf16.msra.mxu0 0
  %2155 = vmatprep.subr.bf16.mxu0 0
  %2156 = vmatpush1.bf16.msra.mxu0 0
  %2157 = vmatprep.mubr.bf16.mxu0 0
  %2158 = vmatmul.mubr.bf16.gmra.mrb[0].mxu0 %v2120
  %v2159 = vpop.f32.mrb[0].mxu0
  %v2160 = vadd.f32 0.0, %v2159
  %v2161 = vpop.f32.mrb[0].mxu0
  %v2162 = vpop.f32.mrb[0].mxu0
  %v2163 = vpop.f32.mrb[0].mxu0
  %2164 = vdwg.mxu0
  %2165 = vrot.lane.b32.xlu0 %v1622, 64
  %v2166 = vpop.permute.xlu0 %2165
  %v2168 = vsel %vm172, %v2110, 0
  %v2171 = vsel %vm663, %v2166, 0
  %2173 = vmatprep.subr.bf16.mxu0 0
  %2174 = vmatpush1.bf16.msra.mxu0 %v2171
  %2175 = vmatprep.subr.bf16.mxu0 0
  %2176 = vmatpush1.bf16.msra.mxu0 0
  %2177 = vmatprep.subr.bf16.mxu0 0
  %2178 = vmatpush1.bf16.msra.mxu0 0
  %2179 = vmatprep.subr.bf16.mxu0 0
  %2180 = vmatpush1.bf16.msra.mxu0 0
  %2181 = vmatprep.subr.bf16.mxu0 0
  %2182 = vmatpush1.bf16.msra.mxu0 0
  %2183 = vmatprep.subr.bf16.mxu0 0
  %2184 = vmatpush1.bf16.msra.mxu0 0
  %2185 = vmatprep.subr.bf16.mxu0 0
  %2186 = vmatpush1.bf16.msra.mxu0 0
  %2187 = vmatprep.subr.bf16.mxu0 0
  %2188 = vmatpush1.bf16.msra.mxu0 0
  %2189 = vmatprep.subr.bf16.mxu0 0
  %2190 = vmatpush1.bf16.msra.mxu0 0
  %2191 = vmatprep.subr.bf16.mxu0 0
  %2192 = vmatpush1.bf16.msra.mxu0 0
  %2193 = vmatprep.subr.bf16.mxu0 0
  %2194 = vmatpush1.bf16.msra.mxu0 0
  %2195 = vmatprep.subr.bf16.mxu0 0
  %2196 = vmatpush1.bf16.msra.mxu0 0
  %2197 = vmatprep.subr.bf16.mxu0 0
  %2198 = vmatpush1.bf16.msra.mxu0 0
  %2199 = vmatprep.subr.bf16.mxu0 0
  %2200 = vmatpush1.bf16.msra.mxu0 0
  %2201 = vmatprep.subr.bf16.mxu0 0
  %2202 = vmatpush1.bf16.msra.mxu0 0
  %2203 = vmatprep.subr.bf16.mxu0 0
  %2204 = vmatpush1.bf16.msra.mxu0 0
  %2205 = vmatprep.mubr.bf16.mxu0 0
  %2206 = vmatmul.mubr.bf16.gmra.mrb[0].mxu0 %v2168
  %v2207 = vpop.f32.mrb[0].mxu0
  %v2208 = vadd.f32 0.0, %v2207
  %v2209 = vpop.f32.mrb[0].mxu0
  %v2210 = vpop.f32.mrb[0].mxu0
  %v2211 = vpop.f32.mrb[0].mxu0
  %2212 = vdwg.mxu0
  %2213 = vrot.lane.b32.xlu0 %v1623, 64
  %v2214 = vpop.permute.xlu0 %2213
  %v2216 = vsel %vm172, %v2111, 0
  %v2219 = vsel %vm663, %v2214, 0
  %2221 = vmatprep.subr.bf16.mxu0 0
  %2222 = vmatpush1.bf16.msra.mxu0 %v2219
  %2223 = vmatprep.subr.bf16.mxu0 0
  %2224 = vmatpush1.bf16.msra.mxu0 0
  %2225 = vmatprep.subr.bf16.mxu0 0
  %2226 = vmatpush1.bf16.msra.mxu0 0
  %2227 = vmatprep.subr.bf16.mxu0 0
  %2228 = vmatpush1.bf16.msra.mxu0 0
  %2229 = vmatprep.subr.bf16.mxu0 0
  %2230 = vmatpush1.bf16.msra.mxu0 0
  %2231 = vmatprep.subr.bf16.mxu0 0
  %2232 = vmatpush1.bf16.msra.mxu0 0
  %2233 = vmatprep.subr.bf16.mxu0 0
  %2234 = vmatpush1.bf16.msra.mxu0 0
  %2235 = vmatprep.subr.bf16.mxu0 0
  %2236 = vmatpush1.bf16.msra.mxu0 0
  %2237 = vmatprep.subr.bf16.mxu0 0
  %2238 = vmatpush1.bf16.msra.mxu0 0
  %2239 = vmatprep.subr.bf16.mxu0 0
  %2240 = vmatpush1.bf16.msra.mxu0 0
  %2241 = vmatprep.subr.bf16.mxu0 0
  %2242 = vmatpush1.bf16.msra.mxu0 0
  %2243 = vmatprep.subr.bf16.mxu0 0
  %2244 = vmatpush1.bf16.msra.mxu0 0
  %2245 = vmatprep.subr.bf16.mxu0 0
  %2246 = vmatpush1.bf16.msra.mxu0 0
  %2247 = vmatprep.subr.bf16.mxu0 0
  %2248 = vmatpush1.bf16.msra.mxu0 0
  %2249 = vmatprep.subr.bf16.mxu0 0
  %2250 = vmatpush1.bf16.msra.mxu0 0
  %2251 = vmatprep.subr.bf16.mxu0 0
  %2252 = vmatpush1.bf16.msra.mxu0 0
  %2253 = vmatprep.mubr.bf16.mxu0 0
  %2254 = vmatmul.mubr.bf16.gmra.mrb[0].mxu0 %v2216
  %v2255 = vpop.f32.mrb[0].mxu0
  %v2256 = vadd.f32 0.0, %v2255
  %v2257 = vpop.f32.mrb[0].mxu0
  %v2258 = vpop.f32.mrb[0].mxu0
  %v2259 = vpop.f32.mrb[0].mxu0
  %2260 = vdwg.mxu0
  %2261 = vrot.lane.b32.xlu0 %v1624, 64
  %v2262 = vpop.permute.xlu0 %2261
  %v2264 = vsel %vm172, %v2112, 0
  %v2267 = vsel %vm663, %v2262, 0
  %2269 = vmatprep.subr.bf16.mxu0 0
  %2270 = vmatpush1.bf16.msra.mxu0 %v2267
  %2271 = vmatprep.subr.bf16.mxu0 0
  %2272 = vmatpush1.bf16.msra.mxu0 0
  %2273 = vmatprep.subr.bf16.mxu0 0
  %2274 = vmatpush1.bf16.msra.mxu0 0
  %2275 = vmatprep.subr.bf16.mxu0 0
  %2276 = vmatpush1.bf16.msra.mxu0 0
  %2277 = vmatprep.subr.bf16.mxu0 0
  %2278 = vmatpush1.bf16.msra.mxu0 0
  %2279 = vmatprep.subr.bf16.mxu0 0
  %2280 = vmatpush1.bf16.msra.mxu0 0
  %2281 = vmatprep.subr.bf16.mxu0 0
  %2282 = vmatpush1.bf16.msra.mxu0 0
  %2283 = vmatprep.subr.bf16.mxu0 0
  %2284 = vmatpush1.bf16.msra.mxu0 0
  %2285 = vmatprep.subr.bf16.mxu0 0
  %2286 = vmatpush1.bf16.msra.mxu0 0
  %2287 = vmatprep.subr.bf16.mxu0 0
  %2288 = vmatpush1.bf16.msra.mxu0 0
  %2289 = vmatprep.subr.bf16.mxu0 0
  %2290 = vmatpush1.bf16.msra.mxu0 0
  %2291 = vmatprep.subr.bf16.mxu0 0
  %2292 = vmatpush1.bf16.msra.mxu0 0
  %2293 = vmatprep.subr.bf16.mxu0 0
  %2294 = vmatpush1.bf16.msra.mxu0 0
  %2295 = vmatprep.subr.bf16.mxu0 0
  %2296 = vmatpush1.bf16.msra.mxu0 0
  %2297 = vmatprep.subr.bf16.mxu0 0
  %2298 = vmatpush1.bf16.msra.mxu0 0
  %2299 = vmatprep.subr.bf16.mxu0 0
  %2300 = vmatpush1.bf16.msra.mxu0 0
  %2301 = vmatprep.mubr.bf16.mxu0 0
  %2302 = vmatmul.mubr.bf16.gmra.mrb[0].mxu0 %v2264
  %v2303 = vpop.f32.mrb[0].mxu0
  %v2304 = vadd.f32 0.0, %v2303
  %v2305 = vpop.f32.mrb[0].mxu0
  %v2306 = vpop.f32.mrb[0].mxu0
  %v2307 = vpop.f32.mrb[0].mxu0
  %2308 = vdwg.mxu0
  %2309 = vrot.lane.b32.xlu0 %v1625, 64
  %v2310 = vpop.permute.xlu0 %2309
  %v2312 = vsel %vm172, %v2113, 0
  %v2315 = vsel %vm663, %v2310, 0
  %2317 = vmatprep.subr.bf16.mxu0 0
  %2318 = vmatpush1.bf16.msra.mxu0 %v2315
  %2319 = vmatprep.subr.bf16.mxu0 0
  %2320 = vmatpush1.bf16.msra.mxu0 0
  %2321 = vmatprep.subr.bf16.mxu0 0
  %2322 = vmatpush1.bf16.msra.mxu0 0
  %2323 = vmatprep.subr.bf16.mxu0 0
  %2324 = vmatpush1.bf16.msra.mxu0 0
  %2325 = vmatprep.subr.bf16.mxu0 0
  %2326 = vmatpush1.bf16.msra.mxu0 0
  %2327 = vmatprep.subr.bf16.mxu0 0
  %2328 = vmatpush1.bf16.msra.mxu0 0
  %2329 = vmatprep.subr.bf16.mxu0 0
  %2330 = vmatpush1.bf16.msra.mxu0 0
  %2331 = vmatprep.subr.bf16.mxu0 0
  %2332 = vmatpush1.bf16.msra.mxu0 0
  %2333 = vmatprep.subr.bf16.mxu0 0
  %2334 = vmatpush1.bf16.msra.mxu0 0
  %2335 = vmatprep.subr.bf16.mxu0 0
  %2336 = vmatpush1.bf16.msra.mxu0 0
  %2337 = vmatprep.subr.bf16.mxu0 0
  %2338 = vmatpush1.bf16.msra.mxu0 0
  %2339 = vmatprep.subr.bf16.mxu0 0
  %2340 = vmatpush1.bf16.msra.mxu0 0
  %2341 = vmatprep.subr.bf16.mxu0 0
  %2342 = vmatpush1.bf16.msra.mxu0 0
  %2343 = vmatprep.subr.bf16.mxu0 0
  %2344 = vmatpush1.bf16.msra.mxu0 0
  %2345 = vmatprep.subr.bf16.mxu0 0
  %2346 = vmatpush1.bf16.msra.mxu0 0
  %2347 = vmatprep.subr.bf16.mxu0 0
  %2348 = vmatpush1.bf16.msra.mxu0 0
  %2349 = vmatprep.mubr.bf16.mxu0 0
  %2350 = vmatmul.mubr.bf16.gmra.mrb[0].mxu0 %v2312
  %v2351 = vpop.f32.mrb[0].mxu0
  %v2352 = vadd.f32 0.0, %v2351
  %v2353 = vpop.f32.mrb[0].mxu0
  %v2354 = vpop.f32.mrb[0].mxu0
  %v2355 = vpop.f32.mrb[0].mxu0
  %2356 = vdwg.mxu0
  %2357 = vrot.lane.b32.xlu0 %v1626, 64
  %v2358 = vpop.permute.xlu0 %2357
  %v2360 = vsel %vm172, %v2114, 0
  %v2363 = vsel %vm663, %v2358, 0
  %2365 = vmatprep.subr.bf16.mxu0 0
  %2366 = vmatpush1.bf16.msra.mxu0 %v2363
  %2367 = vmatprep.subr.bf16.mxu0 0
  %2368 = vmatpush1.bf16.msra.mxu0 0
  %2369 = vmatprep.subr.bf16.mxu0 0
  %2370 = vmatpush1.bf16.msra.mxu0 0
  %2371 = vmatprep.subr.bf16.mxu0 0
  %2372 = vmatpush1.bf16.msra.mxu0 0
  %2373 = vmatprep.subr.bf16.mxu0 0
  %2374 = vmatpush1.bf16.msra.mxu0 0
  %2375 = vmatprep.subr.bf16.mxu0 0
  %2376 = vmatpush1.bf16.msra.mxu0 0
  %2377 = vmatprep.subr.bf16.mxu0 0
  %2378 = vmatpush1.bf16.msra.mxu0 0
  %2379 = vmatprep.subr.bf16.mxu0 0
  %2380 = vmatpush1.bf16.msra.mxu0 0
  %2381 = vmatprep.subr.bf16.mxu0 0
  %2382 = vmatpush1.bf16.msra.mxu0 0
  %2383 = vmatprep.subr.bf16.mxu0 0
  %2384 = vmatpush1.bf16.msra.mxu0 0
  %2385 = vmatprep.subr.bf16.mxu0 0
  %2386 = vmatpush1.bf16.msra.mxu0 0
  %2387 = vmatprep.subr.bf16.mxu0 0
  %2388 = vmatpush1.bf16.msra.mxu0 0
  %2389 = vmatprep.subr.bf16.mxu0 0
  %2390 = vmatpush1.bf16.msra.mxu0 0
  %2391 = vmatprep.subr.bf16.mxu0 0
  %2392 = vmatpush1.bf16.msra.mxu0 0
  %2393 = vmatprep.subr.bf16.mxu0 0
  %2394 = vmatpush1.bf16.msra.mxu0 0
  %2395 = vmatprep.subr.bf16.mxu0 0
  %2396 = vmatpush1.bf16.msra.mxu0 0
  %2397 = vmatprep.mubr.bf16.mxu0 0
  %2398 = vmatmul.mubr.bf16.gmra.mrb[0].mxu0 %v2360
  %v2399 = vpop.f32.mrb[0].mxu0
  %v2400 = vadd.f32 0.0, %v2399
  %v2401 = vpop.f32.mrb[0].mxu0
  %v2402 = vpop.f32.mrb[0].mxu0
  %v2403 = vpop.f32.mrb[0].mxu0
  %2404 = vdwg.mxu0
  %2405 = vrot.lane.b32.xlu0 %v1627, 64
  %v2406 = vpop.permute.xlu0 %2405
  %v2408 = vsel %vm172, %v2115, 0
  %v2411 = vsel %vm663, %v2406, 0
  %2413 = vmatprep.subr.bf16.mxu0 0
  %2414 = vmatpush1.bf16.msra.mxu0 %v2411
  %2415 = vmatprep.subr.bf16.mxu0 0
  %2416 = vmatpush1.bf16.msra.mxu0 0
  %2417 = vmatprep.subr.bf16.mxu0 0
  %2418 = vmatpush1.bf16.msra.mxu0 0
  %2419 = vmatprep.subr.bf16.mxu0 0
  %2420 = vmatpush1.bf16.msra.mxu0 0
  %2421 = vmatprep.subr.bf16.mxu0 0
  %2422 = vmatpush1.bf16.msra.mxu0 0
  %2423 = vmatprep.subr.bf16.mxu0 0
  %2424 = vmatpush1.bf16.msra.mxu0 0
  %2425 = vmatprep.subr.bf16.mxu0 0
  %2426 = vmatpush1.bf16.msra.mxu0 0
  %2427 = vmatprep.subr.bf16.mxu0 0
  %2428 = vmatpush1.bf16.msra.mxu0 0
  %2429 = vmatprep.subr.bf16.mxu0 0
  %2430 = vmatpush1.bf16.msra.mxu0 0
  %2431 = vmatprep.subr.bf16.mxu0 0
  %2432 = vmatpush1.bf16.msra.mxu0 0
  %2433 = vmatprep.subr.bf16.mxu0 0
  %2434 = vmatpush1.bf16.msra.mxu0 0
  %2435 = vmatprep.subr.bf16.mxu0 0
  %2436 = vmatpush1.bf16.msra.mxu0 0
  %2437 = vmatprep.subr.bf16.mxu0 0
  %2438 = vmatpush1.bf16.msra.mxu0 0
  %2439 = vmatprep.subr.bf16.mxu0 0
  %2440 = vmatpush1.bf16.msra.mxu0 0
  %2441 = vmatprep.subr.bf16.mxu0 0
  %2442 = vmatpush1.bf16.msra.mxu0 0
  %2443 = vmatprep.subr.bf16.mxu0 0
  %2444 = vmatpush1.bf16.msra.mxu0 0
  %2445 = vmatprep.mubr.bf16.mxu0 0
  %2446 = vmatmul.mubr.bf16.gmra.mrb[0].mxu0 %v2408
  %v2447 = vpop.f32.mrb[0].mxu0
  %v2448 = vadd.f32 0.0, %v2447
  %v2449 = vpop.f32.mrb[0].mxu0
  %v2450 = vpop.f32.mrb[0].mxu0
  %v2451 = vpop.f32.mrb[0].mxu0
  %2452 = vdwg.mxu0
  %2453 = vrot.lane.b32.xlu0 %v1628, 64
  %v2454 = vpop.permute.xlu0 %2453
  %v2456 = vsel %vm172, %v2116, 0
  %v2459 = vsel %vm663, %v2454, 0
  %2461 = vmatprep.subr.bf16.mxu0 0
  %2462 = vmatpush1.bf16.msra.mxu0 %v2459
  %2463 = vmatprep.subr.bf16.mxu0 0
  %2464 = vmatpush1.bf16.msra.mxu0 0
  %2465 = vmatprep.subr.bf16.mxu0 0
  %2466 = vmatpush1.bf16.msra.mxu0 0
  %2467 = vmatprep.subr.bf16.mxu0 0
  %2468 = vmatpush1.bf16.msra.mxu0 0
  %2469 = vmatprep.subr.bf16.mxu0 0
  %2470 = vmatpush1.bf16.msra.mxu0 0
  %2471 = vmatprep.subr.bf16.mxu0 0
  %2472 = vmatpush1.bf16.msra.mxu0 0
  %2473 = vmatprep.subr.bf16.mxu0 0
  %2474 = vmatpush1.bf16.msra.mxu0 0
  %2475 = vmatprep.subr.bf16.mxu0 0
  %2476 = vmatpush1.bf16.msra.mxu0 0
  %2477 = vmatprep.subr.bf16.mxu0 0
  %2478 = vmatpush1.bf16.msra.mxu0 0
  %2479 = vmatprep.subr.bf16.mxu0 0
  %2480 = vmatpush1.bf16.msra.mxu0 0
  %2481 = vmatprep.subr.bf16.mxu0 0
  %2482 = vmatpush1.bf16.msra.mxu0 0
  %2483 = vmatprep.subr.bf16.mxu0 0
  %2484 = vmatpush1.bf16.msra.mxu0 0
  %2485 = vmatprep.subr.bf16.mxu0 0
  %2486 = vmatpush1.bf16.msra.mxu0 0
  %2487 = vmatprep.subr.bf16.mxu0 0
  %2488 = vmatpush1.bf16.msra.mxu0 0
  %2489 = vmatprep.subr.bf16.mxu0 0
  %2490 = vmatpush1.bf16.msra.mxu0 0
  %2491 = vmatprep.subr.bf16.mxu0 0
  %2492 = vmatpush1.bf16.msra.mxu0 0
  %2493 = vmatprep.mubr.bf16.mxu0 0
  %2494 = vmatmul.mubr.bf16.gmra.mrb[0].mxu0 %v2456
  %v2495 = vpop.f32.mrb[0].mxu0
  %v2496 = vadd.f32 0.0, %v2495
  %v2497 = vpop.f32.mrb[0].mxu0
  %v2498 = vpop.f32.mrb[0].mxu0
  %v2499 = vpop.f32.mrb[0].mxu0
  %2500 = vdwg.mxu0
  %v2501 = vpack.c.bf16 %v2208, %v2160
  %v2502 = vpack.c.bf16 %v2304, %v2256
  %v2503 = vpack.c.bf16 %v2400, %v2352
  %v2504 = vpack.c.bf16 %v2496, %v2448
  %s2505 = scalar_lea.vmem %s3, 16
  %v2506 = vld [vmem:[%s2505] sm:$0xf]
  %v2507 = vld [vmem:[%s2505 + $0x4] sm:$0xf]
  %v2508 = vld [vmem:[%s2505 + $0x8] sm:$0xf]
  %v2509 = vld [vmem:[%s2505 + $0xc] sm:$0xf]
  %v2511 = vsel %vm172, %v2501, 0
  %v2514 = vsel %vm663, %v2506, 0
  %2516 = vmatprep.subr.bf16.mxu0 0
  %2517 = vmatpush1.bf16.msra.mxu0 %v2514
  %2518 = vmatprep.subr.bf16.mxu0 0
  %2519 = vmatpush1.bf16.msra.mxu0 0
  %2520 = vmatprep.subr.bf16.mxu0 0
  %2521 = vmatpush1.bf16.msra.mxu0 0
  %2522 = vmatprep.subr.bf16.mxu0 0
  %2523 = vmatpush1.bf16.msra.mxu0 0
  %2524 = vmatprep.subr.bf16.mxu0 0
  %2525 = vmatpush1.bf16.msra.mxu0 0
  %2526 = vmatprep.subr.bf16.mxu0 0
  %2527 = vmatpush1.bf16.msra.mxu0 0
  %2528 = vmatprep.subr.bf16.mxu0 0
  %2529 = vmatpush1.bf16.msra.mxu0 0
  %2530 = vmatprep.subr.bf16.mxu0 0
  %2531 = vmatpush1.bf16.msra.mxu0 0
  %2532 = vmatprep.subr.bf16.mxu0 0
  %2533 = vmatpush1.bf16.msra.mxu0 0
  %2534 = vmatprep.subr.bf16.mxu0 0
  %2535 = vmatpush1.bf16.msra.mxu0 0
  %2536 = vmatprep.subr.bf16.mxu0 0
  %2537 = vmatpush1.bf16.msra.mxu0 0
  %2538 = vmatprep.subr.bf16.mxu0 0
  %2539 = vmatpush1.bf16.msra.mxu0 0
  %2540 = vmatprep.subr.bf16.mxu0 0
  %2541 = vmatpush1.bf16.msra.mxu0 0
  %2542 = vmatprep.subr.bf16.mxu0 0
  %2543 = vmatpush1.bf16.msra.mxu0 0
  %2544 = vmatprep.subr.bf16.mxu0 0
  %2545 = vmatpush1.bf16.msra.mxu0 0
  %2546 = vmatprep.subr.bf16.mxu0 0
  %2547 = vmatpush1.bf16.msra.mxu0 0
  %2548 = vmatprep.mubr.bf16.mxu0 0
  %2549 = vmatmul.mubr.bf16.gmra.mrb[0].mxu0 %v2511
  %v2550 = vpop.f32.mrb[0].mxu0
  %v2551 = vadd.f32 0.0, %v2550
  %v2552 = vpop.f32.mrb[0].mxu0
  %v2553 = vpop.f32.mrb[0].mxu0
  %v2554 = vadd.f32 0.0, %v2553
  %v2555 = vpop.f32.mrb[0].mxu0
  %2556 = vdwg.mxu0
  %v2558 = vsel %vm172, %v2502, 0
  %v2561 = vsel %vm663, %v2507, 0
  %2563 = vmatprep.subr.bf16.mxu0 0
  %2564 = vmatpush1.bf16.msra.mxu0 %v2561
  %2565 = vmatprep.subr.bf16.mxu0 0
  %2566 = vmatpush1.bf16.msra.mxu0 0
  %2567 = vmatprep.subr.bf16.mxu0 0
  %2568 = vmatpush1.bf16.msra.mxu0 0
  %2569 = vmatprep.subr.bf16.mxu0 0
  %2570 = vmatpush1.bf16.msra.mxu0 0
  %2571 = vmatprep.subr.bf16.mxu0 0
  %2572 = vmatpush1.bf16.msra.mxu0 0
  %2573 = vmatprep.subr.bf16.mxu0 0
  %2574 = vmatpush1.bf16.msra.mxu0 0
  %2575 = vmatprep.subr.bf16.mxu0 0
  %2576 = vmatpush1.bf16.msra.mxu0 0
  %2577 = vmatprep.subr.bf16.mxu0 0
  %2578 = vmatpush1.bf16.msra.mxu0 0
  %2579 = vmatprep.subr.bf16.mxu0 0
  %2580 = vmatpush1.bf16.msra.mxu0 0
  %2581 = vmatprep.subr.bf16.mxu0 0
  %2582 = vmatpush1.bf16.msra.mxu0 0
  %2583 = vmatprep.subr.bf16.mxu0 0
  %2584 = vmatpush1.bf16.msra.mxu0 0
  %2585 = vmatprep.subr.bf16.mxu0 0
  %2586 = vmatpush1.bf16.msra.mxu0 0
  %2587 = vmatprep.subr.bf16.mxu0 0
  %2588 = vmatpush1.bf16.msra.mxu0 0
  %2589 = vmatprep.subr.bf16.mxu0 0
  %2590 = vmatpush1.bf16.msra.mxu0 0
  %2591 = vmatprep.subr.bf16.mxu0 0
  %2592 = vmatpush1.bf16.msra.mxu0 0
  %2593 = vmatprep.subr.bf16.mxu0 0
  %2594 = vmatpush1.bf16.msra.mxu0 0
  %2595 = vmatprep.mubr.bf16.mxu0 0
  %2596 = vmatmul.mubr.bf16.gmra.mrb[0].mxu0 %v2558
  %v2597 = vpop.f32.mrb[0].mxu0
  %v2598 = vadd.f32 0.0, %v2597
  %v2599 = vpop.f32.mrb[0].mxu0
  %v2600 = vpop.f32.mrb[0].mxu0
  %v2601 = vadd.f32 0.0, %v2600
  %v2602 = vpop.f32.mrb[0].mxu0
  %2603 = vdwg.mxu0
  %v2605 = vsel %vm172, %v2503, 0
  %v2608 = vsel %vm663, %v2508, 0
  %2610 = vmatprep.subr.bf16.mxu0 0
  %2611 = vmatpush1.bf16.msra.mxu0 %v2608
  %2612 = vmatprep.subr.bf16.mxu0 0
  %2613 = vmatpush1.bf16.msra.mxu0 0
  %2614 = vmatprep.subr.bf16.mxu0 0
  %2615 = vmatpush1.bf16.msra.mxu0 0
  %2616 = vmatprep.subr.bf16.mxu0 0
  %2617 = vmatpush1.bf16.msra.mxu0 0
  %2618 = vmatprep.subr.bf16.mxu0 0
  %2619 = vmatpush1.bf16.msra.mxu0 0
  %2620 = vmatprep.subr.bf16.mxu0 0
  %2621 = vmatpush1.bf16.msra.mxu0 0
  %2622 = vmatprep.subr.bf16.mxu0 0
  %2623 = vmatpush1.bf16.msra.mxu0 0
  %2624 = vmatprep.subr.bf16.mxu0 0
  %2625 = vmatpush1.bf16.msra.mxu0 0
  %2626 = vmatprep.subr.bf16.mxu0 0
  %2627 = vmatpush1.bf16.msra.mxu0 0
  %2628 = vmatprep.subr.bf16.mxu0 0
  %2629 = vmatpush1.bf16.msra.mxu0 0
  %2630 = vmatprep.subr.bf16.mxu0 0
  %2631 = vmatpush1.bf16.msra.mxu0 0
  %2632 = vmatprep.subr.bf16.mxu0 0
  %2633 = vmatpush1.bf16.msra.mxu0 0
  %2634 = vmatprep.subr.bf16.mxu0 0
  %2635 = vmatpush1.bf16.msra.mxu0 0
  %2636 = vmatprep.subr.bf16.mxu0 0
  %2637 = vmatpush1.bf16.msra.mxu0 0
  %2638 = vmatprep.subr.bf16.mxu0 0
  %2639 = vmatpush1.bf16.msra.mxu0 0
  %2640 = vmatprep.subr.bf16.mxu0 0
  %2641 = vmatpush1.bf16.msra.mxu0 0
  %2642 = vmatprep.mubr.bf16.mxu0 0
  %2643 = vmatmul.mubr.bf16.gmra.mrb[0].mxu0 %v2605
  %v2644 = vpop.f32.mrb[0].mxu0
  %v2645 = vadd.f32 0.0, %v2644
  %v2646 = vpop.f32.mrb[0].mxu0
  %v2647 = vpop.f32.mrb[0].mxu0
  %v2648 = vadd.f32 0.0, %v2647
  %v2649 = vpop.f32.mrb[0].mxu0
  %2650 = vdwg.mxu0
  %v2652 = vsel %vm172, %v2504, 0
  %v2655 = vsel %vm663, %v2509, 0
  %2657 = vmatprep.subr.bf16.mxu0 0
  %2658 = vmatpush1.bf16.msra.mxu0 %v2655
  %2659 = vmatprep.subr.bf16.mxu0 0
  %2660 = vmatpush1.bf16.msra.mxu0 0
  %2661 = vmatprep.subr.bf16.mxu0 0
  %2662 = vmatpush1.bf16.msra.mxu0 0
  %2663 = vmatprep.subr.bf16.mxu0 0
  %2664 = vmatpush1.bf16.msra.mxu0 0
  %2665 = vmatprep.subr.bf16.mxu0 0
  %2666 = vmatpush1.bf16.msra.mxu0 0
  %2667 = vmatprep.subr.bf16.mxu0 0
  %2668 = vmatpush1.bf16.msra.mxu0 0
  %2669 = vmatprep.subr.bf16.mxu0 0
  %2670 = vmatpush1.bf16.msra.mxu0 0
  %2671 = vmatprep.subr.bf16.mxu0 0
  %2672 = vmatpush1.bf16.msra.mxu0 0
  %2673 = vmatprep.subr.bf16.mxu0 0
  %2674 = vmatpush1.bf16.msra.mxu0 0
  %2675 = vmatprep.subr.bf16.mxu0 0
  %2676 = vmatpush1.bf16.msra.mxu0 0
  %2677 = vmatprep.subr.bf16.mxu0 0
  %2678 = vmatpush1.bf16.msra.mxu0 0
  %2679 = vmatprep.subr.bf16.mxu0 0
  %2680 = vmatpush1.bf16.msra.mxu0 0
  %2681 = vmatprep.subr.bf16.mxu0 0
  %2682 = vmatpush1.bf16.msra.mxu0 0
  %2683 = vmatprep.subr.bf16.mxu0 0
  %2684 = vmatpush1.bf16.msra.mxu0 0
  %2685 = vmatprep.subr.bf16.mxu0 0
  %2686 = vmatpush1.bf16.msra.mxu0 0
  %2687 = vmatprep.subr.bf16.mxu0 0
  %2688 = vmatpush1.bf16.msra.mxu0 0
  %2689 = vmatprep.mubr.bf16.mxu0 0
  %2690 = vmatmul.mubr.bf16.gmra.mrb[0].mxu0 %v2652
  %v2691 = vpop.f32.mrb[0].mxu0
  %v2692 = vadd.f32 0.0, %v2691
  %v2693 = vpop.f32.mrb[0].mxu0
  %v2694 = vpop.f32.mrb[0].mxu0
  %v2695 = vadd.f32 0.0, %v2694
  %v2696 = vpop.f32.mrb[0].mxu0
  %2697 = vdwg.mxu0
  %v2698 = vsel %vm33, %v2551, 0.0
  %v2699 = vsel %vm33, %v2598, 0.0
  %v2700 = vadd.f32 %v2698, %v2699
  %v2701 = vsel %vm33, %v2645, 0.0
  %v2702 = vadd.f32 %v2700, %v2701
  %v2703 = vsel %vm33, %v2692, 0.0
  %v2704 = vadd.f32 %v2702, %v2703
  %v2705 = vsel %vm33, %v2554, 0.0
  %v2706 = vsel %vm33, %v2601, 0.0
  %v2707 = vadd.f32 %v2705, %v2706
  %v2708 = vsel %vm33, %v2648, 0.0
  %v2709 = vadd.f32 %v2707, %v2708
  %v2710 = vsel %vm33, %v2695, 0.0
  %v2711 = vadd.f32 %v2709, %v2710
  %v2712 = vadd.f32 %v1489, %v2704
  %v2713 = vadd.f32 %v1490, %v2711
  %v2714 = vlaneseq
  %v2715 = vshrl.u32 %v2714, 7
  %v2716 = vsub.s32 2, %v2715
  %v2717 = vrot.slane %v1492, %v2716
  %v2718 = vadd.f32 %v2712, %v2717
  %v2719 = vadd.f32 %v2713, %v2717
  %v2720 = vsel %vm33, %v2718, 0.0
  %2721 = vadd.xlane.f32.xlu0 %v2720
  %v2722 = vpop.xlane.xlu0 %2721
  %v2723 = vsel %vm33, %v2719, 0.0
  %2724 = vadd.xlane.f32.xlu0 %v2723
  %v2725 = vpop.xlane.xlu0 %2724
  %v2726 = vmul.f32 %v2722, %v40
  %v2727 = vmul.f32 %v2725, %v40
  %v2728 = vsub.f32 %v2718, %v2726
  %v2729 = vsub.f32 %v2719, %v2727
  %v2730 = vmul.f32 %v2728, %v2728
  %v2731 = vmul.f32 %v2729, %v2729
  %v2732 = vsel %vm33, %v2730, 0.0
  %2733 = vadd.xlane.f32.xlu0 %v2732
  %v2734 = vpop.xlane.xlu0 %2733
  %v2735 = vsel %vm33, %v2731, 0.0
  %2736 = vadd.xlane.f32.xlu0 %v2735
  %v2737 = vpop.xlane.xlu0 %2736
  %v2738 = vmul.f32 %v2734, %v40
  %v2739 = vmul.f32 %v2737, %v40
  %v2740 = vadd.f32 %v2738, 1e-05
  %v2741 = vadd.f32 %v2739, 1e-05
  %v2742 = vrsqrt.pop %v2740
  %v2743 = vrsqrt.pop %v2741
  %v2744 = vmul.f32 %v2728, %v2742
  %v2745 = vmul.f32 %v2729, %v2743
  %v2746 = vlaneseq
  %v2747 = vshrl.u32 %v2746, 7
  %v2748 = vsub.s32 3, %v2747
  %v2749 = vrot.slane %v1492, %v2748
  %v2750 = vmul.f32 %v2744, %v2749
  %v2751 = vmul.f32 %v2745, %v2749
  %v2752 = vlaneseq
  %v2753 = vshrl.u32 %v2752, 7
  %v2754 = vsub.s32 4, %v2753
  %v2755 = vrot.slane %v1492, %v2754
  %v2756 = vadd.f32 %v2750, %v2755
  %v2757 = vadd.f32 %v2751, %v2755
  %v2758 = vpack.c.bf16 %v2757, %v2756
  %s2759 = scalar_lea.vmem %s4, 16
  %v2760 = vld [vmem:[%s2759] sm:$0xf]
  %v2761 = vld [vmem:[%s2759 + $0x4] sm:$0xf]
  %v2762 = vld [vmem:[%s2759 + $0x8] sm:$0xf]
  %v2763 = vld [vmem:[%s2759 + $0xc] sm:$0xf]
  %s2764 = scalar_lea.vmem %s5, 1
  %v2765 = vld [vmem:[%s2764] sm:$0x1]
  %v2767 = vlaneseq
  %v2768 = vshrl.u32 %v2767, 7
  %v2769 = vsub.s32 0, %v2768
  %v2770 = vrot.slane %v2765, %v2769
  %v2776 = vunpack.c.l.b16 %v2760
  %v2777 = vunpack.c.l.b16 %v2761
  %v2778 = vunpack.c.l.b16 %v2762
  %v2779 = vunpack.c.l.b16 %v2763
  %v2780 = vpack.c.b16 %v2777, %v2776
  %v2781 = vpack.c.b16 %v2779, %v2778
  %v2785 = vsel %vm33, %v2758, 0
  %2787 = vmatprep.subr.bf16.mxu0 0
  %2788 = vmatpush1.bf16.msra.mxu0 %v2780
  %2789 = vmatprep.subr.bf16.mxu0 0
  %2790 = vmatpush1.bf16.msra.mxu0 %v2781
  %2791 = vmatprep.subr.bf16.mxu0 0
  %2792 = vmatpush1.bf16.msra.mxu0 0
  %2793 = vmatprep.subr.bf16.mxu0 0
  %2794 = vmatpush1.bf16.msra.mxu0 0
  %2795 = vmatprep.subr.bf16.mxu0 0
  %2796 = vmatpush1.bf16.msra.mxu0 0
  %2797 = vmatprep.subr.bf16.mxu0 0
  %2798 = vmatpush1.bf16.msra.mxu0 0
  %2799 = vmatprep.subr.bf16.mxu0 0
  %2800 = vmatpush1.bf16.msra.mxu0 0
  %2801 = vmatprep.subr.bf16.mxu0 0
  %2802 = vmatpush1.bf16.msra.mxu0 0
  %2803 = vmatprep.subr.bf16.mxu0 0
  %2804 = vmatpush1.bf16.msra.mxu0 0
  %2805 = vmatprep.subr.bf16.mxu0 0
  %2806 = vmatpush1.bf16.msra.mxu0 0
  %2807 = vmatprep.subr.bf16.mxu0 0
  %2808 = vmatpush1.bf16.msra.mxu0 0
  %2809 = vmatprep.subr.bf16.mxu0 0
  %2810 = vmatpush1.bf16.msra.mxu0 0
  %2811 = vmatprep.subr.bf16.mxu0 0
  %2812 = vmatpush1.bf16.msra.mxu0 0
  %2813 = vmatprep.subr.bf16.mxu0 0
  %2814 = vmatpush1.bf16.msra.mxu0 0
  %2815 = vmatprep.subr.bf16.mxu0 0
  %2816 = vmatpush1.bf16.msra.mxu0 0
  %2817 = vmatprep.subr.bf16.mxu0 0
  %2818 = vmatpush1.bf16.msra.mxu0 0
  %2819 = vmatprep.mubr.bf16.mxu0 0
  %2820 = vmatmul.mubr.bf16.gmra.mrb[0].mxu0 %v2785
  %v2821 = vpop.f32.mrb[0].mxu0
  %v2822 = vadd.f32 %v2770, %v2821
  %v2823 = vpop.f32.mrb[0].mxu0
  %v2824 = vpop.f32.mrb[0].mxu0
  %v2825 = vadd.f32 %v2770, %v2824
  %v2826 = vpop.f32.mrb[0].mxu0
  %2827 = vdwg.mxu0
  %v2828 = vmul.f32 %v2822, 0.851
  %v2829 = vmul.f32 %v2825, 0.851
  %v2830 = vtanh.pop %v2828
  %v2831 = vtanh.pop %v2829
  %v2832 = vmul.f32 %v2830, 0.5
  %v2833 = vmul.f32 %v2831, 0.5
  %v2834 = vadd.f32 %v2832, 0.5
  %v2835 = vadd.f32 %v2833, 0.5
  %v2836 = vmul.f32 %v2822, %v2834
  %v2837 = vmul.f32 %v2825, %v2835
  %v2838 = vpack.c.bf16 %v2837, %v2836
  %s2839 = scalar_lea.vmem %s6, 64
  %v2840 = vld [vmem:[%s2839] sm:$0xf]
  %v2841 = vld [vmem:[%s2839 + $0x4] sm:$0xf]
  %v2842 = vld [vmem:[%s2839 + $0x8] sm:$0xf]
  %v2843 = vld [vmem:[%s2839 + $0xc] sm:$0xf]
  %v2844 = vld [vmem:[%s2839 + $0x10] sm:$0xf]
  %v2845 = vld [vmem:[%s2839 + $0x14] sm:$0xf]
  %v2846 = vld [vmem:[%s2839 + $0x18] sm:$0xf]
  %v2847 = vld [vmem:[%s2839 + $0x1c] sm:$0xf]
  %v2848 = vld [vmem:[%s2839 + $0x20] sm:$0xf]
  %v2849 = vld [vmem:[%s2839 + $0x24] sm:$0xf]
  %v2850 = vld [vmem:[%s2839 + $0x28] sm:$0xf]
  %v2851 = vld [vmem:[%s2839 + $0x2c] sm:$0xf]
  %v2852 = vld [vmem:[%s2839 + $0x30] sm:$0xf]
  %v2853 = vld [vmem:[%s2839 + $0x34] sm:$0xf]
  %v2854 = vld [vmem:[%s2839 + $0x38] sm:$0xf]
  %v2855 = vld [vmem:[%s2839 + $0x3c] sm:$0xf]
  %v2872 = vunpack.c.l.b16 %v2840
  %v2873 = vunpack.c.l.b16 %v2841
  %v2874 = vunpack.c.l.b16 %v2842
  %v2875 = vunpack.c.l.b16 %v2843
  %v2876 = vunpack.c.l.b16 %v2844
  %v2877 = vunpack.c.l.b16 %v2845
  %v2878 = vunpack.c.l.b16 %v2846
  %v2879 = vunpack.c.l.b16 %v2847
  %v2880 = vunpack.c.l.b16 %v2848
  %v2881 = vunpack.c.l.b16 %v2849
  %v2882 = vunpack.c.l.b16 %v2850
  %v2883 = vunpack.c.l.b16 %v2851
  %v2884 = vunpack.c.l.b16 %v2852
  %v2885 = vunpack.c.l.b16 %v2853
  %v2886 = vunpack.c.l.b16 %v2854
  %v2887 = vunpack.c.l.b16 %v2855
  %v2888 = vpack.c.b16 %v2873, %v2872
  %v2889 = vpack.c.b16 %v2875, %v2874
  %v2890 = vpack.c.b16 %v2877, %v2876
  %v2891 = vpack.c.b16 %v2879, %v2878
  %v2892 = vpack.c.b16 %v2881, %v2880
  %v2893 = vpack.c.b16 %v2883, %v2882
  %v2894 = vpack.c.b16 %v2885, %v2884
  %v2895 = vpack.c.b16 %v2887, %v2886
  %2904 = vmatprep.subr.bf16.mxu0 0
  %2905 = vmatpush1.bf16.msra.mxu0 %v2888
  %2906 = vmatprep.subr.bf16.mxu0 0
  %2907 = vmatpush1.bf16.msra.mxu0 %v2889
  %2908 = vmatprep.subr.bf16.mxu0 0
  %2909 = vmatpush1.bf16.msra.mxu0 %v2890
  %2910 = vmatprep.subr.bf16.mxu0 0
  %2911 = vmatpush1.bf16.msra.mxu0 %v2891
  %2912 = vmatprep.subr.bf16.mxu0 0
  %2913 = vmatpush1.bf16.msra.mxu0 %v2892
  %2914 = vmatprep.subr.bf16.mxu0 0
  %2915 = vmatpush1.bf16.msra.mxu0 %v2893
  %2916 = vmatprep.subr.bf16.mxu0 0
  %2917 = vmatpush1.bf16.msra.mxu0 %v2894
  %2918 = vmatprep.subr.bf16.mxu0 0
  %2919 = vmatpush1.bf16.msra.mxu0 %v2895
  %2920 = vmatprep.subr.bf16.mxu0 0
  %2921 = vmatpush1.bf16.msra.mxu0 0
  %2922 = vmatprep.subr.bf16.mxu0 0
  %2923 = vmatpush1.bf16.msra.mxu0 0
  %2924 = vmatprep.subr.bf16.mxu0 0
  %2925 = vmatpush1.bf16.msra.mxu0 0
  %2926 = vmatprep.subr.bf16.mxu0 0
  %2927 = vmatpush1.bf16.msra.mxu0 0
  %2928 = vmatprep.subr.bf16.mxu0 0
  %2929 = vmatpush1.bf16.msra.mxu0 0
  %2930 = vmatprep.subr.bf16.mxu0 0
  %2931 = vmatpush1.bf16.msra.mxu0 0
  %2932 = vmatprep.subr.bf16.mxu0 0
  %2933 = vmatpush1.bf16.msra.mxu0 0
  %2934 = vmatprep.subr.bf16.mxu0 0
  %2935 = vmatpush1.bf16.msra.mxu0 0
  %2936 = vmatprep.mubr.bf16.mxu0 0
  %2937 = vmatmul.mubr.bf16.gmra.mrb[0].mxu0 %v2838
  %v2938 = vpop.f32.mrb[0].mxu0
  %v2939 = vadd.f32 0.0, %v2938
  %v2940 = vpop.f32.mrb[0].mxu0
  %v2941 = vpop.f32.mrb[0].mxu0
  %v2942 = vadd.f32 0.0, %v2941
  %v2943 = vpop.f32.mrb[0].mxu0
  %2944 = vdwg.mxu0
  %v2945 = vadd.f32 %v2718, %v2939
  %v2946 = vadd.f32 %v2719, %v2942
  %v2947 = vlaneseq
  %v2948 = vshrl.u32 %v2947, 7
  %v2949 = vsub.s32 5, %v2948
  %v2950 = vrot.slane %v1492, %v2949
  %v2951 = vadd.f32 %v2945, %v2950
  %v2952 = vadd.f32 %v2946, %v2950
  %2953 = vst.msk [vmem:[%s8] sm:$0xff] %vm33, %v2951
  %2954 = vst.msk [vmem:[%s8 + $0x8] sm:$0xff] %vm33, %v2952
  // Predicated region
  $region34: #{transformer_forward.1} parent=0 // pred_check
    _
  $region35: #{transformer_forward.1} parent=0 // pred_check_branch
    %2956 = sbr.rel (0) target = $region37
  $region36: #{transformer_forward.1} parent=0 // pred_region
    _
  $region37: #{transformer_forward.1} parent=0 // pred_fallthru
    _
  // Predicated region
  $region38: #{transformer_forward.1} parent=0 // pred_check
    _
  $region39: #{transformer_forward.1} parent=0 // pred_check_branch
    %2958 = sbr.rel (0) target = $region41
  $region40: #{transformer_forward.1} parent=0 // pred_region
    _
  $region41: #{transformer_forward.1} parent=0 // pred_fallthru
    _

</llo_original>
